<compile_context>
chip_gen: v6e
topology: v6e:2x2x1
jax: 0.10.0
libtpu: 0.0.40
codegen_flags: <defaults>
</compile_context>

<pallas_src>
import functools
import math

import jax
import jax.numpy as jnp
from jax.experimental import pallas as pl
from jax.experimental.pallas import tpu as pltpu

LANE = 128
SUBLANE = 8
HEAD_BLOCK = 32   # lane granularity for the per-head sub-blocks


def _ru(n, m):
    return ((n + m - 1) // m) * m


# ---------------------------------------------------------------------------
# Fused whole-model kernel
# ---------------------------------------------------------------------------

def _ln_rows(x, g, b, d_valid, eps):
    """LayerNorm over the last dim; assumes columns >= d_valid of x are exactly 0
    and that padded gamma/beta lanes are 0 (keeps the pad-lane-is-zero invariant)."""
    inv_d = 1.0 / d_valid
    mu = jnp.sum(x, axis=-1, keepdims=True) * inv_d
    var = jnp.sum(x * x, axis=-1, keepdims=True) * inv_d - mu * mu
    return (x - mu) * jax.lax.rsqrt(var + eps) * g + b


def _transformer_kernel(
    # inputs
    x_ref, enc_w_ref, enc_b_ref,
    wqkv_ref, bqkv_ref, wo_ref, bo_ref,
    ln1_g_ref, ln1_b_ref, w1_ref, b1_ref, w2_ref, b2_ref, ln2_g_ref, ln2_b_ref,
    fin_g_ref, fin_b_ref, w3_ref, b3_ref,
    # outputs
    out_ref,
    # scratch
    h_ref,
    *, B, Bp, S, D, DP, HB, nhead, dh, eps):

    layer = pl.program_id(0)
    n_layers = pl.num_programs(0)
    m_pad = h_ref.shape[0]               # S * Bp
    qw = nhead * HB                      # width of each of the q / k / v lane blocks
    scale = 1.0 / math.sqrt(dh)

    # ---- first grid step only: input projection  x @ W_enc + b_enc -> VMEM ----
    @pl.when(layer == 0)
    def _():
        h_ref[...] = (
            jnp.dot(x_ref[...], enc_w_ref[...], preferred_element_type=jnp.float32)
            + enc_b_ref[...])

    h = h_ref[...]                                              # (m_pad, DP) f32
    h_bf = h.astype(jnp.bfloat16)

    # ---- in-kernel additive attention mask -------------------------------------
    # row = s*Bp + b ; tokens attend only within the same (valid) batch index.
    r = jax.lax.broadcasted_iota(jnp.int32, (m_pad, m_pad), 0)
    c = jax.lax.broadcasted_iota(jnp.int32, (m_pad, m_pad), 1)
    allowed = ((r % Bp) == (c % Bp)) & ((c % Bp) < B)
    bias = jnp.where(allowed, jnp.float32(0.0), jnp.float32(-1e30))

    # ---- self attention ---------------------------------------------------------
    # qkv layout: [ q (nhead*HB lanes) | k (nhead*HB) | v (nhead*HB) ],
    # head h occupying lanes [h*HB, (h+1)*HB) of its block (dh valid, rest zero).
    qkv = (jnp.dot(h_bf, wqkv_ref[0], preferred_element_type=jnp.float32)
           + bqkv_ref[0])                                       # (m_pad, 3*qw) f32

    q_all = (qkv[:, 0:qw] * scale).astype(jnp.bfloat16)
    k_all = qkv[:, qw:2 * qw].astype(jnp.bfloat16)
    v_all = qkv[:, 2 * qw:3 * qw].astype(jnp.bfloat16)

    head_outs = []
    for hh in range(nhead):
        q = q_all[:, hh * HB:(hh + 1) * HB]
        k = k_all[:, hh * HB:(hh + 1) * HB]
        v = v_all[:, hh * HB:(hh + 1) * HB]
        s_mat = jax.lax.dot_general(
            q, k, (((1,), (1,)), ((), ())),
            preferred_element_type=jnp.float32)                 # (m_pad, m_pad) f32
        s_mat = s_mat + bias
        m_max = jnp.max(s_mat, axis=-1, keepdims=True)
        p = jnp.exp(s_mat - m_max)
        denom = jnp.sum(p, axis=-1, keepdims=True)
        p = (p * pl.reciprocal(denom, approx=True)).astype(jnp.bfloat16)
        head_outs.append(jnp.dot(p, v, preferred_element_type=jnp.float32))

    attn_in = jnp.concatenate(head_outs, axis=-1).astype(jnp.bfloat16)   # (m_pad, qw)
    attn = (jnp.dot(attn_in, wo_ref[0], preferred_element_type=jnp.float32)
            + bo_ref[0])                                                  # (m_pad, DP)

    # residual + norm1 (post-norm; dropout = identity in eval mode)
    h1 = _ln_rows(h + attn, ln1_g_ref[0], ln1_b_ref[0], D, eps)

    # ---- feed forward (relu) ----------------------------------------------------
    ff = jnp.maximum(
        jnp.dot(h1.astype(jnp.bfloat16), w1_ref[0],
                preferred_element_type=jnp.float32) + b1_ref[0], 0.0)
    ff = (jnp.dot(ff.astype(jnp.bfloat16), w2_ref[0],
                  preferred_element_type=jnp.float32) + b2_ref[0])

    # residual + norm2 -> carried activation for the next grid step
    h2 = _ln_rows(h1 + ff, ln2_g_ref[0], ln2_b_ref[0], D, eps)
    h_ref[...] = h2

    # ---- last grid step only: final LayerNorm + classifier ------------------------
    @pl.when(layer == n_layers - 1)
    def _():
        hf = _ln_rows(h2, fin_g_ref[...], fin_b_ref[...], D, eps)
        hf_bf = hf.astype(jnp.bfloat16)
        acc = jnp.zeros(out_ref.shape, jnp.float32) + b3_ref[...]
        for s in range(S):
            blk = hf_bf[s * Bp:(s + 1) * Bp, :]        # sublane-aligned (Bp, DP) slice
            acc = acc + jnp.dot(blk, w3_ref[s], preferred_element_type=jnp.float32)
        out_ref[...] = acc                              # full (Bp, OP) unmasked store


# ---------------------------------------------------------------------------
# Wrapper
# ---------------------------------------------------------------------------

def transformer_forward(x, packed, *, d_model, nhead, output_size):
    """x: (B, S, 1, input_size) -> (B, output_size)."""
    B, S, _, N = x.shape
    D = d_model
    dh = D // nhead
    KP, DP = packed['enc_w'].shape
    QW = packed['wo'].shape[1]
    HB = QW // nhead
    FP = packed['w1'].shape[2]
    OP = packed['w3'].shape[2]
    L = packed['wqkv'].shape[0]
    Bp = _ru(B, SUBLANE)
    M_pad = S * Bp

    # row = s*Bp + b (seq-major, batch padded to a sublane multiple); pad rows are zero.
    x_sb = jnp.transpose(x.reshape(B, S, N).astype(jnp.float32), (1, 0, 2))   # (S, B, N)
    x_pad = jnp.zeros((S, Bp, KP), jnp.float32).at[:, :B, :N].set(x_sb)
    x_pad = x_pad.reshape(M_pad, KP).astype(jnp.bfloat16)

    kernel = functools.partial(
        _transformer_kernel, B=B, Bp=Bp, S=S, D=D, DP=DP, HB=HB,
        nhead=nhead, dh=dh, eps=1e-5)

    f2 = lambda l: (0, 0)
    f3 = lambda l: (0, 0, 0)
    l3 = lambda l: (l, 0, 0)

    in_specs = [
        pl.BlockSpec((M_pad, KP), f2),                 # x (bf16)
        pl.BlockSpec((KP, DP), f2),                    # enc_w (bf16)
        pl.BlockSpec((1, DP), f2),                     # enc_b (f32)
        pl.BlockSpec((1, DP, 3 * QW), l3),             # wqkv  (bf16, per layer)
        pl.BlockSpec((1, 1, 3 * QW), l3),              # bqkv  (f32)
        pl.BlockSpec((1, QW, DP), l3),                 # wo    (bf16, fused heads)
        pl.BlockSpec((1, 1, DP), l3),                  # bo
        pl.BlockSpec((1, 1, DP), l3),                  # ln1_g
        pl.BlockSpec((1, 1, DP), l3),                  # ln1_b
        pl.BlockSpec((1, DP, FP), l3),                 # w1 (bf16)
        pl.BlockSpec((1, 1, FP), l3),                  # b1
        pl.BlockSpec((1, FP, DP), l3),                 # w2 (bf16)
        pl.BlockSpec((1, 1, DP), l3),                  # b2
        pl.BlockSpec((1, 1, DP), l3),                  # ln2_g
        pl.BlockSpec((1, 1, DP), l3),                  # ln2_b
        pl.BlockSpec((1, DP), f2),                     # final ln gamma
        pl.BlockSpec((1, DP), f2),                     # final ln beta
        pl.BlockSpec((S, DP, OP), f3),                 # classifier weight (bf16)
        pl.BlockSpec((1, OP), f2),                     # classifier bias
    ]

    out_pad = pl.pallas_call(
        kernel,
        out_shape=jax.ShapeDtypeStruct((Bp, OP), jnp.float32),
        grid_spec=pltpu.PrefetchScalarGridSpec(
            num_scalar_prefetch=0,
            grid=(L,),
            in_specs=in_specs,
            out_specs=pl.BlockSpec((Bp, OP), f2),
            scratch_shapes=[pltpu.VMEM((M_pad, DP), jnp.float32)],
        ),
        compiler_params=pltpu.CompilerParams(
            dimension_semantics=("arbitrary",),
            vmem_limit_bytes=64 * 1024 * 1024),
    )(x_pad, packed['enc_w'], packed['enc_b'],
      packed['wqkv'], packed['bqkv'], packed['wo'], packed['bo'],
      packed['ln1_g'], packed['ln1_b'], packed['w1'], packed['b1'],
      packed['w2'], packed['b2'], packed['ln2_g'], packed['ln2_b'],
      packed['fin_g'], packed['fin_b'], packed['w3'], packed['b3'])

    return out_pad[:B, :output_size]


# ---------------------------------------------------------------------------
# Parameters: logical (unpadded) init + packed/padded layout for the kernel
# ---------------------------------------------------------------------------

def init_params(key, input_size, output_size, d_model, nhead, num_layers, dff):
    def nrm(k, shape, scale=0.02):
        return (scale * jax.random.normal(k, shape)).astype(jnp.float32)

    keys = jax.random.split(key, 8 + num_layers)
    params = {
        'enc_w': nrm(keys[0], (input_size, d_model)),
        'enc_b': nrm(keys[1], (d_model,)),
        'final_ln_g': 1.0 + nrm(keys[2], (d_model,), 0.05),
        'final_ln_b': nrm(keys[3], (d_model,), 0.05),
        'lin_w': nrm(keys[4], (d_model * 5, output_size)),
        'lin_b': nrm(keys[5], (output_size,)),
        'layers': [],
    }
    for li in range(num_layers):
        lk = jax.random.split(keys[8 + li], 12)
        params['layers'].append({
            'in_proj_w': nrm(lk[0], (d_model, 3 * d_model)),   # columns [q | k | v]
            'in_proj_b': nrm(lk[1], (3 * d_model,)),
            'out_proj_w': nrm(lk[2], (d_model, d_model)),
            'out_proj_b': nrm(lk[3], (d_model,)),
            'ln1_g': 1.0 + nrm(lk[4], (d_model,), 0.05),
            'ln1_b': nrm(lk[5], (d_model,), 0.05),
            'ln2_g': 1.0 + nrm(lk[6], (d_model,), 0.05),
            'ln2_b': nrm(lk[7], (d_model,), 0.05),
            'lin1_w': nrm(lk[8], (d_model, dff)),
            'lin1_b': nrm(lk[9], (dff,)),
            'lin2_w': nrm(lk[10], (dff, d_model)),
            'lin2_b': nrm(lk[11], (d_model,)),
        })
    return params


def pack_params(params, *, S, d_model, nhead, dff, input_size, output_size):
    D = d_model
    dh = D // nhead
    DP = _ru(D, LANE)
    FP = _ru(dff, LANE)
    KP = _ru(input_size, LANE)
    OP = _ru(output_size, LANE)
    HB = _ru(dh, HEAD_BLOCK)          # 32-lane aligned per-head sub-block
    QW = nhead * HB                   # width of each of the q/k/v lane blocks

    def pad2(a, r, c, dtype=jnp.float32):
        a = jnp.asarray(a, jnp.float32)
        if a.ndim == 1:
            a = a.reshape(1, -1)
        out = jnp.zeros((r, c), jnp.float32).at[:a.shape[0], :a.shape[1]].set(a)
        return out.astype(dtype)

    packed = {
        'enc_w': pad2(params['enc_w'], KP, DP, jnp.bfloat16),
        'enc_b': pad2(params['enc_b'], 1, DP),
        'fin_g': pad2(params['final_ln_g'], 1, DP),
        'fin_b': pad2(params['final_ln_b'], 1, DP),
        'b3': pad2(params['lin_b'], 1, OP),
    }
    w3 = jnp.zeros((S, DP, OP), jnp.float32)
    w3 = w3.at[:, :D, :output_size].set(params['lin_w'].reshape(S, D, output_size))
    packed['w3'] = w3.astype(jnp.bfloat16)

    def pack_wqkv(ly):
        w = jnp.zeros((DP, 3 * QW), jnp.float32)
        b = jnp.zeros((1, 3 * QW), jnp.float32)
        for idx in range(3):          # 0 = q, 1 = k, 2 = v
            for h in range(nhead):
                c0 = idx * QW + h * HB
                w = w.at[:D, c0:c0 + dh].set(
                    ly['in_proj_w'][:, idx * D + h * dh: idx * D + (h + 1) * dh])
                b = b.at[0, c0:c0 + dh].set(
                    ly['in_proj_b'][idx * D + h * dh: idx * D + (h + 1) * dh])
        return w.astype(jnp.bfloat16), b

    def pack_wo(ly):
        w = jnp.zeros((QW, DP), jnp.float32)
        for h in range(nhead):
            w = w.at[h * HB:h * HB + dh, :D].set(ly['out_proj_w'][h * dh:(h + 1) * dh, :])
        return w.astype(jnp.bfloat16)

    layers = params['layers']
    wq, bq = zip(*[pack_wqkv(ly) for ly in layers])
    packed['wqkv'] = jnp.stack(list(wq))                          # (L, DP, 3*QW) bf16
    packed['bqkv'] = jnp.stack(list(bq))                          # (L, 1, 3*QW)  f32
    packed['wo'] = jnp.stack([pack_wo(ly) for ly in layers])      # (L, QW, DP)   bf16
    packed['bo'] = jnp.stack([pad2(ly['out_proj_b'], 1, DP) for ly in layers])
    packed['ln1_g'] = jnp.stack([pad2(ly['ln1_g'], 1, DP) for ly in layers])
    packed['ln1_b'] = jnp.stack([pad2(ly['ln1_b'], 1, DP) for ly in layers])
    packed['ln2_g'] = jnp.stack([pad2(ly['ln2_g'], 1, DP) for ly in layers])
    packed['ln2_b'] = jnp.stack([pad2(ly['ln2_b'], 1, DP) for ly in layers])
    packed['w1'] = jnp.stack([pad2(ly['lin1_w'], DP, FP, jnp.bfloat16) for ly in layers])
    packed['b1'] = jnp.stack([pad2(ly['lin1_b'], 1, FP) for ly in layers])
    packed['w2'] = jnp.stack([pad2(ly['lin2_w'], FP, DP, jnp.bfloat16) for ly in layers])
    packed['b2'] = jnp.stack([pad2(ly['lin2_b'], 1, DP) for ly in layers])
    return packed


# ---------------------------------------------------------------------------
# Pure-JAX reference (mirrors the PyTorch module, eval mode, f32)
# ---------------------------------------------------------------------------

def reference_forward(x, params, nhead):
    B, S, _, N = x.shape
    xb = x.reshape(B, S, N).astype(jnp.float32)
    D = params['enc_w'].shape[1]
    dh = D // nhead

    def ln(v, g, b, eps=1e-5):
        mu = jnp.mean(v, axis=-1, keepdims=True)
        var = jnp.mean((v - mu) ** 2, axis=-1, keepdims=True)
        return (v - mu) / jnp.sqrt(var + eps) * g + b

    h = xb @ params['enc_w'] + params['enc_b']
    for p in params['layers']:
        x2 = h.reshape(B * S, D)
        qkv = x2 @ p['in_proj_w'] + p['in_proj_b']
        q, k, v = jnp.split(qkv, 3, axis=-1)

        def split_heads(t):
            return t.reshape(B, S, nhead, dh).transpose(0, 2, 1, 3)

        qh, kh, vh = split_heads(q), split_heads(k), split_heads(v)
        s_mat = jnp.einsum('bhqd,bhkd->bhqk', qh, kh) / math.sqrt(dh)
        attn_p = jax.nn.softmax(s_mat, axis=-1)
        oh = jnp.einsum('bhqk,bhkd->bhqd', attn_p, vh)
        attn = oh.transpose(0, 2, 1, 3).reshape(B * S, D)
        attn = attn @ p['out_proj_w'] + p['out_proj_b']
        h1 = ln(x2 + attn, p['ln1_g'], p['ln1_b'])
        ff = jnp.maximum(h1 @ p['lin1_w'] + p['lin1_b'], 0.0)
        ff = ff @ p['lin2_w'] + p['lin2_b']
        h = ln(h1 + ff, p['ln2_g'], p['ln2_b']).reshape(B, S, D)
    h = ln(h, params['final_ln_g'], params['final_ln_b'])
    memory = h.reshape(B, S * D)
    return memory @ params['lin_w'] + params['lin_b']


if __name__ == "__main__":
    # Seq length must be 5: the classifier expects d_model * 5 features.
    B, S = 2, 5
    input_size, output_size = 16, 10
    d_model, nhead, num_layers, dff = 32, 4, 2, 64

    key = jax.random.PRNGKey(0)
    kx, kp = jax.random.split(key)
    x = jax.random.normal(kx, (B, S, 1, input_size), dtype=jnp.float32)

    params = init_params(kp, input_size, output_size, d_model, nhead, num_layers, dff)
    packed = pack_params(params, S=S, d_model=d_model, nhead=nhead, dff=dff,
                         input_size=input_size, output_size=output_size)

    fwd = jax.jit(functools.partial(
        transformer_forward, d_model=d_model, nhead=nhead, output_size=output_size))
    out = jax.block_until_ready(fwd(x, packed))
    assert out.shape == (B, output_size)

    ref = reference_forward(x, params, nhead)
    assert bool(jnp.all(jnp.isfinite(out))), "non-finite kernel output"
    err = float(jnp.max(jnp.abs(out - ref)))
    assert err < 5e-2, f"kernel/reference mismatch: max abs err = {err}"
    print("KERNEL_OK")
</pallas_src>

<mosaic_0001>
module attributes {stable_mosaic.version = 11 : i64} {
  func.func @_transformer_kernel(%arg0: i32, %arg1: memref<40x128xbf16, #tpu.memory_space<vmem>>, %arg2: memref<128x128xbf16, #tpu.memory_space<vmem>>, %arg3: memref<1x128xf32, #tpu.memory_space<vmem>>, %arg4: memref<1x128x384xbf16, #tpu.memory_space<vmem>>, %arg5: memref<1x1x384xf32, #tpu.memory_space<vmem>>, %arg6: memref<1x128x128xbf16, #tpu.memory_space<vmem>>, %arg7: memref<1x1x128xf32, #tpu.memory_space<vmem>>, %arg8: memref<1x1x128xf32, #tpu.memory_space<vmem>>, %arg9: memref<1x1x128xf32, #tpu.memory_space<vmem>>, %arg10: memref<1x128x128xbf16, #tpu.memory_space<vmem>>, %arg11: memref<1x1x128xf32, #tpu.memory_space<vmem>>, %arg12: memref<1x128x128xbf16, #tpu.memory_space<vmem>>, %arg13: memref<1x1x128xf32, #tpu.memory_space<vmem>>, %arg14: memref<1x1x128xf32, #tpu.memory_space<vmem>>, %arg15: memref<1x1x128xf32, #tpu.memory_space<vmem>>, %arg16: memref<1x128xf32, #tpu.memory_space<vmem>>, %arg17: memref<1x128xf32, #tpu.memory_space<vmem>>, %arg18: memref<5x128x128xbf16, #tpu.memory_space<vmem>>, %arg19: memref<1x128xf32, #tpu.memory_space<vmem>>, %arg20: memref<8x128xf32, #tpu.memory_space<vmem>>, %arg21: memref<40x128xf32, #tpu.memory_space<vmem>>) attributes {dimension_semantics = [#tpu.dimension_semantics<arbitrary>], iteration_bounds = array<i64: 2>, scalar_prefetch = 0 : i64, scratch_operands = 1 : i64, tpu.core_type = #tpu.core_type<tc>, window_params = [{pipeline_mode = #tpu.pipeline_mode<synchronous>, transform_indices = @transform_0, window_bounds = array<i64: 40, 128>}, {pipeline_mode = #tpu.pipeline_mode<synchronous>, transform_indices = @transform_1, window_bounds = array<i64: 128, 128>}, {pipeline_mode = #tpu.pipeline_mode<synchronous>, transform_indices = @transform_2, window_bounds = array<i64: 1, 128>}, {transform_indices = @transform_3, window_bounds = array<i64: 1, 128, 384>}, {transform_indices = @transform_4, window_bounds = array<i64: 1, 1, 384>}, {transform_indices = @transform_5, window_bounds = array<i64: 1, 128, 128>}, {transform_indices = @transform_6, window_bounds = array<i64: 1, 1, 128>}, {transform_indices = @transform_7, window_bounds = array<i64: 1, 1, 128>}, {transform_indices = @transform_8, window_bounds = array<i64: 1, 1, 128>}, {transform_indices = @transform_9, window_bounds = array<i64: 1, 128, 128>}, {transform_indices = @transform_10, window_bounds = array<i64: 1, 1, 128>}, {transform_indices = @transform_11, window_bounds = array<i64: 1, 128, 128>}, {transform_indices = @transform_12, window_bounds = array<i64: 1, 1, 128>}, {transform_indices = @transform_13, window_bounds = array<i64: 1, 1, 128>}, {transform_indices = @transform_14, window_bounds = array<i64: 1, 1, 128>}, {pipeline_mode = #tpu.pipeline_mode<synchronous>, transform_indices = @transform_15, window_bounds = array<i64: 1, 128>}, {pipeline_mode = #tpu.pipeline_mode<synchronous>, transform_indices = @transform_16, window_bounds = array<i64: 1, 128>}, {pipeline_mode = #tpu.pipeline_mode<synchronous>, transform_indices = @transform_17, window_bounds = array<i64: 5, 128, 128>}, {pipeline_mode = #tpu.pipeline_mode<synchronous>, transform_indices = @transform_18, window_bounds = array<i64: 1, 128>}, {pipeline_mode = #tpu.pipeline_mode<synchronous>, transform_indices = @transform_19, window_bounds = array<i64: 8, 128>}]} {
    %c0_i32 = arith.constant 0 : i32
    %0 = arith.cmpi eq, %arg0, %c0_i32 : i32
    %1 = arith.extui %0 : i1 to i32
    %c0_i32_0 = arith.constant 0 : i32
    %2 = arith.cmpi ne, %1, %c0_i32_0 : i32
    scf.if %2 {
      %c0_91 = arith.constant 0 : index
      %c0_92 = arith.constant 0 : index
      %230 = vector.load %arg1[%c0_91, %c0_92] : memref<40x128xbf16, #tpu.memory_space<vmem>>, vector<40x128xbf16>
      %c0_93 = arith.constant 0 : index
      %c0_94 = arith.constant 0 : index
      %231 = vector.load %arg2[%c0_93, %c0_94] : memref<128x128xbf16, #tpu.memory_space<vmem>>, vector<128x128xbf16>
      %cst_95 = arith.constant dense<0.000000e+00> : vector<40x128xf32>
      %232 = tpu.matmul %230, %231, %cst_95 {dimension_numbers = #tpu.dot_dimension_numbers<[1], [0], [0], [1], [0, 0, 1, 1], [], []>} : vector<40x128xbf16>, vector<128x128xbf16>, vector<40x128xf32> -> vector<40x128xf32>
      %c0_96 = arith.constant 0 : index
      %c0_97 = arith.constant 0 : index
      %233 = vector.load %arg3[%c0_96, %c0_97] : memref<1x128xf32, #tpu.memory_space<vmem>>, vector<1x128xf32>
      %234 = vector.broadcast %233 : vector<1x128xf32> to vector<40x128xf32>
      %235 = arith.addf %232, %234 : vector<40x128xf32>
      %c0_98 = arith.constant 0 : index
      %c0_99 = arith.constant 0 : index
      %236 = vector.load %arg21[%c0_98, %c0_99] : memref<40x128xf32, #tpu.memory_space<vmem>>, vector<40x128xf32>
      tpu.vector_store %arg21[%c0_98, %c0_99], %235 {strides = array<i32>} : memref<40x128xf32, #tpu.memory_space<vmem>>, vector<40x128xf32>,
    } else {
    }
    %c0 = arith.constant 0 : index
    %c0_1 = arith.constant 0 : index
    %3 = vector.load %arg21[%c0, %c0_1] : memref<40x128xf32, #tpu.memory_space<vmem>>, vector<40x128xf32>
    %4 = arith.truncf %3 : vector<40x128xf32> to vector<40x128xbf16>
    %5 = tpu.iota {dimensions = array<i32: 0>} : vector<40x40xi32>
    %6 = tpu.iota {dimensions = array<i32: 1>} : vector<40x40xi32>
    %c8_i32 = arith.constant 8 : i32
    %c0_i32_2 = arith.constant 0 : i32
    %7 = arith.cmpi eq, %c8_i32, %c0_i32_2 : i32
    %c1_i32 = arith.constant 1 : i32
    %8 = arith.select %7, %c1_i32, %c8_i32 : i32
    %9 = vector.broadcast %8 : i32 to vector<40x40xi32>
    %10 = arith.remsi %5, %9 : vector<40x40xi32>
    %c0_i32_3 = arith.constant 0 : i32
    %11 = vector.broadcast %c0_i32_3 : i32 to vector<40x40xi32>
    %12 = arith.cmpi ne, %10, %11 : vector<40x40xi32>
    %c0_i32_4 = arith.constant 0 : i32
    %13 = vector.broadcast %c0_i32_4 : i32 to vector<40x40xi32>
    %14 = arith.cmpi slt, %10, %13 : vector<40x40xi32>
    %c0_i32_5 = arith.constant 0 : i32
    %15 = arith.cmpi slt, %8, %c0_i32_5 : i32
    %16 = vector.broadcast %15 : i1 to vector<40x40xi1>
    %17 = vector.broadcast %16 : vector<40x40xi1> to vector<40x40xi1>
    %18 = arith.xori %14, %17 : vector<40x40xi1>
    %19 = arith.andi %18, %12 : vector<40x40xi1>
    %20 = vector.broadcast %8 : i32 to vector<40x40xi32>
    %21 = arith.addi %10, %20 : vector<40x40xi32>
    %22 = arith.select %19, %21, %10 : vector<40x40xi1>, vector<40x40xi32>
    %c8_i32_6 = arith.constant 8 : i32
    %c0_i32_7 = arith.constant 0 : i32
    %23 = arith.cmpi eq, %c8_i32_6, %c0_i32_7 : i32
    %c1_i32_8 = arith.constant 1 : i32
    %24 = arith.select %23, %c1_i32_8, %c8_i32_6 : i32
    %25 = vector.broadcast %24 : i32 to vector<40x40xi32>
    %26 = arith.remsi %6, %25 : vector<40x40xi32>
    %c0_i32_9 = arith.constant 0 : i32
    %27 = vector.broadcast %c0_i32_9 : i32 to vector<40x40xi32>
    %28 = arith.cmpi ne, %26, %27 : vector<40x40xi32>
    %c0_i32_10 = arith.constant 0 : i32
    %29 = vector.broadcast %c0_i32_10 : i32 to vector<40x40xi32>
    %30 = arith.cmpi slt, %26, %29 : vector<40x40xi32>
    %c0_i32_11 = arith.constant 0 : i32
    %31 = arith.cmpi slt, %24, %c0_i32_11 : i32
    %32 = vector.broadcast %31 : i1 to vector<40x40xi1>
    %33 = vector.broadcast %32 : vector<40x40xi1> to vector<40x40xi1>
    %34 = arith.xori %30, %33 : vector<40x40xi1>
    %35 = arith.andi %34, %28 : vector<40x40xi1>
    %36 = vector.broadcast %24 : i32 to vector<40x40xi32>
    %37 = arith.addi %26, %36 : vector<40x40xi32>
    %38 = arith.select %35, %37, %26 : vector<40x40xi1>, vector<40x40xi32>
    %39 = arith.cmpi eq, %22, %38 : vector<40x40xi32>
    %c8_i32_12 = arith.constant 8 : i32
    %c0_i32_13 = arith.constant 0 : i32
    %40 = arith.cmpi eq, %c8_i32_12, %c0_i32_13 : i32
    %c1_i32_14 = arith.constant 1 : i32
    %41 = arith.select %40, %c1_i32_14, %c8_i32_12 : i32
    %42 = vector.broadcast %41 : i32 to vector<40x40xi32>
    %43 = arith.remsi %6, %42 : vector<40x40xi32>
    %c0_i32_15 = arith.constant 0 : i32
    %44 = vector.broadcast %c0_i32_15 : i32 to vector<40x40xi32>
    %45 = arith.cmpi ne, %43, %44 : vector<40x40xi32>
    %c0_i32_16 = arith.constant 0 : i32
    %46 = vector.broadcast %c0_i32_16 : i32 to vector<40x40xi32>
    %47 = arith.cmpi slt, %43, %46 : vector<40x40xi32>
    %c0_i32_17 = arith.constant 0 : i32
    %48 = arith.cmpi slt, %41, %c0_i32_17 : i32
    %49 = vector.broadcast %48 : i1 to vector<40x40xi1>
    %50 = vector.broadcast %49 : vector<40x40xi1> to vector<40x40xi1>
    %51 = arith.xori %47, %50 : vector<40x40xi1>
    %52 = arith.andi %51, %45 : vector<40x40xi1>
    %53 = vector.broadcast %41 : i32 to vector<40x40xi32>
    %54 = arith.addi %43, %53 : vector<40x40xi32>
    %55 = arith.select %52, %54, %43 : vector<40x40xi1>, vector<40x40xi32>
    %c2_i32 = arith.constant 2 : i32
    %56 = vector.broadcast %c2_i32 : i32 to vector<40x40xi32>
    %57 = arith.cmpi slt, %55, %56 : vector<40x40xi32>
    %58 = arith.andi %39, %57 : vector<40x40xi1>
    %cst = arith.constant 0.000000e+00 : f32
    %cst_18 = arith.constant -1.000000e+30 : f32
    %59 = vector.broadcast %cst : f32 to vector<40x40xf32>
    %60 = vector.broadcast %cst_18 : f32 to vector<40x40xf32>
    %61 = arith.select %58, %59, %60 : vector<40x40xi1>, vector<40x40xf32>
    %c0_19 = arith.constant 0 : index
    %c0_20 = arith.constant 0 : index
    %c0_21 = arith.constant 0 : index
    %62 = vector.load %arg4[%c0_19, %c0_20, %c0_21] : memref<1x128x384xbf16, #tpu.memory_space<vmem>>, vector<1x128x384xbf16>
    %63 = vector.shape_cast %62 : vector<1x128x384xbf16> to vector<128x384xbf16>
    %cst_22 = arith.constant dense<0.000000e+00> : vector<40x384xf32>
    %64 = tpu.matmul %4, %63, %cst_22 {dimension_numbers = #tpu.dot_dimension_numbers<[1], [0], [0], [1], [0, 0, 1, 1], [], []>} : vector<40x128xbf16>, vector<128x384xbf16>, vector<40x384xf32> -> vector<40x384xf32>
    %c0_23 = arith.constant 0 : index
    %c0_24 = arith.constant 0 : index
    %c0_25 = arith.constant 0 : index
    %65 = vector.load %arg5[%c0_23, %c0_24, %c0_25] : memref<1x1x384xf32, #tpu.memory_space<vmem>>, vector<1x1x384xf32>
    %66 = vector.shape_cast %65 : vector<1x1x384xf32> to vector<1x384xf32>
    %67 = vector.broadcast %66 : vector<1x384xf32> to vector<40x384xf32>
    %68 = arith.addf %64, %67 : vector<40x384xf32>
    %69 = vector.extract_strided_slice %68 {offsets = [0, 0], sizes = [40, 128], strides = [1, 1]} : vector<40x384xf32> to vector<40x128xf32>
    %cst_26 = arith.constant 0.353553385 : f32
    %70 = vector.broadcast %cst_26 : f32 to vector<40x128xf32>
    %71 = arith.mulf %69, %70 : vector<40x128xf32>
    %72 = arith.truncf %71 : vector<40x128xf32> to vector<40x128xbf16>
    %73 = vector.extract_strided_slice %68 {offsets = [0, 128], sizes = [40, 128], strides = [1, 1]} : vector<40x384xf32> to vector<40x128xf32>
    %74 = arith.truncf %73 : vector<40x128xf32> to vector<40x128xbf16>
    %75 = vector.extract_strided_slice %68 {offsets = [0, 256], sizes = [40, 128], strides = [1, 1]} : vector<40x384xf32> to vector<40x128xf32>
    %76 = arith.truncf %75 : vector<40x128xf32> to vector<40x128xbf16>
    %77 = vector.extract_strided_slice %72 {offsets = [0, 0], sizes = [40, 32], strides = [1, 1]} : vector<40x128xbf16> to vector<40x32xbf16>
    %78 = vector.extract_strided_slice %74 {offsets = [0, 0], sizes = [40, 32], strides = [1, 1]} : vector<40x128xbf16> to vector<40x32xbf16>
    %79 = vector.extract_strided_slice %76 {offsets = [0, 0], sizes = [40, 32], strides = [1, 1]} : vector<40x128xbf16> to vector<40x32xbf16>
    %cst_27 = arith.constant dense<0.000000e+00> : vector<40x40xf32>
    %80 = tpu.matmul %77, %78, %cst_27 {dimension_numbers = #tpu.dot_dimension_numbers<[1], [1], [0], [0], [0, 0, 1, 0], [], []>} : vector<40x32xbf16>, vector<40x32xbf16>, vector<40x40xf32> -> vector<40x40xf32>
    %81 = arith.addf %80, %61 : vector<40x40xf32>
    %cst_28 = arith.constant dense<0xFF800000> : vector<40xf32>
    %82 = vector.multi_reduction <maximumf>, %81, %cst_28 [1] : vector<40x40xf32> to vector<40xf32>
    %83 = vector.shape_cast %82 : vector<40xf32> to vector<40x1xf32>
    %84 = vector.broadcast %83 : vector<40x1xf32> to vector<40x40xf32>
    %85 = arith.subf %81, %84 : vector<40x40xf32>
    %86 = math.exp %85 : vector<40x40xf32>
    %cst_29 = arith.constant dense<0.000000e+00> : vector<40xf32>
    %87 = vector.multi_reduction <add>, %86, %cst_29 [1] : vector<40x40xf32> to vector<40xf32>
    %88 = vector.shape_cast %87 : vector<40xf32> to vector<40x1xf32>
    %89 = tpu.reciprocal %88 {approx = true} : vector<40x1xf32> -> vector<40x1xf32>
    %90 = vector.broadcast %89 : vector<40x1xf32> to vector<40x40xf32>
    %91 = arith.mulf %86, %90 : vector<40x40xf32>
    %92 = arith.truncf %91 : vector<40x40xf32> to vector<40x40xbf16>
    %cst_30 = arith.constant dense<0.000000e+00> : vector<40x32xf32>
    %93 = tpu.matmul %92, %79, %cst_30 {dimension_numbers = #tpu.dot_dimension_numbers<[1], [0], [0], [1], [0, 0, 1, 1], [], []>} : vector<40x40xbf16>, vector<40x32xbf16>, vector<40x32xf32> -> vector<40x32xf32>
    %94 = vector.extract_strided_slice %72 {offsets = [0, 32], sizes = [40, 32], strides = [1, 1]} : vector<40x128xbf16> to vector<40x32xbf16>
    %95 = vector.extract_strided_slice %74 {offsets = [0, 32], sizes = [40, 32], strides = [1, 1]} : vector<40x128xbf16> to vector<40x32xbf16>
    %96 = vector.extract_strided_slice %76 {offsets = [0, 32], sizes = [40, 32], strides = [1, 1]} : vector<40x128xbf16> to vector<40x32xbf16>
    %cst_31 = arith.constant dense<0.000000e+00> : vector<40x40xf32>
    %97 = tpu.matmul %94, %95, %cst_31 {dimension_numbers = #tpu.dot_dimension_numbers<[1], [1], [0], [0], [0, 0, 1, 0], [], []>} : vector<40x32xbf16>, vector<40x32xbf16>, vector<40x40xf32> -> vector<40x40xf32>
    %98 = arith.addf %97, %61 : vector<40x40xf32>
    %cst_32 = arith.constant dense<0xFF800000> : vector<40xf32>
    %99 = vector.multi_reduction <maximumf>, %98, %cst_32 [1] : vector<40x40xf32> to vector<40xf32>
    %100 = vector.shape_cast %99 : vector<40xf32> to vector<40x1xf32>
    %101 = vector.broadcast %100 : vector<40x1xf32> to vector<40x40xf32>
    %102 = arith.subf %98, %101 : vector<40x40xf32>
    %103 = math.exp %102 : vector<40x40xf32>
    %cst_33 = arith.constant dense<0.000000e+00> : vector<40xf32>
    %104 = vector.multi_reduction <add>, %103, %cst_33 [1] : vector<40x40xf32> to vector<40xf32>
    %105 = vector.shape_cast %104 : vector<40xf32> to vector<40x1xf32>
    %106 = tpu.reciprocal %105 {approx = true} : vector<40x1xf32> -> vector<40x1xf32>
    %107 = vector.broadcast %106 : vector<40x1xf32> to vector<40x40xf32>
    %108 = arith.mulf %103, %107 : vector<40x40xf32>
    %109 = arith.truncf %108 : vector<40x40xf32> to vector<40x40xbf16>
    %cst_34 = arith.constant dense<0.000000e+00> : vector<40x32xf32>
    %110 = tpu.matmul %109, %96, %cst_34 {dimension_numbers = #tpu.dot_dimension_numbers<[1], [0], [0], [1], [0, 0, 1, 1], [], []>} : vector<40x40xbf16>, vector<40x32xbf16>, vector<40x32xf32> -> vector<40x32xf32>
    %111 = vector.extract_strided_slice %72 {offsets = [0, 64], sizes = [40, 32], strides = [1, 1]} : vector<40x128xbf16> to vector<40x32xbf16>
    %112 = vector.extract_strided_slice %74 {offsets = [0, 64], sizes = [40, 32], strides = [1, 1]} : vector<40x128xbf16> to vector<40x32xbf16>
    %113 = vector.extract_strided_slice %76 {offsets = [0, 64], sizes = [40, 32], strides = [1, 1]} : vector<40x128xbf16> to vector<40x32xbf16>
    %cst_35 = arith.constant dense<0.000000e+00> : vector<40x40xf32>
    %114 = tpu.matmul %111, %112, %cst_35 {dimension_numbers = #tpu.dot_dimension_numbers<[1], [1], [0], [0], [0, 0, 1, 0], [], []>} : vector<40x32xbf16>, vector<40x32xbf16>, vector<40x40xf32> -> vector<40x40xf32>
    %115 = arith.addf %114, %61 : vector<40x40xf32>
    %cst_36 = arith.constant dense<0xFF800000> : vector<40xf32>
    %116 = vector.multi_reduction <maximumf>, %115, %cst_36 [1] : vector<40x40xf32> to vector<40xf32>
    %117 = vector.shape_cast %116 : vector<40xf32> to vector<40x1xf32>
    %118 = vector.broadcast %117 : vector<40x1xf32> to vector<40x40xf32>
    %119 = arith.subf %115, %118 : vector<40x40xf32>
    %120 = math.exp %119 : vector<40x40xf32>
    %cst_37 = arith.constant dense<0.000000e+00> : vector<40xf32>
    %121 = vector.multi_reduction <add>, %120, %cst_37 [1] : vector<40x40xf32> to vector<40xf32>
    %122 = vector.shape_cast %121 : vector<40xf32> to vector<40x1xf32>
    %123 = tpu.reciprocal %122 {approx = true} : vector<40x1xf32> -> vector<40x1xf32>
    %124 = vector.broadcast %123 : vector<40x1xf32> to vector<40x40xf32>
    %125 = arith.mulf %120, %124 : vector<40x40xf32>
    %126 = arith.truncf %125 : vector<40x40xf32> to vector<40x40xbf16>
    %cst_38 = arith.constant dense<0.000000e+00> : vector<40x32xf32>
    %127 = tpu.matmul %126, %113, %cst_38 {dimension_numbers = #tpu.dot_dimension_numbers<[1], [0], [0], [1], [0, 0, 1, 1], [], []>} : vector<40x40xbf16>, vector<40x32xbf16>, vector<40x32xf32> -> vector<40x32xf32>
    %128 = vector.extract_strided_slice %72 {offsets = [0, 96], sizes = [40, 32], strides = [1, 1]} : vector<40x128xbf16> to vector<40x32xbf16>
    %129 = vector.extract_strided_slice %74 {offsets = [0, 96], sizes = [40, 32], strides = [1, 1]} : vector<40x128xbf16> to vector<40x32xbf16>
    %130 = vector.extract_strided_slice %76 {offsets = [0, 96], sizes = [40, 32], strides = [1, 1]} : vector<40x128xbf16> to vector<40x32xbf16>
    %cst_39 = arith.constant dense<0.000000e+00> : vector<40x40xf32>
    %131 = tpu.matmul %128, %129, %cst_39 {dimension_numbers = #tpu.dot_dimension_numbers<[1], [1], [0], [0], [0, 0, 1, 0], [], []>} : vector<40x32xbf16>, vector<40x32xbf16>, vector<40x40xf32> -> vector<40x40xf32>
    %132 = arith.addf %131, %61 : vector<40x40xf32>
    %cst_40 = arith.constant dense<0xFF800000> : vector<40xf32>
    %133 = vector.multi_reduction <maximumf>, %132, %cst_40 [1] : vector<40x40xf32> to vector<40xf32>
    %134 = vector.shape_cast %133 : vector<40xf32> to vector<40x1xf32>
    %135 = vector.broadcast %134 : vector<40x1xf32> to vector<40x40xf32>
    %136 = arith.subf %132, %135 : vector<40x40xf32>
    %137 = math.exp %136 : vector<40x40xf32>
    %cst_41 = arith.constant dense<0.000000e+00> : vector<40xf32>
    %138 = vector.multi_reduction <add>, %137, %cst_41 [1] : vector<40x40xf32> to vector<40xf32>
    %139 = vector.shape_cast %138 : vector<40xf32> to vector<40x1xf32>
    %140 = tpu.reciprocal %139 {approx = true} : vector<40x1xf32> -> vector<40x1xf32>
    %141 = vector.broadcast %140 : vector<40x1xf32> to vector<40x40xf32>
    %142 = arith.mulf %137, %141 : vector<40x40xf32>
    %143 = arith.truncf %142 : vector<40x40xf32> to vector<40x40xbf16>
    %cst_42 = arith.constant dense<0.000000e+00> : vector<40x32xf32>
    %144 = tpu.matmul %143, %130, %cst_42 {dimension_numbers = #tpu.dot_dimension_numbers<[1], [0], [0], [1], [0, 0, 1, 1], [], []>} : vector<40x40xbf16>, vector<40x32xbf16>, vector<40x32xf32> -> vector<40x32xf32>
    %145 = tpu.concatenate %93, %110, %127, %144 in 1 : vector<40x32xf32>, vector<40x32xf32>, vector<40x32xf32>, vector<40x32xf32> -> vector<40x128xf32>
    %146 = arith.truncf %145 : vector<40x128xf32> to vector<40x128xbf16>
    %c0_43 = arith.constant 0 : index
    %c0_44 = arith.constant 0 : index
    %c0_45 = arith.constant 0 : index
    %147 = vector.load %arg6[%c0_43, %c0_44, %c0_45] : memref<1x128x128xbf16, #tpu.memory_space<vmem>>, vector<1x128x128xbf16>
    %148 = vector.shape_cast %147 : vector<1x128x128xbf16> to vector<128x128xbf16>
    %cst_46 = arith.constant dense<0.000000e+00> : vector<40x128xf32>
    %149 = tpu.matmul %146, %148, %cst_46 {dimension_numbers = #tpu.dot_dimension_numbers<[1], [0], [0], [1], [0, 0, 1, 1], [], []>} : vector<40x128xbf16>, vector<128x128xbf16>, vector<40x128xf32> -> vector<40x128xf32>
    %c0_47 = arith.constant 0 : index
    %c0_48 = arith.constant 0 : index
    %c0_49 = arith.constant 0 : index
    %150 = vector.load %arg7[%c0_47, %c0_48, %c0_49] : memref<1x1x128xf32, #tpu.memory_space<vmem>>, vector<1x1x128xf32>
    %151 = vector.shape_cast %150 : vector<1x1x128xf32> to vector<1x128xf32>
    %152 = vector.broadcast %151 : vector<1x128xf32> to vector<40x128xf32>
    %153 = arith.addf %149, %152 : vector<40x128xf32>
    %154 = arith.addf %3, %153 : vector<40x128xf32>
    %c0_50 = arith.constant 0 : index
    %c0_51 = arith.constant 0 : index
    %c0_52 = arith.constant 0 : index
    %155 = vector.load %arg8[%c0_50, %c0_51, %c0_52] : memref<1x1x128xf32, #tpu.memory_space<vmem>>, vector<1x1x128xf32>
    %156 = vector.shape_cast %155 : vector<1x1x128xf32> to vector<1x128xf32>
    %c0_53 = arith.constant 0 : index
    %c0_54 = arith.constant 0 : index
    %c0_55 = arith.constant 0 : index
    %157 = vector.load %arg9[%c0_53, %c0_54, %c0_55] : memref<1x1x128xf32, #tpu.memory_space<vmem>>, vector<1x1x128xf32>
    %158 = vector.shape_cast %157 : vector<1x1x128xf32> to vector<1x128xf32>
    %cst_56 = arith.constant dense<0.000000e+00> : vector<40xf32>
    %159 = vector.multi_reduction <add>, %154, %cst_56 [1] : vector<40x128xf32> to vector<40xf32>
    %160 = vector.shape_cast %159 : vector<40xf32> to vector<40x1xf32>
    %cst_57 = arith.constant 3.125000e-02 : f32
    %161 = vector.broadcast %cst_57 : f32 to vector<40x1xf32>
    %162 = arith.mulf %160, %161 : vector<40x1xf32>
    %163 = arith.mulf %154, %154 : vector<40x128xf32>
    %cst_58 = arith.constant dense<0.000000e+00> : vector<40xf32>
    %164 = vector.multi_reduction <add>, %163, %cst_58 [1] : vector<40x128xf32> to vector<40xf32>
    %165 = vector.shape_cast %164 : vector<40xf32> to vector<40x1xf32>
    %cst_59 = arith.constant 3.125000e-02 : f32
    %166 = vector.broadcast %cst_59 : f32 to vector<40x1xf32>
    %167 = arith.mulf %165, %166 : vector<40x1xf32>
    %168 = arith.mulf %162, %162 : vector<40x1xf32>
    %169 = arith.subf %167, %168 : vector<40x1xf32>
    %170 = vector.broadcast %162 : vector<40x1xf32> to vector<40x128xf32>
    %171 = arith.subf %154, %170 : vector<40x128xf32>
    %cst_60 = arith.constant 9.99999974E-6 : f32
    %172 = vector.broadcast %cst_60 : f32 to vector<40x1xf32>
    %173 = arith.addf %169, %172 : vector<40x1xf32>
    %174 = math.rsqrt %173 : vector<40x1xf32>
    %175 = vector.broadcast %174 : vector<40x1xf32> to vector<40x128xf32>
    %176 = arith.mulf %171, %175 : vector<40x128xf32>
    %177 = vector.broadcast %156 : vector<1x128xf32> to vector<40x128xf32>
    %178 = arith.mulf %176, %177 : vector<40x128xf32>
    %179 = vector.broadcast %158 : vector<1x128xf32> to vector<40x128xf32>
    %180 = arith.addf %178, %179 : vector<40x128xf32>
    %181 = arith.truncf %180 : vector<40x128xf32> to vector<40x128xbf16>
    %c0_61 = arith.constant 0 : index
    %c0_62 = arith.constant 0 : index
    %c0_63 = arith.constant 0 : index
    %182 = vector.load %arg10[%c0_61, %c0_62, %c0_63] : memref<1x128x128xbf16, #tpu.memory_space<vmem>>, vector<1x128x128xbf16>
    %183 = vector.shape_cast %182 : vector<1x128x128xbf16> to vector<128x128xbf16>
    %cst_64 = arith.constant dense<0.000000e+00> : vector<40x128xf32>
    %184 = tpu.matmul %181, %183, %cst_64 {dimension_numbers = #tpu.dot_dimension_numbers<[1], [0], [0], [1], [0, 0, 1, 1], [], []>} : vector<40x128xbf16>, vector<128x128xbf16>, vector<40x128xf32> -> vector<40x128xf32>
    %c0_65 = arith.constant 0 : index
    %c0_66 = arith.constant 0 : index
    %c0_67 = arith.constant 0 : index
    %185 = vector.load %arg11[%c0_65, %c0_66, %c0_67] : memref<1x1x128xf32, #tpu.memory_space<vmem>>, vector<1x1x128xf32>
    %186 = vector.shape_cast %185 : vector<1x1x128xf32> to vector<1x128xf32>
    %187 = vector.broadcast %186 : vector<1x128xf32> to vector<40x128xf32>
    %188 = arith.addf %184, %187 : vector<40x128xf32>
    %cst_68 = arith.constant 0.000000e+00 : f32
    %189 = vector.broadcast %cst_68 : f32 to vector<40x128xf32>
    %190 = arith.maximumf %188, %189 : vector<40x128xf32>
    %191 = arith.truncf %190 : vector<40x128xf32> to vector<40x128xbf16>
    %c0_69 = arith.constant 0 : index
    %c0_70 = arith.constant 0 : index
    %c0_71 = arith.constant 0 : index
    %192 = vector.load %arg12[%c0_69, %c0_70, %c0_71] : memref<1x128x128xbf16, #tpu.memory_space<vmem>>, vector<1x128x128xbf16>
    %193 = vector.shape_cast %192 : vector<1x128x128xbf16> to vector<128x128xbf16>
    %cst_72 = arith.constant dense<0.000000e+00> : vector<40x128xf32>
    %194 = tpu.matmul %191, %193, %cst_72 {dimension_numbers = #tpu.dot_dimension_numbers<[1], [0], [0], [1], [0, 0, 1, 1], [], []>} : vector<40x128xbf16>, vector<128x128xbf16>, vector<40x128xf32> -> vector<40x128xf32>
    %c0_73 = arith.constant 0 : index
    %c0_74 = arith.constant 0 : index
    %c0_75 = arith.constant 0 : index
    %195 = vector.load %arg13[%c0_73, %c0_74, %c0_75] : memref<1x1x128xf32, #tpu.memory_space<vmem>>, vector<1x1x128xf32>
    %196 = vector.shape_cast %195 : vector<1x1x128xf32> to vector<1x128xf32>
    %197 = vector.broadcast %196 : vector<1x128xf32> to vector<40x128xf32>
    %198 = arith.addf %194, %197 : vector<40x128xf32>
    %199 = arith.addf %180, %198 : vector<40x128xf32>
    %c0_76 = arith.constant 0 : index
    %c0_77 = arith.constant 0 : index
    %c0_78 = arith.constant 0 : index
    %200 = vector.load %arg14[%c0_76, %c0_77, %c0_78] : memref<1x1x128xf32, #tpu.memory_space<vmem>>, vector<1x1x128xf32>
    %201 = vector.shape_cast %200 : vector<1x1x128xf32> to vector<1x128xf32>
    %c0_79 = arith.constant 0 : index
    %c0_80 = arith.constant 0 : index
    %c0_81 = arith.constant 0 : index
    %202 = vector.load %arg15[%c0_79, %c0_80, %c0_81] : memref<1x1x128xf32, #tpu.memory_space<vmem>>, vector<1x1x128xf32>
    %203 = vector.shape_cast %202 : vector<1x1x128xf32> to vector<1x128xf32>
    %cst_82 = arith.constant dense<0.000000e+00> : vector<40xf32>
    %204 = vector.multi_reduction <add>, %199, %cst_82 [1] : vector<40x128xf32> to vector<40xf32>
    %205 = vector.shape_cast %204 : vector<40xf32> to vector<40x1xf32>
    %cst_83 = arith.constant 3.125000e-02 : f32
    %206 = vector.broadcast %cst_83 : f32 to vector<40x1xf32>
    %207 = arith.mulf %205, %206 : vector<40x1xf32>
    %208 = arith.mulf %199, %199 : vector<40x128xf32>
    %cst_84 = arith.constant dense<0.000000e+00> : vector<40xf32>
    %209 = vector.multi_reduction <add>, %208, %cst_84 [1] : vector<40x128xf32> to vector<40xf32>
    %210 = vector.shape_cast %209 : vector<40xf32> to vector<40x1xf32>
    %cst_85 = arith.constant 3.125000e-02 : f32
    %211 = vector.broadcast %cst_85 : f32 to vector<40x1xf32>
    %212 = arith.mulf %210, %211 : vector<40x1xf32>
    %213 = arith.mulf %207, %207 : vector<40x1xf32>
    %214 = arith.subf %212, %213 : vector<40x1xf32>
    %215 = vector.broadcast %207 : vector<40x1xf32> to vector<40x128xf32>
    %216 = arith.subf %199, %215 : vector<40x128xf32>
    %cst_86 = arith.constant 9.99999974E-6 : f32
    %217 = vector.broadcast %cst_86 : f32 to vector<40x1xf32>
    %218 = arith.addf %214, %217 : vector<40x1xf32>
    %219 = math.rsqrt %218 : vector<40x1xf32>
    %220 = vector.broadcast %219 : vector<40x1xf32> to vector<40x128xf32>
    %221 = arith.mulf %216, %220 : vector<40x128xf32>
    %222 = vector.broadcast %201 : vector<1x128xf32> to vector<40x128xf32>
    %223 = arith.mulf %221, %222 : vector<40x128xf32>
    %224 = vector.broadcast %203 : vector<1x128xf32> to vector<40x128xf32>
    %225 = arith.addf %223, %224 : vector<40x128xf32>
    %c0_87 = arith.constant 0 : index
    %c0_88 = arith.constant 0 : index
    %226 = vector.load %arg21[%c0_87, %c0_88] : memref<40x128xf32, #tpu.memory_space<vmem>>, vector<40x128xf32>
    tpu.vector_store %arg21[%c0_87, %c0_88], %225 {strides = array<i32>} : memref<40x128xf32, #tpu.memory_space<vmem>>, vector<40x128xf32>,
    %c1_i32_89 = arith.constant 1 : i32
    %227 = arith.cmpi eq, %arg0, %c1_i32_89 : i32
    %228 = arith.extui %227 : i1 to i32
    %c0_i32_90 = arith.constant 0 : i32
    %229 = arith.cmpi ne, %228, %c0_i32_90 : i32
    scf.if %229 {
      %c0_91 = arith.constant 0 : index
      %c0_92 = arith.constant 0 : index
      %230 = vector.load %arg16[%c0_91, %c0_92] : memref<1x128xf32, #tpu.memory_space<vmem>>, vector<1x128xf32>
      %c0_93 = arith.constant 0 : index
      %c0_94 = arith.constant 0 : index
      %231 = vector.load %arg17[%c0_93, %c0_94] : memref<1x128xf32, #tpu.memory_space<vmem>>, vector<1x128xf32>
      %cst_95 = arith.constant dense<0.000000e+00> : vector<40xf32>
      %232 = vector.multi_reduction <add>, %225, %cst_95 [1] : vector<40x128xf32> to vector<40xf32>
      %233 = vector.shape_cast %232 : vector<40xf32> to vector<40x1xf32>
      %cst_96 = arith.constant 3.125000e-02 : f32
      %234 = vector.broadcast %cst_96 : f32 to vector<40x1xf32>
      %235 = arith.mulf %233, %234 : vector<40x1xf32>
      %236 = arith.mulf %225, %225 : vector<40x128xf32>
      %cst_97 = arith.constant dense<0.000000e+00> : vector<40xf32>
      %237 = vector.multi_reduction <add>, %236, %cst_97 [1] : vector<40x128xf32> to vector<40xf32>
      %238 = vector.shape_cast %237 : vector<40xf32> to vector<40x1xf32>
      %cst_98 = arith.constant 3.125000e-02 : f32
      %239 = vector.broadcast %cst_98 : f32 to vector<40x1xf32>
      %240 = arith.mulf %238, %239 : vector<40x1xf32>
      %241 = arith.mulf %235, %235 : vector<40x1xf32>
      %242 = arith.subf %240, %241 : vector<40x1xf32>
      %243 = vector.broadcast %235 : vector<40x1xf32> to vector<40x128xf32>
      %244 = arith.subf %225, %243 : vector<40x128xf32>
      %cst_99 = arith.constant 9.99999974E-6 : f32
      %245 = vector.broadcast %cst_99 : f32 to vector<40x1xf32>
      %246 = arith.addf %242, %245 : vector<40x1xf32>
      %247 = math.rsqrt %246 : vector<40x1xf32>
      %248 = vector.broadcast %247 : vector<40x1xf32> to vector<40x128xf32>
      %249 = arith.mulf %244, %248 : vector<40x128xf32>
      %250 = vector.broadcast %230 : vector<1x128xf32> to vector<40x128xf32>
      %251 = arith.mulf %249, %250 : vector<40x128xf32>
      %252 = vector.broadcast %231 : vector<1x128xf32> to vector<40x128xf32>
      %253 = arith.addf %251, %252 : vector<40x128xf32>
      %254 = arith.truncf %253 : vector<40x128xf32> to vector<40x128xbf16>
      %cst_100 = arith.constant 0.000000e+00 : f32
      %255 = vector.broadcast %cst_100 : f32 to vector<8x128xf32>
      %c0_101 = arith.constant 0 : index
      %c0_102 = arith.constant 0 : index
      %256 = vector.load %arg19[%c0_101, %c0_102] : memref<1x128xf32, #tpu.memory_space<vmem>>, vector<1x128xf32>
      %257 = vector.broadcast %256 : vector<1x128xf32> to vector<8x128xf32>
      %258 = arith.addf %255, %257 : vector<8x128xf32>
      %259 = vector.extract_strided_slice %254 {offsets = [0, 0], sizes = [8, 128], strides = [1, 1]} : vector<40x128xbf16> to vector<8x128xbf16>
      %c0_103 = arith.constant 0 : index
      %c0_104 = arith.constant 0 : index
      %c0_105 = arith.constant 0 : index
      %260 = vector.load %arg18[%c0_103, %c0_104, %c0_105] : memref<5x128x128xbf16, #tpu.memory_space<vmem>>, vector<1x128x128xbf16>
      %261 = vector.shape_cast %260 : vector<1x128x128xbf16> to vector<128x128xbf16>
      %cst_106 = arith.constant dense<0.000000e+00> : vector<8x128xf32>
      %262 = tpu.matmul %259, %261, %cst_106 {dimension_numbers = #tpu.dot_dimension_numbers<[1], [0], [0], [1], [0, 0, 1, 1], [], []>} : vector<8x128xbf16>, vector<128x128xbf16>, vector<8x128xf32> -> vector<8x128xf32>
      %263 = arith.addf %258, %262 : vector<8x128xf32>
      %264 = vector.extract_strided_slice %254 {offsets = [8, 0], sizes = [8, 128], strides = [1, 1]} : vector<40x128xbf16> to vector<8x128xbf16>
      %c1 = arith.constant 1 : index
      %c0_107 = arith.constant 0 : index
      %c0_108 = arith.constant 0 : index
      %265 = vector.load %arg18[%c1, %c0_107, %c0_108] : memref<5x128x128xbf16, #tpu.memory_space<vmem>>, vector<1x128x128xbf16>
      %266 = vector.shape_cast %265 : vector<1x128x128xbf16> to vector<128x128xbf16>
      %cst_109 = arith.constant dense<0.000000e+00> : vector<8x128xf32>
      %267 = tpu.matmul %264, %266, %cst_109 {dimension_numbers = #tpu.dot_dimension_numbers<[1], [0], [0], [1], [0, 0, 1, 1], [], []>} : vector<8x128xbf16>, vector<128x128xbf16>, vector<8x128xf32> -> vector<8x128xf32>
      %268 = arith.addf %263, %267 : vector<8x128xf32>
      %269 = vector.extract_strided_slice %254 {offsets = [16, 0], sizes = [8, 128], strides = [1, 1]} : vector<40x128xbf16> to vector<8x128xbf16>
      %c2 = arith.constant 2 : index
      %c0_110 = arith.constant 0 : index
      %c0_111 = arith.constant 0 : index
      %270 = vector.load %arg18[%c2, %c0_110, %c0_111] : memref<5x128x128xbf16, #tpu.memory_space<vmem>>, vector<1x128x128xbf16>
      %271 = vector.shape_cast %270 : vector<1x128x128xbf16> to vector<128x128xbf16>
      %cst_112 = arith.constant dense<0.000000e+00> : vector<8x128xf32>
      %272 = tpu.matmul %269, %271, %cst_112 {dimension_numbers = #tpu.dot_dimension_numbers<[1], [0], [0], [1], [0, 0, 1, 1], [], []>} : vector<8x128xbf16>, vector<128x128xbf16>, vector<8x128xf32> -> vector<8x128xf32>
      %273 = arith.addf %268, %272 : vector<8x128xf32>
      %274 = vector.extract_strided_slice %254 {offsets = [24, 0], sizes = [8, 128], strides = [1, 1]} : vector<40x128xbf16> to vector<8x128xbf16>
      %c3 = arith.constant 3 : index
      %c0_113 = arith.constant 0 : index
      %c0_114 = arith.constant 0 : index
      %275 = vector.load %arg18[%c3, %c0_113, %c0_114] : memref<5x128x128xbf16, #tpu.memory_space<vmem>>, vector<1x128x128xbf16>
      %276 = vector.shape_cast %275 : vector<1x128x128xbf16> to vector<128x128xbf16>
      %cst_115 = arith.constant dense<0.000000e+00> : vector<8x128xf32>
      %277 = tpu.matmul %274, %276, %cst_115 {dimension_numbers = #tpu.dot_dimension_numbers<[1], [0], [0], [1], [0, 0, 1, 1], [], []>} : vector<8x128xbf16>, vector<128x128xbf16>, vector<8x128xf32> -> vector<8x128xf32>
      %278 = arith.addf %273, %277 : vector<8x128xf32>
      %279 = vector.extract_strided_slice %254 {offsets = [32, 0], sizes = [8, 128], strides = [1, 1]} : vector<40x128xbf16> to vector<8x128xbf16>
      %c4 = arith.constant 4 : index
      %c0_116 = arith.constant 0 : index
      %c0_117 = arith.constant 0 : index
      %280 = vector.load %arg18[%c4, %c0_116, %c0_117] : memref<5x128x128xbf16, #tpu.memory_space<vmem>>, vector<1x128x128xbf16>
      %281 = vector.shape_cast %280 : vector<1x128x128xbf16> to vector<128x128xbf16>
      %cst_118 = arith.constant dense<0.000000e+00> : vector<8x128xf32>
      %282 = tpu.matmul %279, %281, %cst_118 {dimension_numbers = #tpu.dot_dimension_numbers<[1], [0], [0], [1], [0, 0, 1, 1], [], []>} : vector<8x128xbf16>, vector<128x128xbf16>, vector<8x128xf32> -> vector<8x128xf32>
      %283 = arith.addf %278, %282 : vector<8x128xf32>
      %c0_119 = arith.constant 0 : index
      %c0_120 = arith.constant 0 : index
      %284 = vector.load %arg20[%c0_119, %c0_120] : memref<8x128xf32, #tpu.memory_space<vmem>>, vector<8x128xf32>
      tpu.vector_store %arg20[%c0_119, %c0_120], %283 {strides = array<i32>} : memref<8x128xf32, #tpu.memory_space<vmem>>, vector<8x128xf32>,
    } else {
    }
    return
  }
  func.func @transform_0(%arg0: i32) -> (i32, i32) {
    %c0_i32 = arith.constant 0 : i32
    %c0_i32_0 = arith.constant 0 : i32
    %c0_i32_1 = arith.constant 0 : i32
    return %c0_i32, %c0_i32_0 : i32, i32
  }
  func.func @transform_1(%arg0: i32) -> (i32, i32) {
    %c0_i32 = arith.constant 0 : i32
    %c0_i32_0 = arith.constant 0 : i32
    %c0_i32_1 = arith.constant 0 : i32
    return %c0_i32, %c0_i32_0 : i32, i32
  }
  func.func @transform_2(%arg0: i32) -> (i32, i32) {
    %c0_i32 = arith.constant 0 : i32
    %c0_i32_0 = arith.constant 0 : i32
    %c0_i32_1 = arith.constant 0 : i32
    return %c0_i32, %c0_i32_0 : i32, i32
  }
  func.func @transform_3(%arg0: i32) -> (i32, i32, i32) {
    %c0_i32 = arith.constant 0 : i32
    %c0_i32_0 = arith.constant 0 : i32
    %c0_i32_1 = arith.constant 0 : i32
    return %arg0, %c0_i32, %c0_i32_0 : i32, i32, i32
  }
  func.func @transform_4(%arg0: i32) -> (i32, i32, i32) {
    %c0_i32 = arith.constant 0 : i32
    %c0_i32_0 = arith.constant 0 : i32
    %c0_i32_1 = arith.constant 0 : i32
    return %arg0, %c0_i32, %c0_i32_0 : i32, i32, i32
  }
  func.func @transform_5(%arg0: i32) -> (i32, i32, i32) {
    %c0_i32 = arith.constant 0 : i32
    %c0_i32_0 = arith.constant 0 : i32
    %c0_i32_1 = arith.constant 0 : i32
    return %arg0, %c0_i32, %c0_i32_0 : i32, i32, i32
  }
  func.func @transform_6(%arg0: i32) -> (i32, i32, i32) {
    %c0_i32 = arith.constant 0 : i32
    %c0_i32_0 = arith.constant 0 : i32
    %c0_i32_1 = arith.constant 0 : i32
    return %arg0, %c0_i32, %c0_i32_0 : i32, i32, i32
  }
  func.func @transform_7(%arg0: i32) -> (i32, i32, i32) {
    %c0_i32 = arith.constant 0 : i32
    %c0_i32_0 = arith.constant 0 : i32
    %c0_i32_1 = arith.constant 0 : i32
    return %arg0, %c0_i32, %c0_i32_0 : i32, i32, i32
  }
  func.func @transform_8(%arg0: i32) -> (i32, i32, i32) {
    %c0_i32 = arith.constant 0 : i32
    %c0_i32_0 = arith.constant 0 : i32
    %c0_i32_1 = arith.constant 0 : i32
    return %arg0, %c0_i32, %c0_i32_0 : i32, i32, i32
  }
  func.func @transform_9(%arg0: i32) -> (i32, i32, i32) {
    %c0_i32 = arith.constant 0 : i32
    %c0_i32_0 = arith.constant 0 : i32
    %c0_i32_1 = arith.constant 0 : i32
    return %arg0, %c0_i32, %c0_i32_0 : i32, i32, i32
  }
  func.func @transform_10(%arg0: i32) -> (i32, i32, i32) {
    %c0_i32 = arith.constant 0 : i32
    %c0_i32_0 = arith.constant 0 : i32
    %c0_i32_1 = arith.constant 0 : i32
    return %arg0, %c0_i32, %c0_i32_0 : i32, i32, i32
  }
  func.func @transform_11(%arg0: i32) -> (i32, i32, i32) {
    %c0_i32 = arith.constant 0 : i32
    %c0_i32_0 = arith.constant 0 : i32
    %c0_i32_1 = arith.constant 0 : i32
    return %arg0, %c0_i32, %c0_i32_0 : i32, i32, i32
  }
  func.func @transform_12(%arg0: i32) -> (i32, i32, i32) {
    %c0_i32 = arith.constant 0 : i32
    %c0_i32_0 = arith.constant 0 : i32
    %c0_i32_1 = arith.constant 0 : i32
    return %arg0, %c0_i32, %c0_i32_0 : i32, i32, i32
  }
  func.func @transform_13(%arg0: i32) -> (i32, i32, i32) {
    %c0_i32 = arith.constant 0 : i32
    %c0_i32_0 = arith.constant 0 : i32
    %c0_i32_1 = arith.constant 0 : i32
    return %arg0, %c0_i32, %c0_i32_0 : i32, i32, i32
  }
  func.func @transform_14(%arg0: i32) -> (i32, i32, i32) {
    %c0_i32 = arith.constant 0 : i32
    %c0_i32_0 = arith.constant 0 : i32
    %c0_i32_1 = arith.constant 0 : i32
    return %arg0, %c0_i32, %c0_i32_0 : i32, i32, i32
  }
  func.func @transform_15(%arg0: i32) -> (i32, i32) {
    %c0_i32 = arith.constant 0 : i32
    %c0_i32_0 = arith.constant 0 : i32
    %c0_i32_1 = arith.constant 0 : i32
    return %c0_i32, %c0_i32_0 : i32, i32
  }
  func.func @transform_16(%arg0: i32) -> (i32, i32) {
    %c0_i32 = arith.constant 0 : i32
    %c0_i32_0 = arith.constant 0 : i32
    %c0_i32_1 = arith.constant 0 : i32
    return %c0_i32, %c0_i32_0 : i32, i32
  }
  func.func @transform_17(%arg0: i32) -> (i32, i32, i32) {
    %c0_i32 = arith.constant 0 : i32
    %c0_i32_0 = arith.constant 0 : i32
    %c0_i32_1 = arith.constant 0 : i32
    %c0_i32_2 = arith.constant 0 : i32
    return %c0_i32, %c0_i32_0, %c0_i32_1 : i32, i32, i32
  }
  func.func @transform_18(%arg0: i32) -> (i32, i32) {
    %c0_i32 = arith.constant 0 : i32
    %c0_i32_0 = arith.constant 0 : i32
    %c0_i32_1 = arith.constant 0 : i32
    return %c0_i32, %c0_i32_0 : i32, i32
  }
  func.func @transform_19(%arg0: i32) -> (i32, i32) {
    %c0_i32 = arith.constant 0 : i32
    %c0_i32_0 = arith.constant 0 : i32
    %c0_i32_1 = arith.constant 0 : i32
    return %c0_i32, %c0_i32_0 : i32, i32
  }
}

</mosaic_0001>

<llo_original>
// kernel: transformer_forward.1
$region0: #{transformer_forward.1}
  #allocation0 [shape = 'u32[]', space=smem, size = 0x4, offset = 0x4, fixed_abs, tag = 'smem constant byte address 0x4 - core index']
  #allocation1 [shape = 'u32[144,128]{1,0:T(1,128)}', space=vmem, size = 0x12000, scoped, tag = 'internal scratch']
  #allocation2 [shape = 'f32[40,128]{1,0:T(8,128)}', space=vmem, size = 0x5000, scoped, tag = 'scratch operand']
  %s0 = inlined_call_operand.vmem [shape: bf16[40,128], index: 0, kind: input, shape index: {}]
  %s1 = inlined_call_operand.vmem [shape: bf16[128,128], index: 1, kind: input, shape index: {}]
  %s2 = inlined_call_operand.hbm [shape: f32[1,128], index: 2, kind: input, shape index: {}]
  %s3 = inlined_call_operand.hbm [shape: bf16[2,128,384], index: 3, kind: input, shape index: {}]
  %s4 = inlined_call_operand.vmem [shape: f32[2,1,384], index: 4, kind: input, shape index: {}]
  %s5 = inlined_call_operand.hbm [shape: bf16[2,128,128], index: 5, kind: input, shape index: {}]
  %s6 = inlined_call_operand.vmem [shape: f32[2,1,128], index: 6, kind: input, shape index: {}]
  %s7 = inlined_call_operand.vmem [shape: f32[2,1,128], index: 7, kind: input, shape index: {}]
  %s8 = inlined_call_operand.vmem [shape: f32[2,1,128], index: 8, kind: input, shape index: {}]
  %s9 = inlined_call_operand.hbm [shape: bf16[2,128,128], index: 9, kind: input, shape index: {}]
  %s10 = inlined_call_operand.hbm [shape: f32[2,1,128], index: 10, kind: input, shape index: {}]
  %s11 = inlined_call_operand.hbm [shape: bf16[2,128,128], index: 11, kind: input, shape index: {}]
  %s12 = inlined_call_operand.hbm [shape: f32[2,1,128], index: 12, kind: input, shape index: {}]
  %s13 = inlined_call_operand.vmem [shape: f32[2,1,128], index: 13, kind: input, shape index: {}]
  %s14 = inlined_call_operand.vmem [shape: f32[2,1,128], index: 14, kind: input, shape index: {}]
  %s15 = inlined_call_operand.hbm [shape: f32[1,128], index: 15, kind: input, shape index: {}]
  %s16 = inlined_call_operand.hbm [shape: f32[1,128], index: 16, kind: input, shape index: {}]
  %s17 = inlined_call_operand.hbm [shape: bf16[5,128,128], index: 17, kind: input, shape index: {}]
  %s18 = inlined_call_operand.hbm [shape: f32[1,128], index: 18, kind: input, shape index: {}]
  %s19 = inlined_call_operand.vmem [shape: f32[8,128], index: 19, kind: output, shape index: {}]
  %s20 = sld [smem:[#allocation0]]
  $region161: #{transformer_forward.1} parent=0
    _
  %s22 = ssub.s32 1, %s20
  %s23 = scalar_select 0, %s22, %s20
  $region1: #{transformer_forward.1} parent=0
    #allocation3 [shape = 'u8[512]{0}', space=vmem, size = 0x400, scoped, tag = 'input window, operand 2, single buffered']
    #allocation4 [shape = 's32[2]{0}', space=sflag, size = 0x8, scoped, tag = 'scoped memory for transformer_forward.1']
    #allocation5 [shape = 'u8[196608]{0}', space=vmem, size = 0x30000, scoped, tag = 'input window, operand 3']
    #allocation6 [shape = 's32[2]{0}', space=sflag, size = 0x8, scoped, tag = 'scoped memory for transformer_forward.1']
    #allocation7 [shape = 'u8[65536]{0}', space=vmem, size = 0x10000, scoped, tag = 'input window, operand 5']
    #allocation8 [shape = 'u8[65536]{0}', space=vmem, size = 0x10000, scoped, tag = 'input window, operand 9']
    #allocation9 [shape = 's32[2]{0}', space=sflag, size = 0x8, scoped, tag = 'scoped memory for transformer_forward.1']
    #allocation10 [shape = 'u8[1024]{0}', space=vmem, size = 0x400, scoped, tag = 'input window, operand 10']
    #allocation11 [shape = 'u8[65536]{0}', space=vmem, size = 0x10000, scoped, tag = 'input window, operand 11']
    #allocation12 [shape = 's32[2]{0}', space=sflag, size = 0x8, scoped, tag = 'scoped memory for transformer_forward.1']
    #allocation13 [shape = 'u8[1024]{0}', space=vmem, size = 0x400, scoped, tag = 'input window, operand 12']
    #allocation14 [shape = 'u8[512]{0}', space=vmem, size = 0x400, scoped, tag = 'input window, operand 15, single buffered']
    #allocation15 [shape = 's32[1]{0}', space=sflag, size = 0x4, scoped, tag = 'scoped memory for transformer_forward.1']
    #allocation16 [shape = 'u8[512]{0}', space=vmem, size = 0x400, scoped, tag = 'input window, operand 16, single buffered']
    #allocation17 [shape = 'u8[163840]{0}', space=vmem, size = 0x28000, scoped, tag = 'input window, operand 17, single buffered']
    #allocation18 [shape = 's32[1]{0}', space=sflag, size = 0x4, scoped, tag = 'scoped memory for transformer_forward.1']
    #allocation19 [shape = 'u8[512]{0}', space=vmem, size = 0x400, scoped, tag = 'input window, operand 18, single buffered']
    %24 = vsyncpa [#allocation4], 0
    %25 = vsyncpa [#allocation6], 0
    %s26 = scalar_lea.sflag [#allocation6], 1
    %27 = vsyncpa %s26, 0
    %28 = vsyncpa [#allocation9], 0
    %s29 = scalar_lea.sflag [#allocation9], 1
    %30 = vsyncpa %s29, 0
    %31 = vsyncpa [#allocation12], 0
    %s32 = scalar_lea.sflag [#allocation12], 1
    %33 = vsyncpa %s32, 0
    %34 = vsyncpa [#allocation15], 0
    %35 = vsyncpa [#allocation18], 0
    loop: start=0, step=1, limit=4
    $region2: #{transformer_forward.1} parent=1 // loop_pre_header
      _
    $region3: #{transformer_forward.1} parent=1 // loop_header
      %s37 = sphi 0, %s41
      %p38 = scmp.ge.s32.totalorder %s37, 4
      %s45 = sphi 0, %s45
      %s47 = sphi 0, %s45
      %s48 = sphi 0, %s47
      %s62 = sphi 0, %s48
      %s66 = sphi 0, %s66
      %s68 = sphi 0, %s66
      %s69 = sphi 0, %s68
      %s83 = sphi 0, %s69
      %s87 = sphi 0, %s87
      %s89 = sphi 0, %s87
      %s90 = sphi 0, %s89
      %s104 = sphi 0, %s90
      %s110 = sphi 0, %s112
      %s113 = sphi 0, %s110
      %s114 = sphi 0, %s113
      %s130 = sphi 0, %s114
      %s136 = sphi 0, %s138
      %s139 = sphi 0, %s136
      %s140 = sphi 0, %s139
      %s156 = sphi 0, %s140
      %s162 = sphi 0, %s164
      %s165 = sphi 0, %s162
      %s166 = sphi 0, %s165
      %s182 = sphi 0, %s166
      %s188 = sphi 0, %s190
      %s191 = sphi 0, %s188
      %s192 = sphi 0, %s191
      %s208 = sphi 0, %s192
      %s214 = sphi 0, %s216
      %s217 = sphi 0, %s214
      %s218 = sphi 0, %s217
      %s234 = sphi 0, %s218
      %s240 = sphi 0, %s242
      %s243 = sphi 0, %s240
      %s244 = sphi 0, %s243
      %s260 = sphi 0, %s244
      %s266 = sphi 0, %s268
      %s269 = sphi 0, %s266
      %s270 = sphi 0, %s269
      %s286 = sphi 0, %s270
      %s292 = sphi 0, %s294
      %s295 = sphi 0, %s292
      %s296 = sphi 0, %s295
      %s312 = sphi 0, %s296
      %s318 = sphi 0, %s320
      %s321 = sphi 0, %s318
      %s322 = sphi 0, %s321
      %s338 = sphi 0, %s322
      %s344 = sphi 0, %s346
      %s347 = sphi 0, %s344
      %s348 = sphi 0, %s347
      %s364 = sphi 0, %s348
      %s370 = sphi 0, %s372
      %s373 = sphi 0, %s370
      %s374 = sphi 0, %s373
      %s390 = sphi 0, %s374
      %s396 = sphi 0, %s398
      %s399 = sphi 0, %s396
      %s400 = sphi 0, %s399
      %s416 = sphi 0, %s400
      %s420 = sphi 0, %s420
      %s422 = sphi 0, %s420
      %s423 = sphi 0, %s422
      %s437 = sphi 0, %s423
      %s441 = sphi 0, %s441
      %s443 = sphi 0, %s441
      %s444 = sphi 0, %s443
      %s458 = sphi 0, %s444
      %s462 = sphi 0, %s462
      %s464 = sphi 0, %s462
      %s465 = sphi 0, %s464
      %s479 = sphi 0, %s465
      %s483 = sphi 0, %s483
      %s485 = sphi 0, %s483
      %s486 = sphi 0, %s485
      %s500 = sphi 0, %s486
      %s504 = sphi 0, %s504
      %s506 = sphi 0, %s504
      %s507 = sphi 0, %s506
      %s521 = sphi 0, %s507
    $region4: #{transformer_forward.1} parent=1 // loop_header_branch
      %40 = sbr.rel (%p38) target = $region8
    $region5: #{transformer_forward.1} parent=1 // loop_body
      %s42 = ssub.s32 %s37, 1
      %s43 = ssub.s32 %s37, 2
      %s44 = sadd.s32 %s37, 1
      %s46 = sadd.s32 %s45, 1
      %p49 = scmp.eq.s32.totalorder %s37, 1
      %p50 = scmp.ne.s32.totalorder %s45, %s47
      %p51 = scmp.eq.s32.totalorder %s37, 0
      %p52 = por %p50, %p51
      %p53 = scmp.ne.s32.totalorder %s45, %s47
      %p54 = scmp.eq.s32.totalorder %s42, 1
      %p55 = por %p53, %p54
      %p56 = scmp.ne.s32.totalorder %s47, %s48
      %p57 = scmp.eq.s32.totalorder %s42, 0
      %p58 = por %p56, %p57
      %p59 = scmp.ne.s32.totalorder %s47, %s48
      %p60 = scmp.eq.s32.totalorder %s43, 1
      %p61 = por %p59, %p60
      %p63 = scmp.ne.s32.totalorder %s48, %s62
      %p64 = scmp.eq.s32.totalorder %s43, 0
      %p65 = por %p63, %p64
      %s67 = sadd.s32 %s66, 1
      %p70 = scmp.eq.s32.totalorder %s37, 1
      %p71 = scmp.ne.s32.totalorder %s66, %s68
      %p72 = scmp.eq.s32.totalorder %s37, 0
      %p73 = por %p71, %p72
      %p74 = scmp.ne.s32.totalorder %s66, %s68
      %p75 = scmp.eq.s32.totalorder %s42, 1
      %p76 = por %p74, %p75
      %p77 = scmp.ne.s32.totalorder %s68, %s69
      %p78 = scmp.eq.s32.totalorder %s42, 0
      %p79 = por %p77, %p78
      %p80 = scmp.ne.s32.totalorder %s68, %s69
      %p81 = scmp.eq.s32.totalorder %s43, 1
      %p82 = por %p80, %p81
      %p84 = scmp.ne.s32.totalorder %s69, %s83
      %p85 = scmp.eq.s32.totalorder %s43, 0
      %p86 = por %p84, %p85
      %s88 = sadd.s32 %s87, 1
      %p91 = scmp.eq.s32.totalorder %s37, 1
      %p92 = scmp.ne.s32.totalorder %s87, %s89
      %p93 = scmp.eq.s32.totalorder %s37, 0
      %p94 = por %p92, %p93
      %p95 = scmp.ne.s32.totalorder %s87, %s89
      %p96 = scmp.eq.s32.totalorder %s42, 1
      %p97 = por %p95, %p96
      %p98 = scmp.ne.s32.totalorder %s89, %s90
      %p99 = scmp.eq.s32.totalorder %s42, 0
      %p100 = por %p98, %p99
      %p101 = scmp.ne.s32.totalorder %s89, %s90
      %p102 = scmp.eq.s32.totalorder %s43, 1
      %p103 = por %p101, %p102
      %p105 = scmp.ne.s32.totalorder %s90, %s104
      %p106 = scmp.eq.s32.totalorder %s43, 0
      %p107 = por %p105, %p106
      %s108 = ssub.s32 %s37, %s44
      %p109 = scmp.eq.s32.totalorder %s108, 0
      %s111 = sadd.s32 %s110, 1
      %s112 = scalar_select %p109, %s110, %s111
      %p115 = pneg %p109
      %p116 = scmp.eq.s32.totalorder %s37, 1
      %p117 = por %p115, %p116
      %p118 = scmp.ne.s32.totalorder %s110, %s113
      %p119 = scmp.eq.s32.totalorder %s37, 0
      %p120 = por %p118, %p119
      %p121 = scmp.ne.s32.totalorder %s110, %s113
      %p122 = scmp.eq.s32.totalorder %s42, 1
      %p123 = por %p121, %p122
      %p124 = scmp.ne.s32.totalorder %s113, %s114
      %p125 = scmp.eq.s32.totalorder %s42, 0
      %p126 = por %p124, %p125
      %p127 = scmp.ne.s32.totalorder %s113, %s114
      %p128 = scmp.eq.s32.totalorder %s43, 1
      %p129 = por %p127, %p128
      %p131 = scmp.ne.s32.totalorder %s114, %s130
      %p132 = scmp.eq.s32.totalorder %s43, 0
      %p133 = por %p131, %p132
      %s134 = ssub.s32 %s37, %s44
      %p135 = scmp.eq.s32.totalorder %s134, 0
      %s137 = sadd.s32 %s136, 1
      %s138 = scalar_select %p135, %s136, %s137
      %p141 = pneg %p135
      %p142 = scmp.eq.s32.totalorder %s37, 1
      %p143 = por %p141, %p142
      %p144 = scmp.ne.s32.totalorder %s136, %s139
      %p145 = scmp.eq.s32.totalorder %s37, 0
      %p146 = por %p144, %p145
      %p147 = scmp.ne.s32.totalorder %s136, %s139
      %p148 = scmp.eq.s32.totalorder %s42, 1
      %p149 = por %p147, %p148
      %p150 = scmp.ne.s32.totalorder %s139, %s140
      %p151 = scmp.eq.s32.totalorder %s42, 0
      %p152 = por %p150, %p151
      %p153 = scmp.ne.s32.totalorder %s139, %s140
      %p154 = scmp.eq.s32.totalorder %s43, 1
      %p155 = por %p153, %p154
      %p157 = scmp.ne.s32.totalorder %s140, %s156
      %p158 = scmp.eq.s32.totalorder %s43, 0
      %p159 = por %p157, %p158
      %s160 = ssub.s32 %s37, %s44
      %p161 = scmp.eq.s32.totalorder %s160, 0
      %s163 = sadd.s32 %s162, 1
      %s164 = scalar_select %p161, %s162, %s163
      %p167 = pneg %p161
      %p168 = scmp.eq.s32.totalorder %s37, 1
      %p169 = por %p167, %p168
      %p170 = scmp.ne.s32.totalorder %s162, %s165
      %p171 = scmp.eq.s32.totalorder %s37, 0
      %p172 = por %p170, %p171
      %p173 = scmp.ne.s32.totalorder %s162, %s165
      %p174 = scmp.eq.s32.totalorder %s42, 1
      %p175 = por %p173, %p174
      %p176 = scmp.ne.s32.totalorder %s165, %s166
      %p177 = scmp.eq.s32.totalorder %s42, 0
      %p178 = por %p176, %p177
      %p179 = scmp.ne.s32.totalorder %s165, %s166
      %p180 = scmp.eq.s32.totalorder %s43, 1
      %p181 = por %p179, %p180
      %p183 = scmp.ne.s32.totalorder %s166, %s182
      %p184 = scmp.eq.s32.totalorder %s43, 0
      %p185 = por %p183, %p184
      %s186 = ssub.s32 %s37, %s44
      %p187 = scmp.eq.s32.totalorder %s186, 0
      %s189 = sadd.s32 %s188, 1
      %s190 = scalar_select %p187, %s188, %s189
      %p193 = pneg %p187
      %p194 = scmp.eq.s32.totalorder %s37, 1
      %p195 = por %p193, %p194
      %p196 = scmp.ne.s32.totalorder %s188, %s191
      %p197 = scmp.eq.s32.totalorder %s37, 0
      %p198 = por %p196, %p197
      %p199 = scmp.ne.s32.totalorder %s188, %s191
      %p200 = scmp.eq.s32.totalorder %s42, 1
      %p201 = por %p199, %p200
      %p202 = scmp.ne.s32.totalorder %s191, %s192
      %p203 = scmp.eq.s32.totalorder %s42, 0
      %p204 = por %p202, %p203
      %p205 = scmp.ne.s32.totalorder %s191, %s192
      %p206 = scmp.eq.s32.totalorder %s43, 1
      %p207 = por %p205, %p206
      %p209 = scmp.ne.s32.totalorder %s192, %s208
      %p210 = scmp.eq.s32.totalorder %s43, 0
      %p211 = por %p209, %p210
      %s212 = ssub.s32 %s37, %s44
      %p213 = scmp.eq.s32.totalorder %s212, 0
      %s215 = sadd.s32 %s214, 1
      %s216 = scalar_select %p213, %s214, %s215
      %p219 = pneg %p213
      %p220 = scmp.eq.s32.totalorder %s37, 1
      %p221 = por %p219, %p220
      %p222 = scmp.ne.s32.totalorder %s214, %s217
      %p223 = scmp.eq.s32.totalorder %s37, 0
      %p224 = por %p222, %p223
      %p225 = scmp.ne.s32.totalorder %s214, %s217
      %p226 = scmp.eq.s32.totalorder %s42, 1
      %p227 = por %p225, %p226
      %p228 = scmp.ne.s32.totalorder %s217, %s218
      %p229 = scmp.eq.s32.totalorder %s42, 0
      %p230 = por %p228, %p229
      %p231 = scmp.ne.s32.totalorder %s217, %s218
      %p232 = scmp.eq.s32.totalorder %s43, 1
      %p233 = por %p231, %p232
      %p235 = scmp.ne.s32.totalorder %s218, %s234
      %p236 = scmp.eq.s32.totalorder %s43, 0
      %p237 = por %p235, %p236
      %s238 = ssub.s32 %s37, %s44
      %p239 = scmp.eq.s32.totalorder %s238, 0
      %s241 = sadd.s32 %s240, 1
      %s242 = scalar_select %p239, %s240, %s241
      %p245 = pneg %p239
      %p246 = scmp.eq.s32.totalorder %s37, 1
      %p247 = por %p245, %p246
      %p248 = scmp.ne.s32.totalorder %s240, %s243
      %p249 = scmp.eq.s32.totalorder %s37, 0
      %p250 = por %p248, %p249
      %p251 = scmp.ne.s32.totalorder %s240, %s243
      %p252 = scmp.eq.s32.totalorder %s42, 1
      %p253 = por %p251, %p252
      %p254 = scmp.ne.s32.totalorder %s243, %s244
      %p255 = scmp.eq.s32.totalorder %s42, 0
      %p256 = por %p254, %p255
      %p257 = scmp.ne.s32.totalorder %s243, %s244
      %p258 = scmp.eq.s32.totalorder %s43, 1
      %p259 = por %p257, %p258
      %p261 = scmp.ne.s32.totalorder %s244, %s260
      %p262 = scmp.eq.s32.totalorder %s43, 0
      %p263 = por %p261, %p262
      %s264 = ssub.s32 %s37, %s44
      %p265 = scmp.eq.s32.totalorder %s264, 0
      %s267 = sadd.s32 %s266, 1
      %s268 = scalar_select %p265, %s266, %s267
      %p271 = pneg %p265
      %p272 = scmp.eq.s32.totalorder %s37, 1
      %p273 = por %p271, %p272
      %p274 = scmp.ne.s32.totalorder %s266, %s269
      %p275 = scmp.eq.s32.totalorder %s37, 0
      %p276 = por %p274, %p275
      %p277 = scmp.ne.s32.totalorder %s266, %s269
      %p278 = scmp.eq.s32.totalorder %s42, 1
      %p279 = por %p277, %p278
      %p280 = scmp.ne.s32.totalorder %s269, %s270
      %p281 = scmp.eq.s32.totalorder %s42, 0
      %p282 = por %p280, %p281
      %p283 = scmp.ne.s32.totalorder %s269, %s270
      %p284 = scmp.eq.s32.totalorder %s43, 1
      %p285 = por %p283, %p284
      %p287 = scmp.ne.s32.totalorder %s270, %s286
      %p288 = scmp.eq.s32.totalorder %s43, 0
      %p289 = por %p287, %p288
      %s290 = ssub.s32 %s37, %s44
      %p291 = scmp.eq.s32.totalorder %s290, 0
      %s293 = sadd.s32 %s292, 1
      %s294 = scalar_select %p291, %s292, %s293
      %p297 = pneg %p291
      %p298 = scmp.eq.s32.totalorder %s37, 1
      %p299 = por %p297, %p298
      %p300 = scmp.ne.s32.totalorder %s292, %s295
      %p301 = scmp.eq.s32.totalorder %s37, 0
      %p302 = por %p300, %p301
      %p303 = scmp.ne.s32.totalorder %s292, %s295
      %p304 = scmp.eq.s32.totalorder %s42, 1
      %p305 = por %p303, %p304
      %p306 = scmp.ne.s32.totalorder %s295, %s296
      %p307 = scmp.eq.s32.totalorder %s42, 0
      %p308 = por %p306, %p307
      %p309 = scmp.ne.s32.totalorder %s295, %s296
      %p310 = scmp.eq.s32.totalorder %s43, 1
      %p311 = por %p309, %p310
      %p313 = scmp.ne.s32.totalorder %s296, %s312
      %p314 = scmp.eq.s32.totalorder %s43, 0
      %p315 = por %p313, %p314
      %s316 = ssub.s32 %s37, %s44
      %p317 = scmp.eq.s32.totalorder %s316, 0
      %s319 = sadd.s32 %s318, 1
      %s320 = scalar_select %p317, %s318, %s319
      %p323 = pneg %p317
      %p324 = scmp.eq.s32.totalorder %s37, 1
      %p325 = por %p323, %p324
      %p326 = scmp.ne.s32.totalorder %s318, %s321
      %p327 = scmp.eq.s32.totalorder %s37, 0
      %p328 = por %p326, %p327
      %p329 = scmp.ne.s32.totalorder %s318, %s321
      %p330 = scmp.eq.s32.totalorder %s42, 1
      %p331 = por %p329, %p330
      %p332 = scmp.ne.s32.totalorder %s321, %s322
      %p333 = scmp.eq.s32.totalorder %s42, 0
      %p334 = por %p332, %p333
      %p335 = scmp.ne.s32.totalorder %s321, %s322
      %p336 = scmp.eq.s32.totalorder %s43, 1
      %p337 = por %p335, %p336
      %p339 = scmp.ne.s32.totalorder %s322, %s338
      %p340 = scmp.eq.s32.totalorder %s43, 0
      %p341 = por %p339, %p340
      %s342 = ssub.s32 %s37, %s44
      %p343 = scmp.eq.s32.totalorder %s342, 0
      %s345 = sadd.s32 %s344, 1
      %s346 = scalar_select %p343, %s344, %s345
      %p349 = pneg %p343
      %p350 = scmp.eq.s32.totalorder %s37, 1
      %p351 = por %p349, %p350
      %p352 = scmp.ne.s32.totalorder %s344, %s347
      %p353 = scmp.eq.s32.totalorder %s37, 0
      %p354 = por %p352, %p353
      %p355 = scmp.ne.s32.totalorder %s344, %s347
      %p356 = scmp.eq.s32.totalorder %s42, 1
      %p357 = por %p355, %p356
      %p358 = scmp.ne.s32.totalorder %s347, %s348
      %p359 = scmp.eq.s32.totalorder %s42, 0
      %p360 = por %p358, %p359
      %p361 = scmp.ne.s32.totalorder %s347, %s348
      %p362 = scmp.eq.s32.totalorder %s43, 1
      %p363 = por %p361, %p362
      %p365 = scmp.ne.s32.totalorder %s348, %s364
      %p366 = scmp.eq.s32.totalorder %s43, 0
      %p367 = por %p365, %p366
      %s368 = ssub.s32 %s37, %s44
      %p369 = scmp.eq.s32.totalorder %s368, 0
      %s371 = sadd.s32 %s370, 1
      %s372 = scalar_select %p369, %s370, %s371
      %p375 = pneg %p369
      %p376 = scmp.eq.s32.totalorder %s37, 1
      %p377 = por %p375, %p376
      %p378 = scmp.ne.s32.totalorder %s370, %s373
      %p379 = scmp.eq.s32.totalorder %s37, 0
      %p380 = por %p378, %p379
      %p381 = scmp.ne.s32.totalorder %s370, %s373
      %p382 = scmp.eq.s32.totalorder %s42, 1
      %p383 = por %p381, %p382
      %p384 = scmp.ne.s32.totalorder %s373, %s374
      %p385 = scmp.eq.s32.totalorder %s42, 0
      %p386 = por %p384, %p385
      %p387 = scmp.ne.s32.totalorder %s373, %s374
      %p388 = scmp.eq.s32.totalorder %s43, 1
      %p389 = por %p387, %p388
      %p391 = scmp.ne.s32.totalorder %s374, %s390
      %p392 = scmp.eq.s32.totalorder %s43, 0
      %p393 = por %p391, %p392
      %s394 = ssub.s32 %s37, %s44
      %p395 = scmp.eq.s32.totalorder %s394, 0
      %s397 = sadd.s32 %s396, 1
      %s398 = scalar_select %p395, %s396, %s397
      %p401 = pneg %p395
      %p402 = scmp.eq.s32.totalorder %s37, 1
      %p403 = por %p401, %p402
      %p404 = scmp.ne.s32.totalorder %s396, %s399
      %p405 = scmp.eq.s32.totalorder %s37, 0
      %p406 = por %p404, %p405
      %p407 = scmp.ne.s32.totalorder %s396, %s399
      %p408 = scmp.eq.s32.totalorder %s42, 1
      %p409 = por %p407, %p408
      %p410 = scmp.ne.s32.totalorder %s399, %s400
      %p411 = scmp.eq.s32.totalorder %s42, 0
      %p412 = por %p410, %p411
      %p413 = scmp.ne.s32.totalorder %s399, %s400
      %p414 = scmp.eq.s32.totalorder %s43, 1
      %p415 = por %p413, %p414
      %p417 = scmp.ne.s32.totalorder %s400, %s416
      %p418 = scmp.eq.s32.totalorder %s43, 0
      %p419 = por %p417, %p418
      %s421 = sadd.s32 %s420, 1
      %p424 = scmp.eq.s32.totalorder %s37, 1
      %p425 = scmp.ne.s32.totalorder %s420, %s422
      %p426 = scmp.eq.s32.totalorder %s37, 0
      %p427 = por %p425, %p426
      %p428 = scmp.ne.s32.totalorder %s420, %s422
      %p429 = scmp.eq.s32.totalorder %s42, 1
      %p430 = por %p428, %p429
      %p431 = scmp.ne.s32.totalorder %s422, %s423
      %p432 = scmp.eq.s32.totalorder %s42, 0
      %p433 = por %p431, %p432
      %p434 = scmp.ne.s32.totalorder %s422, %s423
      %p435 = scmp.eq.s32.totalorder %s43, 1
      %p436 = por %p434, %p435
      %p438 = scmp.ne.s32.totalorder %s423, %s437
      %p439 = scmp.eq.s32.totalorder %s43, 0
      %p440 = por %p438, %p439
      %s442 = sadd.s32 %s441, 1
      %p445 = scmp.eq.s32.totalorder %s37, 1
      %p446 = scmp.ne.s32.totalorder %s441, %s443
      %p447 = scmp.eq.s32.totalorder %s37, 0
      %p448 = por %p446, %p447
      %p449 = scmp.ne.s32.totalorder %s441, %s443
      %p450 = scmp.eq.s32.totalorder %s42, 1
      %p451 = por %p449, %p450
      %p452 = scmp.ne.s32.totalorder %s443, %s444
      %p453 = scmp.eq.s32.totalorder %s42, 0
      %p454 = por %p452, %p453
      %p455 = scmp.ne.s32.totalorder %s443, %s444
      %p456 = scmp.eq.s32.totalorder %s43, 1
      %p457 = por %p455, %p456
      %p459 = scmp.ne.s32.totalorder %s444, %s458
      %p460 = scmp.eq.s32.totalorder %s43, 0
      %p461 = por %p459, %p460
      %s463 = sadd.s32 %s462, 1
      %p466 = scmp.eq.s32.totalorder %s37, 1
      %p467 = scmp.ne.s32.totalorder %s462, %s464
      %p468 = scmp.eq.s32.totalorder %s37, 0
      %p469 = por %p467, %p468
      %p470 = scmp.ne.s32.totalorder %s462, %s464
      %p471 = scmp.eq.s32.totalorder %s42, 1
      %p472 = por %p470, %p471
      %p473 = scmp.ne.s32.totalorder %s464, %s465
      %p474 = scmp.eq.s32.totalorder %s42, 0
      %p475 = por %p473, %p474
      %p476 = scmp.ne.s32.totalorder %s464, %s465
      %p477 = scmp.eq.s32.totalorder %s43, 1
      %p478 = por %p476, %p477
      %p480 = scmp.ne.s32.totalorder %s465, %s479
      %p481 = scmp.eq.s32.totalorder %s43, 0
      %p482 = por %p480, %p481
      %s484 = sadd.s32 %s483, 1
      %p487 = scmp.eq.s32.totalorder %s37, 1
      %p488 = scmp.ne.s32.totalorder %s483, %s485
      %p489 = scmp.eq.s32.totalorder %s37, 0
      %p490 = por %p488, %p489
      %p491 = scmp.ne.s32.totalorder %s483, %s485
      %p492 = scmp.eq.s32.totalorder %s42, 1
      %p493 = por %p491, %p492
      %p494 = scmp.ne.s32.totalorder %s485, %s486
      %p495 = scmp.eq.s32.totalorder %s42, 0
      %p496 = por %p494, %p495
      %p497 = scmp.ne.s32.totalorder %s485, %s486
      %p498 = scmp.eq.s32.totalorder %s43, 1
      %p499 = por %p497, %p498
      %p501 = scmp.ne.s32.totalorder %s486, %s500
      %p502 = scmp.eq.s32.totalorder %s43, 0
      %p503 = por %p501, %p502
      %s505 = sadd.s32 %s504, 1
      %p508 = scmp.eq.s32.totalorder %s37, 1
      %p509 = scmp.ne.s32.totalorder %s504, %s506
      %p510 = scmp.eq.s32.totalorder %s37, 0
      %p511 = por %p509, %p510
      %p512 = scmp.ne.s32.totalorder %s504, %s506
      %p513 = scmp.eq.s32.totalorder %s42, 1
      %p514 = por %p512, %p513
      %p515 = scmp.ne.s32.totalorder %s506, %s507
      %p516 = scmp.eq.s32.totalorder %s42, 0
      %p517 = por %p515, %p516
      %p518 = scmp.ne.s32.totalorder %s506, %s507
      %p519 = scmp.eq.s32.totalorder %s43, 1
      %p520 = por %p518, %p519
      %p522 = scmp.ne.s32.totalorder %s507, %s521
      %p523 = scmp.eq.s32.totalorder %s43, 0
      %p524 = por %p522, %p523
      %p525 = scmp.le.s32.totalorder 1, %s37
      %p526 = scmp.lt.s32.totalorder %s37, 3
      %p527 = pnand %p525, %p526
      %p528 = pneg %p527
      // Predicated region
      $region9: #{transformer_forward.1} parent=5 // pred_check
        _
      $region10: #{transformer_forward.1} parent=5 // pred_check_branch
        %530 = sbr.rel (%p527) target = $region12
      $region11: #{transformer_forward.1} parent=5 // pred_region
        %s531 = ssub.s32 %s37, 1
        // Predicated region
        $region13: #{transformer_forward.1} parent=11 // pred_check
          %p532 = pneg %p58
        $region14: #{transformer_forward.1} parent=11 // pred_check_branch
          %534 = sbr.rel (%p532) target = $region16
        $region15: #{transformer_forward.1} parent=11 // pred_region
          _
        $region16: #{transformer_forward.1} parent=11 // pred_fallthru
          _
        // Predicated region
        $region17: #{transformer_forward.1} parent=11 // pred_check
          %p535 = pneg %p79
        $region18: #{transformer_forward.1} parent=11 // pred_check_branch
          %537 = sbr.rel (%p535) target = $region20
        $region19: #{transformer_forward.1} parent=11 // pred_region
          _
        $region20: #{transformer_forward.1} parent=11 // pred_fallthru
          _
        // Predicated region
        $region21: #{transformer_forward.1} parent=11 // pred_check
          %p538 = pneg %p100
        $region22: #{transformer_forward.1} parent=11 // pred_check_branch
          %540 = sbr.rel (%p538) target = $region24
        $region23: #{transformer_forward.1} parent=11 // pred_region
          %s542 = ssub.s32 16, 16
          %543 = vsyncadd [#allocation4], %s542
          %s545 = sshll.u32 [#allocation3], 4
          %s546 = int_to_ptr.vmem [resolvable:$true] %s545
          %548 = dma.hbm_to_vmem [thread:$0]  %s2, 16, %s546, [#allocation4]
        $region24: #{transformer_forward.1} parent=11 // pred_fallthru
          _
        // Predicated region
        $region25: #{transformer_forward.1} parent=11 // pred_check
          %p549 = pneg %p433
        $region26: #{transformer_forward.1} parent=11 // pred_check_branch
          %551 = sbr.rel (%p549) target = $region28
        $region27: #{transformer_forward.1} parent=11 // pred_region
          %s553 = ssub.s32 16, 16
          %554 = vsyncadd [#allocation15], %s553
          %s556 = sshll.u32 [#allocation14], 4
          %s557 = int_to_ptr.vmem [resolvable:$true] %s556
          %559 = dma.hbm_to_vmem [thread:$0]  %s15, 16, %s557, [#allocation15]
        $region28: #{transformer_forward.1} parent=11 // pred_fallthru
          _
        // Predicated region
        $region29: #{transformer_forward.1} parent=11 // pred_check
          %p560 = pneg %p454
        $region30: #{transformer_forward.1} parent=11 // pred_check_branch
          %562 = sbr.rel (%p560) target = $region32
        $region31: #{transformer_forward.1} parent=11 // pred_region
          %s564 = ssub.s32 16, 16
          %565 = vsyncadd [#allocation15], %s564
          %s567 = sshll.u32 [#allocation16], 4
          %s568 = int_to_ptr.vmem [resolvable:$true] %s567
          %570 = dma.hbm_to_vmem [thread:$0]  %s16, 16, %s568, [#allocation15]
        $region32: #{transformer_forward.1} parent=11 // pred_fallthru
          _
        // Predicated region
        $region33: #{transformer_forward.1} parent=11 // pred_check
          %p571 = pneg %p475
        $region34: #{transformer_forward.1} parent=11 // pred_check_branch
          %573 = sbr.rel (%p571) target = $region36
        $region35: #{transformer_forward.1} parent=11 // pred_region
          %s575 = ssub.s32 5120, 5120
          %576 = vsyncadd [#allocation18], %s575
          %s577 = sshll.u32 [#allocation17], 4
          %s578 = int_to_ptr.vmem [resolvable:$true] %s577
          %583 = dma.hbm_to_vmem [thread:$0]  %s17, 5120, %s578, [#allocation18], 64, 64, 4
        $region36: #{transformer_forward.1} parent=11 // pred_fallthru
          _
        // Predicated region
        $region37: #{transformer_forward.1} parent=11 // pred_check
          %p584 = pneg %p496
        $region38: #{transformer_forward.1} parent=11 // pred_check_branch
          %586 = sbr.rel (%p584) target = $region40
        $region39: #{transformer_forward.1} parent=11 // pred_region
          %s588 = ssub.s32 16, 16
          %589 = vsyncadd [#allocation18], %s588
          %s591 = sshll.u32 [#allocation19], 4
          %s592 = int_to_ptr.vmem [resolvable:$true] %s591
          %594 = dma.hbm_to_vmem [thread:$0]  %s18, 16, %s592, [#allocation18]
        $region40: #{transformer_forward.1} parent=11 // pred_fallthru
          _
      $region12: #{transformer_forward.1} parent=5 // pred_fallthru
        _
      %p595 = scmp.lt.s32.totalorder %s37, 2
      // Predicated region
      $region41: #{transformer_forward.1} parent=5 // pred_check
        %p596 = pneg %p595
      $region42: #{transformer_forward.1} parent=5 // pred_check_branch
        %598 = sbr.rel (%p596) target = $region44
      $region43: #{transformer_forward.1} parent=5 // pred_region
        // Predicated region
        $region45: #{transformer_forward.1} parent=43 // pred_check
          %p599 = pneg %p120
        $region46: #{transformer_forward.1} parent=43 // pred_check_branch
          %601 = sbr.rel (%p599) target = $region48
        $region47: #{transformer_forward.1} parent=43 // pred_region
          %s602 = sand.u32 %s37, 1
          %s603 = scalar_lea.sflag [#allocation6], %s602
          %s604 = sand.u32 %s110, 1
          %s605 = smul.addr %s604, 192
          %s606 = scalar_lea.vmem [#allocation5], %s605
          %s608 = ssub.s32 3072, 3072
          %609 = vsyncadd %s603, %s608
          %s610 = smul.addr %s37, 48
          %s611 = smul.addr %s610, 64
          %s612 = scalar_lea.hbm %s3, %s611
          %s613 = sshll.u32 %s606, 4
          %s614 = int_to_ptr.vmem [resolvable:$true] %s613
          %619 = dma.hbm_to_vmem [thread:$0]  %s612, 3072, %s614, %s603, 192, 192, 12
        $region48: #{transformer_forward.1} parent=43 // pred_fallthru
          _
        // Predicated region
        $region49: #{transformer_forward.1} parent=43 // pred_check
          %p620 = pneg %p146
        $region50: #{transformer_forward.1} parent=43 // pred_check_branch
          %622 = sbr.rel (%p620) target = $region52
        $region51: #{transformer_forward.1} parent=43 // pred_region
          %p623 = scmp.lt.s32.totalorder %s37, 1
          %s624 = scalar_select %p623, %s37, 1
          %s625 = smul.addr %s624, 3
          %s626 = scalar_lea.vmem %s4, %s625
        $region52: #{transformer_forward.1} parent=43 // pred_fallthru
          _
        // Predicated region
        $region53: #{transformer_forward.1} parent=43 // pred_check
          %p627 = pneg %p172
        $region54: #{transformer_forward.1} parent=43 // pred_check_branch
          %629 = sbr.rel (%p627) target = $region56
        $region55: #{transformer_forward.1} parent=43 // pred_region
          %s630 = sand.u32 %s37, 1
          %s631 = scalar_lea.sflag [#allocation6], %s630
          %s632 = sand.u32 %s162, 1
          %s633 = smul.addr %s632, 64
          %s634 = scalar_lea.vmem [#allocation7], %s633
          %s636 = ssub.s32 1024, 1024
          %637 = vsyncadd %s631, %s636
          %s638 = smul.addr %s37, 16
          %s639 = smul.addr %s638, 64
          %s640 = scalar_lea.hbm %s5, %s639
          %s641 = sshll.u32 %s634, 4
          %s642 = int_to_ptr.vmem [resolvable:$true] %s641
          %647 = dma.hbm_to_vmem [thread:$0]  %s640, 1024, %s642, %s631, 64, 64, 4
        $region56: #{transformer_forward.1} parent=43 // pred_fallthru
          _
        // Predicated region
        $region57: #{transformer_forward.1} parent=43 // pred_check
          %p648 = pneg %p198
        $region58: #{transformer_forward.1} parent=43 // pred_check_branch
          %650 = sbr.rel (%p648) target = $region60
        $region59: #{transformer_forward.1} parent=43 // pred_region
          %p651 = scmp.lt.s32.totalorder %s37, 1
          %s652 = scalar_select %p651, %s37, 1
          %s653 = scalar_lea.vmem %s6, %s652
        $region60: #{transformer_forward.1} parent=43 // pred_fallthru
          _
        // Predicated region
        $region61: #{transformer_forward.1} parent=43 // pred_check
          %p654 = pneg %p224
        $region62: #{transformer_forward.1} parent=43 // pred_check_branch
          %656 = sbr.rel (%p654) target = $region64
        $region63: #{transformer_forward.1} parent=43 // pred_region
          %p657 = scmp.lt.s32.totalorder %s37, 1
          %s658 = scalar_select %p657, %s37, 1
          %s659 = scalar_lea.vmem %s7, %s658
        $region64: #{transformer_forward.1} parent=43 // pred_fallthru
          _
        // Predicated region
        $region65: #{transformer_forward.1} parent=43 // pred_check
          %p660 = pneg %p250
        $region66: #{transformer_forward.1} parent=43 // pred_check_branch
          %662 = sbr.rel (%p660) target = $region68
        $region67: #{transformer_forward.1} parent=43 // pred_region
          %p663 = scmp.lt.s32.totalorder %s37, 1
          %s664 = scalar_select %p663, %s37, 1
          %s665 = scalar_lea.vmem %s8, %s664
        $region68: #{transformer_forward.1} parent=43 // pred_fallthru
          _
        // Predicated region
        $region69: #{transformer_forward.1} parent=43 // pred_check
          %p666 = pneg %p276
        $region70: #{transformer_forward.1} parent=43 // pred_check_branch
          %668 = sbr.rel (%p666) target = $region72
        $region71: #{transformer_forward.1} parent=43 // pred_region
          %s669 = sand.u32 %s37, 1
          %s670 = scalar_lea.sflag [#allocation9], %s669
          %s671 = sand.u32 %s266, 1
          %s672 = smul.addr %s671, 64
          %s673 = scalar_lea.vmem [#allocation8], %s672
          %s675 = ssub.s32 1024, 1024
          %676 = vsyncadd %s670, %s675
          %s677 = smul.addr %s37, 16
          %s678 = smul.addr %s677, 64
          %s679 = scalar_lea.hbm %s9, %s678
          %s680 = sshll.u32 %s673, 4
          %s681 = int_to_ptr.vmem [resolvable:$true] %s680
          %686 = dma.hbm_to_vmem [thread:$0]  %s679, 1024, %s681, %s670, 64, 64, 4
        $region72: #{transformer_forward.1} parent=43 // pred_fallthru
          _
        // Predicated region
        $region73: #{transformer_forward.1} parent=43 // pred_check
          %p687 = pneg %p302
        $region74: #{transformer_forward.1} parent=43 // pred_check_branch
          %689 = sbr.rel (%p687) target = $region76
        $region75: #{transformer_forward.1} parent=43 // pred_region
          %s690 = sand.u32 %s37, 1
          %s691 = scalar_lea.sflag [#allocation9], %s690
          %s692 = sand.u32 %s292, 1
          %s693 = scalar_lea.vmem [#allocation10], %s692
          %s695 = ssub.s32 16, 16
          %696 = vsyncadd %s691, %s695
          %s697 = smul.addr %s37, 16
          %s698 = scalar_lea.hbm %s10, %s697
          %s700 = sshll.u32 %s693, 4
          %s701 = int_to_ptr.vmem [resolvable:$true] %s700
          %703 = dma.hbm_to_vmem [thread:$0]  %s698, 16, %s701, %s691
        $region76: #{transformer_forward.1} parent=43 // pred_fallthru
          _
        // Predicated region
        $region77: #{transformer_forward.1} parent=43 // pred_check
          %p704 = pneg %p328
        $region78: #{transformer_forward.1} parent=43 // pred_check_branch
          %706 = sbr.rel (%p704) target = $region80
        $region79: #{transformer_forward.1} parent=43 // pred_region
          %s707 = sand.u32 %s37, 1
          %s708 = scalar_lea.sflag [#allocation12], %s707
          %s709 = sand.u32 %s318, 1
          %s710 = smul.addr %s709, 64
          %s711 = scalar_lea.vmem [#allocation11], %s710
          %s713 = ssub.s32 1024, 1024
          %714 = vsyncadd %s708, %s713
          %s715 = smul.addr %s37, 16
          %s716 = smul.addr %s715, 64
          %s717 = scalar_lea.hbm %s11, %s716
          %s718 = sshll.u32 %s711, 4
          %s719 = int_to_ptr.vmem [resolvable:$true] %s718
          %724 = dma.hbm_to_vmem [thread:$0]  %s717, 1024, %s719, %s708, 64, 64, 4
        $region80: #{transformer_forward.1} parent=43 // pred_fallthru
          _
        // Predicated region
        $region81: #{transformer_forward.1} parent=43 // pred_check
          %p725 = pneg %p354
        $region82: #{transformer_forward.1} parent=43 // pred_check_branch
          %727 = sbr.rel (%p725) target = $region84
        $region83: #{transformer_forward.1} parent=43 // pred_region
          %s728 = sand.u32 %s37, 1
          %s729 = scalar_lea.sflag [#allocation12], %s728
          %s730 = sand.u32 %s344, 1
          %s731 = scalar_lea.vmem [#allocation13], %s730
          %s733 = ssub.s32 16, 16
          %734 = vsyncadd %s729, %s733
          %s735 = smul.addr %s37, 16
          %s736 = scalar_lea.hbm %s12, %s735
          %s738 = sshll.u32 %s731, 4
          %s739 = int_to_ptr.vmem [resolvable:$true] %s738
          %741 = dma.hbm_to_vmem [thread:$0]  %s736, 16, %s739, %s729
        $region84: #{transformer_forward.1} parent=43 // pred_fallthru
          _
        // Predicated region
        $region85: #{transformer_forward.1} parent=43 // pred_check
          %p742 = pneg %p380
        $region86: #{transformer_forward.1} parent=43 // pred_check_branch
          %744 = sbr.rel (%p742) target = $region88
        $region87: #{transformer_forward.1} parent=43 // pred_region
          %p745 = scmp.lt.s32.totalorder %s37, 1
          %s746 = scalar_select %p745, %s37, 1
          %s747 = scalar_lea.vmem %s13, %s746
        $region88: #{transformer_forward.1} parent=43 // pred_fallthru
          _
        // Predicated region
        $region89: #{transformer_forward.1} parent=43 // pred_check
          %p748 = pneg %p406
        $region90: #{transformer_forward.1} parent=43 // pred_check_branch
          %750 = sbr.rel (%p748) target = $region92
        $region91: #{transformer_forward.1} parent=43 // pred_region
          %p751 = scmp.lt.s32.totalorder %s37, 1
          %s752 = scalar_select %p751, %s37, 1
          %s753 = scalar_lea.vmem %s14, %s752
        $region92: #{transformer_forward.1} parent=43 // pred_fallthru
          _
      $region44: #{transformer_forward.1} parent=5 // pred_fallthru
        _
      %p754 = scmp.le.s32.totalorder 1, %s37
      %p755 = scmp.lt.s32.totalorder %s37, 3
      %p756 = pnand %p754, %p755
      %p757 = pneg %p756
      // Predicated region
      $region93: #{transformer_forward.1} parent=5 // pred_check
        _
      $region94: #{transformer_forward.1} parent=5 // pred_check_branch
        %759 = sbr.rel (%p756) target = $region96
      $region95: #{transformer_forward.1} parent=5 // pred_region
        %s760 = ssub.s32 %s37, 1
        // Predicated region
        $region97: #{transformer_forward.1} parent=95 // pred_check
          %p761 = pneg %p100
        $region98: #{transformer_forward.1} parent=95 // pred_check_branch
          %763 = sbr.rel (%p761) target = $region100
        $region99: #{transformer_forward.1} parent=95 // pred_region
          %764 = dma.done [#allocation4], 16
        $region100: #{transformer_forward.1} parent=95 // pred_fallthru
          _
        %s765 = sand.u32 %s42, 1
        %s766 = scalar_lea.sflag [#allocation6], %s765
        %s767 = sand.u32 %s113, 1
        %s768 = smul.addr %s767, 192
        %s769 = scalar_lea.vmem [#allocation5], %s768
        // Predicated region
        $region101: #{transformer_forward.1} parent=95 // pred_check
          %p770 = pneg %p126
        $region102: #{transformer_forward.1} parent=95 // pred_check_branch
          %772 = sbr.rel (%p770) target = $region104
        $region103: #{transformer_forward.1} parent=95 // pred_region
          %773 = dma.done %s766, 3072
        $region104: #{transformer_forward.1} parent=95 // pred_fallthru
          _
        %s774 = sand.u32 %s42, 1
        %s775 = scalar_lea.sflag [#allocation6], %s774
        %s776 = sand.u32 %s165, 1
        %s777 = smul.addr %s776, 64
        %s778 = scalar_lea.vmem [#allocation7], %s777
        // Predicated region
        $region105: #{transformer_forward.1} parent=95 // pred_check
          %p779 = pneg %p178
        $region106: #{transformer_forward.1} parent=95 // pred_check_branch
          %781 = sbr.rel (%p779) target = $region108
        $region107: #{transformer_forward.1} parent=95 // pred_region
          %782 = dma.done %s775, 1024
        $region108: #{transformer_forward.1} parent=95 // pred_fallthru
          _
        %s783 = sand.u32 %s42, 1
        %s784 = scalar_lea.sflag [#allocation9], %s783
        %s785 = sand.u32 %s269, 1
        %s786 = smul.addr %s785, 64
        %s787 = scalar_lea.vmem [#allocation8], %s786
        // Predicated region
        $region109: #{transformer_forward.1} parent=95 // pred_check
          %p788 = pneg %p282
        $region110: #{transformer_forward.1} parent=95 // pred_check_branch
          %790 = sbr.rel (%p788) target = $region112
        $region111: #{transformer_forward.1} parent=95 // pred_region
          %791 = dma.done %s784, 1024
        $region112: #{transformer_forward.1} parent=95 // pred_fallthru
          _
        %s792 = sand.u32 %s42, 1
        %s793 = scalar_lea.sflag [#allocation9], %s792
        %s794 = sand.u32 %s295, 1
        %s795 = scalar_lea.vmem [#allocation10], %s794
        // Predicated region
        $region113: #{transformer_forward.1} parent=95 // pred_check
          %p796 = pneg %p308
        $region114: #{transformer_forward.1} parent=95 // pred_check_branch
          %798 = sbr.rel (%p796) target = $region116
        $region115: #{transformer_forward.1} parent=95 // pred_region
          %799 = dma.done %s793, 16
        $region116: #{transformer_forward.1} parent=95 // pred_fallthru
          _
        %s800 = sand.u32 %s42, 1
        %s801 = scalar_lea.sflag [#allocation12], %s800
        %s802 = sand.u32 %s321, 1
        %s803 = smul.addr %s802, 64
        %s804 = scalar_lea.vmem [#allocation11], %s803
        // Predicated region
        $region117: #{transformer_forward.1} parent=95 // pred_check
          %p805 = pneg %p334
        $region118: #{transformer_forward.1} parent=95 // pred_check_branch
          %807 = sbr.rel (%p805) target = $region120
        $region119: #{transformer_forward.1} parent=95 // pred_region
          %808 = dma.done %s801, 1024
        $region120: #{transformer_forward.1} parent=95 // pred_fallthru
          _
        %s809 = sand.u32 %s42, 1
        %s810 = scalar_lea.sflag [#allocation12], %s809
        %s811 = sand.u32 %s347, 1
        %s812 = scalar_lea.vmem [#allocation13], %s811
        // Predicated region
        $region121: #{transformer_forward.1} parent=95 // pred_check
          %p813 = pneg %p360
        $region122: #{transformer_forward.1} parent=95 // pred_check_branch
          %815 = sbr.rel (%p813) target = $region124
        $region123: #{transformer_forward.1} parent=95 // pred_region
          %816 = dma.done %s810, 16
        $region124: #{transformer_forward.1} parent=95 // pred_fallthru
          _
        // Predicated region
        $region125: #{transformer_forward.1} parent=95 // pred_check
          %p817 = pneg %p433
        $region126: #{transformer_forward.1} parent=95 // pred_check_branch
          %819 = sbr.rel (%p817) target = $region128
        $region127: #{transformer_forward.1} parent=95 // pred_region
          %820 = dma.done [#allocation15], 16
        $region128: #{transformer_forward.1} parent=95 // pred_fallthru
          _
        // Predicated region
        $region129: #{transformer_forward.1} parent=95 // pred_check
          %p821 = pneg %p454
        $region130: #{transformer_forward.1} parent=95 // pred_check_branch
          %823 = sbr.rel (%p821) target = $region132
        $region131: #{transformer_forward.1} parent=95 // pred_region
          %824 = dma.done [#allocation15], 16
        $region132: #{transformer_forward.1} parent=95 // pred_fallthru
          _
        // Predicated region
        $region133: #{transformer_forward.1} parent=95 // pred_check
          %p825 = pneg %p475
        $region134: #{transformer_forward.1} parent=95 // pred_check_branch
          %827 = sbr.rel (%p825) target = $region136
        $region135: #{transformer_forward.1} parent=95 // pred_region
          %828 = dma.done [#allocation18], 5120
        $region136: #{transformer_forward.1} parent=95 // pred_fallthru
          _
        // Predicated region
        $region137: #{transformer_forward.1} parent=95 // pred_check
          %p829 = pneg %p496
        $region138: #{transformer_forward.1} parent=95 // pred_check_branch
          %831 = sbr.rel (%p829) target = $region140
        $region139: #{transformer_forward.1} parent=95 // pred_region
          %832 = dma.done [#allocation18], 16
        $region140: #{transformer_forward.1} parent=95 // pred_fallthru
          _
        %p833 = pneg %p58
        %p834 = pneg %p55
        %p835 = pneg %p79
        %p836 = pneg %p76
        %p837 = pneg %p100
        %p838 = pneg %p97
        %s839 = sand.u32 %s42, 1
        %s840 = scalar_lea.sflag [#allocation6], %s839
        %s841 = sand.u32 %s113, 1
        %s842 = smul.addr %s841, 192
        %s843 = scalar_lea.vmem [#allocation5], %s842
        %p844 = pneg %p126
        %p845 = pneg %p123
        %p846 = scmp.lt.s32.totalorder %s42, 1
        %s847 = scalar_select %p846, %s42, 1
        %s848 = smul.addr %s847, 3
        %s849 = scalar_lea.vmem %s4, %s848
        %p850 = pneg %p152
        %p851 = pneg %p149
        %s852 = sand.u32 %s42, 1
        %s853 = scalar_lea.sflag [#allocation6], %s852
        %s854 = sand.u32 %s165, 1
        %s855 = smul.addr %s854, 64
        %s856 = scalar_lea.vmem [#allocation7], %s855
        %p857 = pneg %p178
        %p858 = pneg %p175
        %p859 = scmp.lt.s32.totalorder %s42, 1
        %s860 = scalar_select %p859, %s42, 1
        %s861 = scalar_lea.vmem %s6, %s860
        %p862 = pneg %p204
        %p863 = pneg %p201
        %p864 = scmp.lt.s32.totalorder %s42, 1
        %s865 = scalar_select %p864, %s42, 1
        %s866 = scalar_lea.vmem %s7, %s865
        %p867 = pneg %p230
        %p868 = pneg %p227
        %p869 = scmp.lt.s32.totalorder %s42, 1
        %s870 = scalar_select %p869, %s42, 1
        %s871 = scalar_lea.vmem %s8, %s870
        %p872 = pneg %p256
        %p873 = pneg %p253
        %s874 = sand.u32 %s42, 1
        %s875 = scalar_lea.sflag [#allocation9], %s874
        %s876 = sand.u32 %s269, 1
        %s877 = smul.addr %s876, 64
        %s878 = scalar_lea.vmem [#allocation8], %s877
        %p879 = pneg %p282
        %p880 = pneg %p279
        %s881 = sand.u32 %s42, 1
        %s882 = scalar_lea.sflag [#allocation9], %s881
        %s883 = sand.u32 %s295, 1
        %s884 = scalar_lea.vmem [#allocation10], %s883
        %p885 = pneg %p308
        %p886 = pneg %p305
        %s887 = sand.u32 %s42, 1
        %s888 = scalar_lea.sflag [#allocation12], %s887
        %s889 = sand.u32 %s321, 1
        %s890 = smul.addr %s889, 64
        %s891 = scalar_lea.vmem [#allocation11], %s890
        %p892 = pneg %p334
        %p893 = pneg %p331
        %s894 = sand.u32 %s42, 1
        %s895 = scalar_lea.sflag [#allocation12], %s894
        %s896 = sand.u32 %s347, 1
        %s897 = scalar_lea.vmem [#allocation13], %s896
        %p898 = pneg %p360
        %p899 = pneg %p357
        %p900 = scmp.lt.s32.totalorder %s42, 1
        %s901 = scalar_select %p900, %s42, 1
        %s902 = scalar_lea.vmem %s13, %s901
        %p903 = pneg %p386
        %p904 = pneg %p383
        %p905 = scmp.lt.s32.totalorder %s42, 1
        %s906 = scalar_select %p905, %s42, 1
        %s907 = scalar_lea.vmem %s14, %s906
        %p908 = pneg %p412
        %p909 = pneg %p409
        %p910 = pneg %p433
        %p911 = pneg %p430
        %p912 = pneg %p454
        %p913 = pneg %p451
        %p914 = pneg %p475
        %p915 = pneg %p472
        %p916 = pneg %p496
        %p917 = pneg %p493
        %p918 = pneg %p517
        %p919 = pneg %p514
        %p920 = scmp.lt.s32.totalorder %s42, 1
        %s921 = scalar_select %p920, %s42, 1
        %s922 = smul.addr %s921, 3
        %s923 = scalar_lea.vmem %s4, %s922
        %p924 = scmp.lt.s32.totalorder %s42, 1
        %s925 = scalar_select %p924, %s42, 1
        %s926 = scalar_lea.vmem %s6, %s925
        %p927 = scmp.lt.s32.totalorder %s42, 1
        %s928 = scalar_select %p927, %s42, 1
        %s929 = scalar_lea.vmem %s7, %s928
        %p930 = scmp.lt.s32.totalorder %s42, 1
        %s931 = scalar_select %p930, %s42, 1
        %s932 = scalar_lea.vmem %s8, %s931
        %p933 = scmp.lt.s32.totalorder %s42, 1
        %s934 = scalar_select %p933, %s42, 1
        %s935 = scalar_lea.vmem %s13, %s934
        %p936 = scmp.lt.s32.totalorder %s42, 1
        %s937 = scalar_select %p936, %s42, 1
        %s938 = scalar_lea.vmem %s14, %s937
        %p940 = scmp.eq.s32.totalorder %s42, 0
        // Predicated region
        $region141: #{transformer_forward.1} parent=95 // pred_check
          %p941 = pneg %p940
        $region142: #{transformer_forward.1} parent=95 // pred_check_branch
          %943 = sbr.rel (%p941) target = $region144
        $region143: #{transformer_forward.1} parent=95 // pred_region
          %v944 = vld [vmem:[%s0] sm:$0xf]
          %v945 = vld [vmem:[%s0 + $0x4] sm:$0xf]
          %v946 = vld [vmem:[%s0 + $0x8] sm:$0xf]
          %v947 = vld [vmem:[%s0 + $0xc] sm:$0xf]
          %v948 = vld [vmem:[%s0 + $0x10] sm:$0xf]
          %v949 = vld [vmem:[%s1] sm:$0xf]
          %v950 = vld [vmem:[%s1 + $0x4] sm:$0xf]
          %v951 = vld [vmem:[%s1 + $0x8] sm:$0xf]
          %v952 = vld [vmem:[%s1 + $0xc] sm:$0xf]
          %v953 = vld [vmem:[%s1 + $0x10] sm:$0xf]
          %v954 = vld [vmem:[%s1 + $0x14] sm:$0xf]
          %v955 = vld [vmem:[%s1 + $0x18] sm:$0xf]
          %v956 = vld [vmem:[%s1 + $0x1c] sm:$0xf]
          %v957 = vld [vmem:[%s1 + $0x20] sm:$0xf]
          %v958 = vld [vmem:[%s1 + $0x24] sm:$0xf]
          %v959 = vld [vmem:[%s1 + $0x28] sm:$0xf]
          %v960 = vld [vmem:[%s1 + $0x2c] sm:$0xf]
          %v961 = vld [vmem:[%s1 + $0x30] sm:$0xf]
          %v962 = vld [vmem:[%s1 + $0x34] sm:$0xf]
          %v963 = vld [vmem:[%s1 + $0x38] sm:$0xf]
          %v964 = vld [vmem:[%s1 + $0x3c] sm:$0xf]
          %v965 = vld [vmem:[#allocation3] sm:$0x1]
          %v967 = vlaneseq
          %v968 = vshrl.u32 %v967, 7
          %v969 = vsub.s32 0, %v968
          %v970 = vrot.slane %v965, %v969
          %v977 = vunpack.c.l.b16 %v944
          %v978 = vunpack.c.l.b16 %v945
          %v979 = vunpack.c.l.b16 %v946
          %v980 = vunpack.c.l.b16 %v947
          %v981 = vunpack.c.l.b16 %v948
          %v982 = vpack.c.b16 %v978, %v977
          %v983 = vpack.c.b16 %v980, %v979
          %v984 = vpack.c.b16 %v981, %v981
          %v1004 = vunpack.c.l.b16 %v949
          %v1005 = vunpack.c.l.b16 %v950
          %v1006 = vunpack.c.l.b16 %v951
          %v1007 = vunpack.c.l.b16 %v952
          %v1008 = vunpack.c.l.b16 %v953
          %v1009 = vunpack.c.l.b16 %v954
          %v1010 = vunpack.c.l.b16 %v955
          %v1011 = vunpack.c.l.b16 %v956
          %v1012 = vunpack.c.l.b16 %v957
          %v1013 = vunpack.c.l.b16 %v958
          %v1014 = vunpack.c.l.b16 %v959
          %v1015 = vunpack.c.l.b16 %v960
          %v1016 = vunpack.c.l.b16 %v961
          %v1017 = vunpack.c.l.b16 %v962
          %v1018 = vunpack.c.l.b16 %v963
          %v1019 = vunpack.c.l.b16 %v964
          %v1020 = vpack.c.b16 %v1005, %v1004
          %v1021 = vpack.c.b16 %v1007, %v1006
          %v1022 = vpack.c.b16 %v1009, %v1008
          %v1023 = vpack.c.b16 %v1011, %v1010
          %v1024 = vpack.c.b16 %v1013, %v1012
          %v1025 = vpack.c.b16 %v1015, %v1014
          %v1026 = vpack.c.b16 %v1017, %v1016
          %v1027 = vpack.c.b16 %v1019, %v1018
          %1036 = vmatprep.subr.bf16.mxu0 0
          %1037 = vmatpush1.bf16.msra.mxu0 %v1027
          %1038 = vmatprep.subr.bf16.mxu0 0
          %1039 = vmatpush1.bf16.msra.mxu0 %v1026
          %1040 = vmatprep.subr.bf16.mxu0 0
          %1041 = vmatpush1.bf16.msra.mxu0 %v1025
          %1042 = vmatprep.subr.bf16.mxu0 0
          %1043 = vmatpush1.bf16.msra.mxu0 %v1024
          %1044 = vmatprep.subr.bf16.mxu0 0
          %1045 = vmatpush1.bf16.msra.mxu0 %v1023
          %1046 = vmatprep.subr.bf16.mxu0 0
          %1047 = vmatpush1.bf16.msra.mxu0 %v1022
          %1048 = vmatprep.subr.bf16.mxu0 0
          %1049 = vmatpush1.bf16.msra.mxu0 %v1021
          %1050 = vmatprep.subr.bf16.mxu0 0
          %1051 = vmatpush1.bf16.msra.mxu0 %v1020
          %1052 = vmatprep.subr.bf16.mxu0 0
          %1053 = vmatpush2.bf16.msra.mxu0 0
          %1054 = vmatprep.subr.bf16.mxu0 0
          %1055 = vmatpush2.bf16.msra.mxu0 0
          %1056 = vmatprep.subr.bf16.mxu0 0
          %1057 = vmatpush2.bf16.msra.mxu0 0
          %1058 = vmatprep.subr.bf16.mxu0 0
          %1059 = vmatpush2.bf16.msra.mxu0 0
          %1060 = vmatprep.subr.bf16.mxu0 0
          %1061 = vmatpush2.bf16.msra.mxu0 0
          %1062 = vmatprep.subr.bf16.mxu0 0
          %1063 = vmatpush2.bf16.msra.mxu0 0
          %1064 = vmatprep.subr.bf16.mxu0 0
          %1065 = vmatpush2.bf16.msra.mxu0 0
          %1066 = vmatprep.subr.bf16.mxu0 0
          %1067 = vmatpush2.bf16.msra.mxu0 0
          %1068 = vmatprep.mubr.bf16.mxu0 0
          %1069 = vmatmul.mubr.bf16.gmra.mxu0 %v982
          %v1070 = vpop.f32.mrf.mxu0
          %v1071 = vadd.f32 %v970, %v1070
          %v1072 = vpop.f32.mrf.mxu0
          %v1073 = vpop.f32.mrf.mxu0
          %v1074 = vadd.f32 %v970, %v1073
          %v1075 = vpop.f32.mrf.mxu0
          %1076 = vmatprep.mubr.bf16.mxu0 0
          %1077 = vmatmul.mubr.bf16.gmra.mxu0 %v983
          %v1078 = vpop.f32.mrf.mxu0
          %v1079 = vadd.f32 %v970, %v1078
          %v1080 = vpop.f32.mrf.mxu0
          %v1081 = vpop.f32.mrf.mxu0
          %v1082 = vadd.f32 %v970, %v1081
          %v1083 = vpop.f32.mrf.mxu0
          %1084 = vmatprep.mubr.bf16.mxu0 0
          %1085 = vmatmul.mubr.bf16.gmra.mxu0 %v984
          %v1086 = vpop.f32.mrf.mxu0
          %v1087 = vadd.f32 %v970, %v1086
          %v1088 = vpop.f32.mrf.mxu0
          %v1089 = vpop.f32.mrf.mxu0
          %v1090 = vpop.f32.mrf.mxu0
          %1091 = vdwg.mxu0
          %1092 = vst [vmem:[#allocation2] sm:$0xff] %v1071
          %1093 = vst [vmem:[#allocation2 + $0x8] sm:$0xff] %v1074
          %1094 = vst [vmem:[#allocation2 + $0x10] sm:$0xff] %v1079
          %1095 = vst [vmem:[#allocation2 + $0x18] sm:$0xff] %v1082
          %1096 = vst [vmem:[#allocation2 + $0x20] sm:$0xff] %v1087
        $region144: #{transformer_forward.1} parent=95 // pred_fallthru
          _
        %v1097 = vld [vmem:[#allocation2] sm:$0xff]
        %v1098 = vld [vmem:[#allocation2 + $0x8] sm:$0xff]
        %v1099 = vld [vmem:[#allocation2 + $0x10] sm:$0xff]
        %v1100 = vld [vmem:[#allocation2 + $0x18] sm:$0xff]
        %v1101 = vld [vmem:[#allocation2 + $0x20] sm:$0xff]
        %v1102 = vpack.c.bf16 %v1098, %v1097
        %v1103 = vpack.c.bf16 %v1100, %v1099
        %v1104 = vpack.c.bf16 %v1101, %v1101
        %v1105 = vlaneseq
        %v1106 = vshrl.u32 %v1105, 7
        %v1107 = vadd.s32 %v1106, 8
        %v1108 = vadd.s32 %v1106, 16
        %v1109 = vadd.s32 %v1106, 24
        %v1110 = vadd.s32 %v1106, 32
        %v1111 = vlaneseq
        %v1112 = vand.u32 %v1111, 127
        %vm1113 = vcmp.lt.s32.totalorder %v1106, 0
        %v1114 = vsub.s32 0, %v1106
        %v1115 = vsel %vm1113, %v1114, %v1106
        %v1116 = vshrl.u32 %v1115, 3
        %v1117 = vand.u32 %v1115, 7
        %v1118 = vsub.s32 0, %v1117
        %v1119 = vsel %vm1113, %v1118, %v1117
        %vm1120 = vcmp.lt.s32.totalorder %v1107, 0
        %v1121 = vsub.s32 0, %v1107
        %v1122 = vsel %vm1120, %v1121, %v1107
        %v1123 = vshrl.u32 %v1122, 3
        %v1124 = vand.u32 %v1122, 7
        %v1125 = vsub.s32 0, %v1124
        %v1126 = vsel %vm1120, %v1125, %v1124
        %vm1127 = vcmp.lt.s32.totalorder %v1108, 0
        %v1128 = vsub.s32 0, %v1108
        %v1129 = vsel %vm1127, %v1128, %v1108
        %v1130 = vshrl.u32 %v1129, 3
        %v1131 = vand.u32 %v1129, 7
        %v1132 = vsub.s32 0, %v1131
        %v1133 = vsel %vm1127, %v1132, %v1131
        %vm1134 = vcmp.lt.s32.totalorder %v1109, 0
        %v1135 = vsub.s32 0, %v1109
        %v1136 = vsel %vm1134, %v1135, %v1109
        %v1137 = vshrl.u32 %v1136, 3
        %v1138 = vand.u32 %v1136, 7
        %v1139 = vsub.s32 0, %v1138
        %v1140 = vsel %vm1134, %v1139, %v1138
        %vm1141 = vcmp.lt.s32.totalorder %v1110, 0
        %v1142 = vsub.s32 0, %v1110
        %v1143 = vsel %vm1141, %v1142, %v1110
        %v1144 = vshrl.u32 %v1143, 3
        %v1145 = vand.u32 %v1143, 7
        %v1146 = vsub.s32 0, %v1145
        %v1147 = vsel %vm1141, %v1146, %v1145
        %vm1148 = vcmp.ne.s32.totalorder %v1119, 0
        %vm1149 = vcmp.ne.s32.totalorder %v1126, 0
        %vm1150 = vcmp.ne.s32.totalorder %v1133, 0
        %vm1151 = vcmp.ne.s32.totalorder %v1140, 0
        %vm1152 = vcmp.ne.s32.totalorder %v1147, 0
        %vm1153 = vcmp.lt.s32.totalorder %v1119, 0
        %vm1154 = vcmp.lt.s32.totalorder %v1126, 0
        %vm1155 = vcmp.lt.s32.totalorder %v1133, 0
        %vm1156 = vcmp.lt.s32.totalorder %v1140, 0
        %vm1157 = vcmp.lt.s32.totalorder %v1147, 0
        %vm1158 = vmand %vm1153, %vm1148
        %vm1159 = vmand %vm1154, %vm1149
        %vm1160 = vmand %vm1155, %vm1150
        %vm1161 = vmand %vm1156, %vm1151
        %vm1162 = vmand %vm1157, %vm1152
        %v1163 = vadd.s32 %v1119, 8
        %v1164 = vadd.s32 %v1126, 8
        %v1165 = vadd.s32 %v1133, 8
        %v1166 = vadd.s32 %v1140, 8
        %v1167 = vadd.s32 %v1147, 8
        %v1168 = vsel %vm1158, %v1163, %v1119
        %v1169 = vsel %vm1159, %v1164, %v1126
        %v1170 = vsel %vm1160, %v1165, %v1133
        %v1171 = vsel %vm1161, %v1166, %v1140
        %v1172 = vsel %vm1162, %v1167, %v1147
        %vm1173 = vcmp.lt.s32.totalorder %v1112, 0
        %v1174 = vsub.s32 0, %v1112
        %v1175 = vsel %vm1173, %v1174, %v1112
        %v1176 = vshrl.u32 %v1175, 3
        %v1177 = vand.u32 %v1175, 7
        %v1178 = vsub.s32 0, %v1177
        %v1179 = vsel %vm1173, %v1178, %v1177
        %vm1180 = vcmp.ne.s32.totalorder %v1179, 0
        %vm1181 = vcmp.lt.s32.totalorder %v1179, 0
        %vm1182 = vmand %vm1181, %vm1180
        %v1183 = vadd.s32 %v1179, 8
        %v1184 = vsel %vm1182, %v1183, %v1179
        %vm1185 = vcmp.eq.s32.totalorder %v1168, %v1184
        %vm1186 = vcmp.eq.s32.totalorder %v1169, %v1184
        %vm1187 = vcmp.eq.s32.totalorder %v1170, %v1184
        %vm1188 = vcmp.eq.s32.totalorder %v1171, %v1184
        %vm1189 = vcmp.eq.s32.totalorder %v1172, %v1184
        %vm1190 = vcmp.lt.s32.totalorder %v1184, 2
        %vm1191 = vmand %vm1185, %vm1190
        %vm1192 = vmand %vm1186, %vm1190
        %vm1193 = vmand %vm1187, %vm1190
        %vm1194 = vmand %vm1188, %vm1190
        %vm1195 = vmand %vm1189, %vm1190
        %v1196 = vsel %vm1191, 0.0, -1e+30
        %v1197 = vsel %vm1192, 0.0, -1e+30
        %v1198 = vsel %vm1193, 0.0, -1e+30
        %v1199 = vsel %vm1194, 0.0, -1e+30
        %v1200 = vsel %vm1195, 0.0, -1e+30
        %v1201 = vld [vmem:[%s769] sm:$0xff]
        %v1202 = vld [vmem:[%s769 + $0x8] sm:$0xf]
        %v1203 = vld [vmem:[%s769 + $0xc] sm:$0xff]
        %v1204 = vld [vmem:[%s769 + $0x14] sm:$0xf]
        %v1205 = vld [vmem:[%s769 + $0x18] sm:$0xff]
        %v1206 = vld [vmem:[%s769 + $0x20] sm:$0xf]
        %v1207 = vld [vmem:[%s769 + $0x24] sm:$0xff]
        %v1208 = vld [vmem:[%s769 + $0x2c] sm:$0xf]
        %v1209 = vld [vmem:[%s769 + $0x30] sm:$0xff]
        %v1210 = vld [vmem:[%s769 + $0x38] sm:$0xf]
        %v1211 = vld [vmem:[%s769 + $0x3c] sm:$0xff]
        %v1212 = vld [vmem:[%s769 + $0x44] sm:$0xf]
        %v1213 = vld [vmem:[%s769 + $0x48] sm:$0xff]
        %v1214 = vld [vmem:[%s769 + $0x50] sm:$0xf]
        %v1215 = vld [vmem:[%s769 + $0x54] sm:$0xff]
        %v1216 = vld [vmem:[%s769 + $0x5c] sm:$0xf]
        %v1217 = vld [vmem:[%s769 + $0x60] sm:$0xff]
        %v1218 = vld [vmem:[%s769 + $0x68] sm:$0xf]
        %v1219 = vld [vmem:[%s769 + $0x6c] sm:$0xff]
        %v1220 = vld [vmem:[%s769 + $0x74] sm:$0xf]
        %v1221 = vld [vmem:[%s769 + $0x78] sm:$0xff]
        %v1222 = vld [vmem:[%s769 + $0x80] sm:$0xf]
        %v1223 = vld [vmem:[%s769 + $0x84] sm:$0xff]
        %v1224 = vld [vmem:[%s769 + $0x8c] sm:$0xf]
        %v1225 = vld [vmem:[%s769 + $0x90] sm:$0xff]
        %v1226 = vld [vmem:[%s769 + $0x98] sm:$0xf]
        %v1227 = vld [vmem:[%s769 + $0x9c] sm:$0xff]
        %v1228 = vld [vmem:[%s769 + $0xa4] sm:$0xf]
        %v1229 = vld [vmem:[%s769 + $0xa8] sm:$0xff]
        %v1230 = vld [vmem:[%s769 + $0xb0] sm:$0xf]
        %v1231 = vld [vmem:[%s769 + $0xb4] sm:$0xff]
        %v1232 = vld [vmem:[%s769 + $0xbc] sm:$0xf]
        %v1233 = vld [vmem:[%s923] sm:$0x7]
        %v1235 = vlaneseq
        %v1236 = vshrl.u32 %v1235, 7
        %v1237 = vsub.s32 0, %v1236
        %v1238 = vrot.slane %v1233, %v1237
        %v1239 = vlaneseq
        %v1240 = vshrl.u32 %v1239, 7
        %v1241 = vsub.s32 1, %v1240
        %v1242 = vrot.slane %v1233, %v1241
        %v1243 = vlaneseq
        %v1244 = vshrl.u32 %v1243, 7
        %v1245 = vsub.s32 2, %v1244
        %v1246 = vrot.slane %v1233, %v1245
        %v1282 = vunpack.c.l.b16 %v1201
        %v1283 = vunpack.c.h.b16 %v1201
        %v1284 = vunpack.c.l.b16 %v1202
        %v1285 = vunpack.c.l.b16 %v1203
        %v1286 = vunpack.c.h.b16 %v1203
        %v1287 = vunpack.c.l.b16 %v1204
        %v1288 = vunpack.c.l.b16 %v1205
        %v1289 = vunpack.c.h.b16 %v1205
        %v1290 = vunpack.c.l.b16 %v1206
        %v1291 = vunpack.c.l.b16 %v1207
        %v1292 = vunpack.c.h.b16 %v1207
        %v1293 = vunpack.c.l.b16 %v1208
        %v1294 = vunpack.c.l.b16 %v1209
        %v1295 = vunpack.c.h.b16 %v1209
        %v1296 = vunpack.c.l.b16 %v1210
        %v1297 = vunpack.c.l.b16 %v1211
        %v1298 = vunpack.c.h.b16 %v1211
        %v1299 = vunpack.c.l.b16 %v1212
        %v1300 = vunpack.c.l.b16 %v1213
        %v1301 = vunpack.c.h.b16 %v1213
        %v1302 = vunpack.c.l.b16 %v1214
        %v1303 = vunpack.c.l.b16 %v1215
        %v1304 = vunpack.c.h.b16 %v1215
        %v1305 = vunpack.c.l.b16 %v1216
        %v1306 = vunpack.c.l.b16 %v1217
        %v1307 = vunpack.c.h.b16 %v1217
        %v1308 = vunpack.c.l.b16 %v1218
        %v1309 = vunpack.c.l.b16 %v1219
        %v1310 = vunpack.c.h.b16 %v1219
        %v1311 = vunpack.c.l.b16 %v1220
        %v1312 = vunpack.c.l.b16 %v1221
        %v1313 = vunpack.c.h.b16 %v1221
        %v1314 = vunpack.c.l.b16 %v1222
        %v1315 = vunpack.c.l.b16 %v1223
        %v1316 = vunpack.c.h.b16 %v1223
        %v1317 = vunpack.c.l.b16 %v1224
        %v1318 = vunpack.c.l.b16 %v1225
        %v1319 = vunpack.c.h.b16 %v1225
        %v1320 = vunpack.c.l.b16 %v1226
        %v1321 = vunpack.c.l.b16 %v1227
        %v1322 = vunpack.c.h.b16 %v1227
        %v1323 = vunpack.c.l.b16 %v1228
        %v1324 = vunpack.c.l.b16 %v1229
        %v1325 = vunpack.c.h.b16 %v1229
        %v1326 = vunpack.c.l.b16 %v1230
        %v1327 = vunpack.c.l.b16 %v1231
        %v1328 = vunpack.c.h.b16 %v1231
        %v1329 = vunpack.c.l.b16 %v1232
        %v1330 = vpack.c.b16 %v1285, %v1282
        %v1331 = vpack.c.b16 %v1286, %v1283
        %v1332 = vpack.c.b16 %v1287, %v1284
        %v1333 = vpack.c.b16 %v1291, %v1288
        %v1334 = vpack.c.b16 %v1292, %v1289
        %v1335 = vpack.c.b16 %v1293, %v1290
        %v1336 = vpack.c.b16 %v1297, %v1294
        %v1337 = vpack.c.b16 %v1298, %v1295
        %v1338 = vpack.c.b16 %v1299, %v1296
        %v1339 = vpack.c.b16 %v1303, %v1300
        %v1340 = vpack.c.b16 %v1304, %v1301
        %v1341 = vpack.c.b16 %v1305, %v1302
        %v1342 = vpack.c.b16 %v1309, %v1306
        %v1343 = vpack.c.b16 %v1310, %v1307
        %v1344 = vpack.c.b16 %v1311, %v1308
        %v1345 = vpack.c.b16 %v1315, %v1312
        %v1346 = vpack.c.b16 %v1316, %v1313
        %v1347 = vpack.c.b16 %v1317, %v1314
        %v1348 = vpack.c.b16 %v1321, %v1318
        %v1349 = vpack.c.b16 %v1322, %v1319
        %v1350 = vpack.c.b16 %v1323, %v1320
        %v1351 = vpack.c.b16 %v1327, %v1324
        %v1352 = vpack.c.b16 %v1328, %v1325
        %v1353 = vpack.c.b16 %v1329, %v1326
        %1378 = vmatprep.subr.bf16.mxu0 %v1352
        %1379 = vmatpush1.bf16.msra.mxu0 %v1351
        %1380 = vmatprep.subr.bf16.mxu0 %v1349
        %1381 = vmatpush1.bf16.msra.mxu0 %v1348
        %1382 = vmatprep.subr.bf16.mxu0 %v1346
        %1383 = vmatpush1.bf16.msra.mxu0 %v1345
        %1384 = vmatprep.subr.bf16.mxu0 %v1343
        %1385 = vmatpush1.bf16.msra.mxu0 %v1342
        %1386 = vmatprep.subr.bf16.mxu0 %v1340
        %1387 = vmatpush1.bf16.msra.mxu0 %v1339
        %1388 = vmatprep.subr.bf16.mxu0 %v1337
        %1389 = vmatpush1.bf16.msra.mxu0 %v1336
        %1390 = vmatprep.subr.bf16.mxu0 %v1334
        %1391 = vmatpush1.bf16.msra.mxu0 %v1333
        %1392 = vmatprep.subr.bf16.mxu0 %v1331
        %1393 = vmatpush1.bf16.msra.mxu0 %v1330
        %1394 = vmatprep.subr.bf16.mxu0 0
        %1395 = vmatpush2.bf16.msra.mxu0 0
        %1396 = vmatprep.subr.bf16.mxu0 0
        %1397 = vmatpush2.bf16.msra.mxu0 0
        %1398 = vmatprep.subr.bf16.mxu0 0
        %1399 = vmatpush2.bf16.msra.mxu0 0
        %1400 = vmatprep.subr.bf16.mxu0 0
        %1401 = vmatpush2.bf16.msra.mxu0 0
        %1402 = vmatprep.subr.bf16.mxu0 0
        %1403 = vmatpush2.bf16.msra.mxu0 0
        %1404 = vmatprep.subr.bf16.mxu0 0
        %1405 = vmatpush2.bf16.msra.mxu0 0
        %1406 = vmatprep.subr.bf16.mxu0 0
        %1407 = vmatpush2.bf16.msra.mxu0 0
        %1408 = vmatprep.subr.bf16.mxu0 0
        %1409 = vmatpush2.bf16.msra.mxu0 0
        %1410 = vmatprep.mubr.bf16.mxu0 0
        %1411 = vmatmul.mubr.bf16.gmra.mxu0 %v1102
        %v1412 = vpop.f32.mrf.mxu0
        %v1413 = vadd.f32 %v1238, %v1412
        %v1414 = vpop.f32.mrf.mxu0
        %v1415 = vadd.f32 %v1242, %v1414
        %v1416 = vpop.f32.mrf.mxu0
        %v1417 = vadd.f32 %v1238, %v1416
        %v1418 = vpop.f32.mrf.mxu0
        %v1419 = vadd.f32 %v1242, %v1418
        %1420 = vmatprep.mubr.bf16.mxu0 0
        %1421 = vmatmul.mubr.bf16.gmra.mxu0 %v1103
        %v1422 = vpop.f32.mrf.mxu0
        %v1423 = vadd.f32 %v1238, %v1422
        %v1424 = vpop.f32.mrf.mxu0
        %v1425 = vadd.f32 %v1242, %v1424
        %v1426 = vpop.f32.mrf.mxu0
        %v1427 = vadd.f32 %v1238, %v1426
        %v1428 = vpop.f32.mrf.mxu0
        %v1429 = vadd.f32 %v1242, %v1428
        %1430 = vmatprep.mubr.bf16.mxu0 0
        %1431 = vmatmul.mubr.bf16.gmra.mxu0 %v1104
        %v1432 = vpop.f32.mrf.mxu0
        %v1433 = vadd.f32 %v1238, %v1432
        %v1434 = vpop.f32.mrf.mxu0
        %v1435 = vadd.f32 %v1242, %v1434
        %v1436 = vpop.f32.mrf.mxu0
        %v1437 = vpop.f32.mrf.mxu0
        %1438 = vdwg.mxu0
        %1439 = vmatprep.subr.bf16.mxu0 0
        %1440 = vmatpush1.bf16.msra.mxu0 %v1353
        %1441 = vmatprep.subr.bf16.mxu0 0
        %1442 = vmatpush1.bf16.msra.mxu0 %v1350
        %1443 = vmatprep.subr.bf16.mxu0 0
        %1444 = vmatpush1.bf16.msra.mxu0 %v1347
        %1445 = vmatprep.subr.bf16.mxu0 0
        %1446 = vmatpush1.bf16.msra.mxu0 %v1344
        %1447 = vmatprep.subr.bf16.mxu0 0
        %1448 = vmatpush1.bf16.msra.mxu0 %v1341
        %1449 = vmatprep.subr.bf16.mxu0 0
        %1450 = vmatpush1.bf16.msra.mxu0 %v1338
        %1451 = vmatprep.subr.bf16.mxu0 0
        %1452 = vmatpush1.bf16.msra.mxu0 %v1335
        %1453 = vmatprep.subr.bf16.mxu0 0
        %1454 = vmatpush1.bf16.msra.mxu0 %v1332
        %1455 = vmatprep.subr.bf16.mxu0 0
        %1456 = vmatpush2.bf16.msra.mxu0 0
        %1457 = vmatprep.subr.bf16.mxu0 0
        %1458 = vmatpush2.bf16.msra.mxu0 0
        %1459 = vmatprep.subr.bf16.mxu0 0
        %1460 = vmatpush2.bf16.msra.mxu0 0
        %1461 = vmatprep.subr.bf16.mxu0 0
        %1462 = vmatpush2.bf16.msra.mxu0 0
        %1463 = vmatprep.subr.bf16.mxu0 0
        %1464 = vmatpush2.bf16.msra.mxu0 0
        %1465 = vmatprep.subr.bf16.mxu0 0
        %1466 = vmatpush2.bf16.msra.mxu0 0
        %1467 = vmatprep.subr.bf16.mxu0 0
        %1468 = vmatpush2.bf16.msra.mxu0 0
        %1469 = vmatprep.subr.bf16.mxu0 0
        %1470 = vmatpush2.bf16.msra.mxu0 0
        %1471 = vmatprep.mubr.bf16.mxu0 0
        %1472 = vmatmul.mubr.bf16.gmra.mxu0 %v1102
        %v1473 = vpop.f32.mrf.mxu0
        %v1474 = vadd.f32 %v1246, %v1473
        %v1475 = vpop.f32.mrf.mxu0
        %v1476 = vpop.f32.mrf.mxu0
        %v1477 = vadd.f32 %v1246, %v1476
        %v1478 = vpop.f32.mrf.mxu0
        %1479 = vmatprep.mubr.bf16.mxu0 0
        %1480 = vmatmul.mubr.bf16.gmra.mxu0 %v1103
        %v1481 = vpop.f32.mrf.mxu0
        %v1482 = vadd.f32 %v1246, %v1481
        %v1483 = vpop.f32.mrf.mxu0
        %v1484 = vpop.f32.mrf.mxu0
        %v1485 = vadd.f32 %v1246, %v1484
        %v1486 = vpop.f32.mrf.mxu0
        %1487 = vmatprep.mubr.bf16.mxu0 0
        %1488 = vmatmul.mubr.bf16.gmra.mxu0 %v1104
        %v1489 = vpop.f32.mrf.mxu0
        %v1490 = vadd.f32 %v1246, %v1489
        %v1491 = vpop.f32.mrf.mxu0
        %v1492 = vpop.f32.mrf.mxu0
        %v1493 = vpop.f32.mrf.mxu0
        %1494 = vdwg.mxu0
        %v1495 = vmul.f32 %v1413, 0.35355338
        %v1496 = vmul.f32 %v1417, 0.35355338
        %v1497 = vmul.f32 %v1423, 0.35355338
        %v1498 = vmul.f32 %v1427, 0.35355338
        %v1499 = vmul.f32 %v1433, 0.35355338
        %v1500 = vpack.c.bf16 %v1496, %v1495
        %v1501 = vpack.c.bf16 %v1498, %v1497
        %v1502 = vpack.c.bf16 %v1499, %v1499
        %v1503 = vpack.c.bf16 %v1419, %v1415
        %v1504 = vpack.c.bf16 %v1429, %v1425
        %v1505 = vpack.c.bf16 %v1435, %v1435
        %v1506 = vpack.c.bf16 %v1477, %v1474
        %v1507 = vpack.c.bf16 %v1485, %v1482
        %v1508 = vpack.c.bf16 %v1490, %v1490
        %vm1509 = vcmask 261120
        %v1511 = vsel %vm1509, %v1500, 0
        %v1514 = vsel %vm1509, %v1501, 0
        %v1517 = vsel %vm1509, %v1502, 0
        %v1520 = vsel %vm1509, %v1503, 0
        %v1523 = vsel %vm1509, %v1504, 0
        %v1526 = vsel %vm1509, %v1505, 0
        %1528 = vmatprep.subr.bf16.mxu0 0
        %1529 = vmatpush1.bf16.xpose.msra.mxu0 0
        %1530 = vmatprep.subr.bf16.mxu0 0
        %1531 = vmatpush1.bf16.xpose.msra.mxu0 0
        %1532 = vmatprep.subr.bf16.mxu0 0
        %1533 = vmatpush1.bf16.xpose.msra.mxu0 0
        %1534 = vmatprep.subr.bf16.mxu0 0
        %1535 = vmatpush1.bf16.xpose.msra.mxu0 0
        %1536 = vmatprep.subr.bf16.mxu0 0
        %1537 = vmatpush1.bf16.xpose.msra.mxu0 0
        %1538 = vmatprep.subr.bf16.mxu0 0
        %1539 = vmatpush1.bf16.xpose.msra.mxu0 %v1526
        %1540 = vmatprep.subr.bf16.mxu0 0
        %1541 = vmatpush1.bf16.xpose.msra.mxu0 %v1523
        %1542 = vmatprep.subr.bf16.mxu0 0
        %1543 = vmatpush1.bf16.xpose.msra.mxu0 %v1520
        %1544 = vmatprep.subr.bf16.mxu0 0
        %1545 = vmatpush2.bf16.xpose.msra.mxu0 0
        %1546 = vmatprep.subr.bf16.mxu0 0
        %1547 = vmatpush2.bf16.xpose.msra.mxu0 0
        %1548 = vmatprep.subr.bf16.mxu0 0
        %1549 = vmatpush2.bf16.xpose.msra.mxu0 0
        %1550 = vmatprep.subr.bf16.mxu0 0
        %1551 = vmatpush2.bf16.xpose.msra.mxu0 0
        %1552 = vmatprep.subr.bf16.mxu0 0
        %1553 = vmatpush2.bf16.xpose.msra.mxu0 0
        %1554 = vmatprep.subr.bf16.mxu0 0
        %1555 = vmatpush2.bf16.xpose.msra.mxu0 0
        %1556 = vmatprep.subr.bf16.mxu0 0
        %1557 = vmatpush2.bf16.xpose.msra.mxu0 0
        %1558 = vmatprep.subr.bf16.mxu0 0
        %1559 = vmatpush2.bf16.xpose.msra.mxu0 0
        %1560 = vmatprep.mubr.bf16.mxu0 0
        %1561 = vmatmul.mubr.bf16.gmra.mxu0 %v1511
        %v1562 = vpop.f32.mrf.mxu0
        %v1563 = vadd.f32 %v1196, %v1562
        %v1564 = vpop.f32.mrf.mxu0
        %v1565 = vpop.f32.mrf.mxu0
        %v1566 = vadd.f32 %v1197, %v1565
        %v1567 = vpop.f32.mrf.mxu0
        %1568 = vmatprep.mubr.bf16.mxu0 0
        %1569 = vmatmul.mubr.bf16.gmra.mxu0 %v1514
        %v1570 = vpop.f32.mrf.mxu0
        %v1571 = vadd.f32 %v1198, %v1570
        %v1572 = vpop.f32.mrf.mxu0
        %v1573 = vpop.f32.mrf.mxu0
        %v1574 = vadd.f32 %v1199, %v1573
        %v1575 = vpop.f32.mrf.mxu0
        %1576 = vmatprep.mubr.bf16.mxu0 0
        %1577 = vmatmul.mubr.bf16.gmra.mxu0 %v1517
        %v1578 = vpop.f32.mrf.mxu0
        %v1579 = vadd.f32 %v1200, %v1578
        %v1580 = vpop.f32.mrf.mxu0
        %v1581 = vpop.f32.mrf.mxu0
        %v1582 = vpop.f32.mrf.mxu0
        %1583 = vdwg.mxu0
        %vm1584 = vcmask 326656
        %v1585 = vsel %vm1584, %v1563, -inf
        %1586 = vmax.xlane.f32.xlu0 %v1585
        %v1587 = vpop.xlane.xlu0 %1586
        %v1588 = vsel %vm1584, %v1566, -inf
        %1589 = vmax.xlane.f32.xlu0 %v1588
        %v1590 = vpop.xlane.xlu0 %1589
        %v1591 = vsel %vm1584, %v1571, -inf
        %1592 = vmax.xlane.f32.xlu0 %v1591
        %v1593 = vpop.xlane.xlu0 %1592
        %v1594 = vsel %vm1584, %v1574, -inf
        %1595 = vmax.xlane.f32.xlu0 %v1594
        %v1596 = vpop.xlane.xlu0 %1595
        %v1597 = vsel %vm1584, %v1579, -inf
        %1598 = vmax.xlane.f32.xlu0 %v1597
        %v1599 = vpop.xlane.xlu0 %1598
        %v1600 = vsub.f32 %v1563, %v1587
        %v1601 = vsub.f32 %v1566, %v1590
        %v1602 = vsub.f32 %v1571, %v1593
        %v1603 = vsub.f32 %v1574, %v1596
        %v1604 = vsub.f32 %v1579, %v1599
        %v1605 = vmul.f32 %v1600, 1.442695
        %v1606 = vpow.pop %v1605
        %v1607 = vmul.f32 %v1601, 1.442695
        %v1608 = vpow.pop %v1607
        %v1609 = vmul.f32 %v1602, 1.442695
        %v1610 = vpow.pop %v1609
        %v1611 = vmul.f32 %v1603, 1.442695
        %v1612 = vpow.pop %v1611
        %v1613 = vmul.f32 %v1604, 1.442695
        %v1614 = vpow.pop %v1613
        %v1615 = vsel %vm1584, %v1606, 0.0
        %1616 = vadd.xlane.f32.xlu0 %v1615
        %v1617 = vpop.xlane.xlu0 %1616
        %v1618 = vsel %vm1584, %v1608, 0.0
        %1619 = vadd.xlane.f32.xlu0 %v1618
        %v1620 = vpop.xlane.xlu0 %1619
        %v1621 = vsel %vm1584, %v1610, 0.0
        %1622 = vadd.xlane.f32.xlu0 %v1621
        %v1623 = vpop.xlane.xlu0 %1622
        %v1624 = vsel %vm1584, %v1612, 0.0
        %1625 = vadd.xlane.f32.xlu0 %v1624
        %v1626 = vpop.xlane.xlu0 %1625
        %v1627 = vsel %vm1584, %v1614, 0.0
        %1628 = vadd.xlane.f32.xlu0 %v1627
        %v1629 = vpop.xlane.xlu0 %1628
        %v1630 = vrcp.pop %v1617
        %v1631 = vrcp.pop %v1620
        %v1632 = vrcp.pop %v1623
        %v1633 = vrcp.pop %v1626
        %v1634 = vrcp.pop %v1629
        %v1635 = vmul.f32 %v1606, %v1630
        %v1636 = vmul.f32 %v1608, %v1631
        %v1637 = vmul.f32 %v1610, %v1632
        %v1638 = vmul.f32 %v1612, %v1633
        %v1639 = vmul.f32 %v1614, %v1634
        %v1640 = vpack.c.bf16 %v1636, %v1635
        %v1641 = vpack.c.bf16 %v1638, %v1637
        %v1642 = vpack.c.bf16 %v1639, %v1639
        %v1644 = vsel %vm1584, %v1640, 0
        %v1647 = vsel %vm1584, %v1641, 0
        %v1650 = vsel %vm1584, %v1642, 0
        %vm1652 = vcmask 1043456
        %v1654 = vsel %vm1652, %v1508, 0
        %1656 = vmatprep.subr.bf16.mxu0 0
        %1657 = vmatpush1.bf16.msra.mxu0 0
        %1658 = vmatprep.subr.bf16.mxu0 0
        %1659 = vmatpush1.bf16.msra.mxu0 0
        %1660 = vmatprep.subr.bf16.mxu0 0
        %1661 = vmatpush1.bf16.msra.mxu0 0
        %1662 = vmatprep.subr.bf16.mxu0 0
        %1663 = vmatpush1.bf16.msra.mxu0 0
        %1664 = vmatprep.subr.bf16.mxu0 0
        %1665 = vmatpush1.bf16.msra.mxu0 0
        %1666 = vmatprep.subr.bf16.mxu0 0
        %1667 = vmatpush1.bf16.msra.mxu0 %v1654
        %1668 = vmatprep.subr.bf16.mxu0 0
        %1669 = vmatpush1.bf16.msra.mxu0 %v1507
        %1670 = vmatprep.subr.bf16.mxu0 0
        %1671 = vmatpush1.bf16.msra.mxu0 %v1506
        %1672 = vmatprep.subr.bf16.mxu0 0
        %1673 = vmatpush2.bf16.msra.mxu0 0
        %1674 = vmatprep.subr.bf16.mxu0 0
        %1675 = vmatpush2.bf16.msra.mxu0 0
        %1676 = vmatprep.subr.bf16.mxu0 0
        %1677 = vmatpush2.bf16.msra.mxu0 0
        %1678 = vmatprep.subr.bf16.mxu0 0
        %1679 = vmatpush2.bf16.msra.mxu0 0
        %1680 = vmatprep.subr.bf16.mxu0 0
        %1681 = vmatpush2.bf16.msra.mxu0 0
        %1682 = vmatprep.subr.bf16.mxu0 0
        %1683 = vmatpush2.bf16.msra.mxu0 0
        %1684 = vmatprep.subr.bf16.mxu0 0
        %1685 = vmatpush2.bf16.msra.mxu0 0
        %1686 = vmatprep.subr.bf16.mxu0 0
        %1687 = vmatpush2.bf16.msra.mxu0 0
        %1688 = vmatprep.mubr.bf16.mxu0 0
        %1689 = vmatmul.mubr.bf16.gmra.mxu0 %v1644
        %v1690 = vpop.f32.mrf.mxu0
        %v1691 = vadd.f32 0.0, %v1690
        %v1692 = vpop.f32.mrf.mxu0
        %v1693 = vpop.f32.mrf.mxu0
        %v1694 = vadd.f32 0.0, %v1693
        %v1695 = vpop.f32.mrf.mxu0
        %1696 = vmatprep.mubr.bf16.mxu0 0
        %1697 = vmatmul.mubr.bf16.gmra.mxu0 %v1647
        %v1698 = vpop.f32.mrf.mxu0
        %v1699 = vadd.f32 0.0, %v1698
        %v1700 = vpop.f32.mrf.mxu0
        %v1701 = vpop.f32.mrf.mxu0
        %v1702 = vadd.f32 0.0, %v1701
        %v1703 = vpop.f32.mrf.mxu0
        %1704 = vmatprep.mubr.bf16.mxu0 0
        %1705 = vmatmul.mubr.bf16.gmra.mxu0 %v1650
        %v1706 = vpop.f32.mrf.mxu0
        %v1707 = vadd.f32 0.0, %v1706
        %v1708 = vpop.f32.mrf.mxu0
        %v1709 = vpop.f32.mrf.mxu0
        %v1710 = vpop.f32.mrf.mxu0
        %1711 = vdwg.mxu0
        %1715 = vrot.lane.b32.xlu0 %v1500, 96
        %v1716 = vpop.permute.xlu0 %1715
        %1717 = vrot.lane.b32.xlu0 %v1501, 96
        %v1718 = vpop.permute.xlu0 %1717
        %1719 = vrot.lane.b32.xlu0 %v1502, 96
        %v1720 = vpop.permute.xlu0 %1719
        %1724 = vrot.lane.b32.xlu0 %v1503, 96
        %v1725 = vpop.permute.xlu0 %1724
        %1726 = vrot.lane.b32.xlu0 %v1504, 96
        %v1727 = vpop.permute.xlu0 %1726
        %1728 = vrot.lane.b32.xlu0 %v1505, 96
        %v1729 = vpop.permute.xlu0 %1728
        %v1731 = vsel %vm1509, %v1716, 0
        %v1734 = vsel %vm1509, %v1718, 0
        %v1737 = vsel %vm1509, %v1720, 0
        %v1740 = vsel %vm1509, %v1725, 0
        %v1743 = vsel %vm1509, %v1727, 0
        %v1746 = vsel %vm1509, %v1729, 0
        %1748 = vmatprep.subr.bf16.mxu0 0
        %1749 = vmatpush1.bf16.xpose.msra.mxu0 0
        %1750 = vmatprep.subr.bf16.mxu0 0
        %1751 = vmatpush1.bf16.xpose.msra.mxu0 0
        %1752 = vmatprep.subr.bf16.mxu0 0
        %1753 = vmatpush1.bf16.xpose.msra.mxu0 0
        %1754 = vmatprep.subr.bf16.mxu0 0
        %1755 = vmatpush1.bf16.xpose.msra.mxu0 0
        %1756 = vmatprep.subr.bf16.mxu0 0
        %1757 = vmatpush1.bf16.xpose.msra.mxu0 0
        %1758 = vmatprep.subr.bf16.mxu0 0
        %1759 = vmatpush1.bf16.xpose.msra.mxu0 %v1746
        %1760 = vmatprep.subr.bf16.mxu0 0
        %1761 = vmatpush1.bf16.xpose.msra.mxu0 %v1743
        %1762 = vmatprep.subr.bf16.mxu0 0
        %1763 = vmatpush1.bf16.xpose.msra.mxu0 %v1740
        %1764 = vmatprep.subr.bf16.mxu0 0
        %1765 = vmatpush2.bf16.xpose.msra.mxu0 0
        %1766 = vmatprep.subr.bf16.mxu0 0
        %1767 = vmatpush2.bf16.xpose.msra.mxu0 0
        %1768 = vmatprep.subr.bf16.mxu0 0
        %1769 = vmatpush2.bf16.xpose.msra.mxu0 0
        %1770 = vmatprep.subr.bf16.mxu0 0
        %1771 = vmatpush2.bf16.xpose.msra.mxu0 0
        %1772 = vmatprep.subr.bf16.mxu0 0
        %1773 = vmatpush2.bf16.xpose.msra.mxu0 0
        %1774 = vmatprep.subr.bf16.mxu0 0
        %1775 = vmatpush2.bf16.xpose.msra.mxu0 0
        %1776 = vmatprep.subr.bf16.mxu0 0
        %1777 = vmatpush2.bf16.xpose.msra.mxu0 0
        %1778 = vmatprep.subr.bf16.mxu0 0
        %1779 = vmatpush2.bf16.xpose.msra.mxu0 0
        %1780 = vmatprep.mubr.bf16.mxu0 0
        %1781 = vmatmul.mubr.bf16.gmra.mxu0 %v1731
        %v1782 = vpop.f32.mrf.mxu0
        %v1783 = vadd.f32 %v1196, %v1782
        %v1784 = vpop.f32.mrf.mxu0
        %v1785 = vpop.f32.mrf.mxu0
        %v1786 = vadd.f32 %v1197, %v1785
        %v1787 = vpop.f32.mrf.mxu0
        %1788 = vmatprep.mubr.bf16.mxu0 0
        %1789 = vmatmul.mubr.bf16.gmra.mxu0 %v1734
        %v1790 = vpop.f32.mrf.mxu0
        %v1791 = vadd.f32 %v1198, %v1790
        %v1792 = vpop.f32.mrf.mxu0
        %v1793 = vpop.f32.mrf.mxu0
        %v1794 = vadd.f32 %v1199, %v1793
        %v1795 = vpop.f32.mrf.mxu0
        %1796 = vmatprep.mubr.bf16.mxu0 0
        %1797 = vmatmul.mubr.bf16.gmra.mxu0 %v1737
        %v1798 = vpop.f32.mrf.mxu0
        %v1799 = vadd.f32 %v1200, %v1798
        %v1800 = vpop.f32.mrf.mxu0
        %v1801 = vpop.f32.mrf.mxu0
        %v1802 = vpop.f32.mrf.mxu0
        %1803 = vdwg.mxu0
        %v1804 = vsel %vm1584, %v1783, -inf
        %1805 = vmax.xlane.f32.xlu0 %v1804
        %v1806 = vpop.xlane.xlu0 %1805
        %v1807 = vsel %vm1584, %v1786, -inf
        %1808 = vmax.xlane.f32.xlu0 %v1807
        %v1809 = vpop.xlane.xlu0 %1808
        %v1810 = vsel %vm1584, %v1791, -inf
        %1811 = vmax.xlane.f32.xlu0 %v1810
        %v1812 = vpop.xlane.xlu0 %1811
        %v1813 = vsel %vm1584, %v1794, -inf
        %1814 = vmax.xlane.f32.xlu0 %v1813
        %v1815 = vpop.xlane.xlu0 %1814
        %v1816 = vsel %vm1584, %v1799, -inf
        %1817 = vmax.xlane.f32.xlu0 %v1816
        %v1818 = vpop.xlane.xlu0 %1817
        %v1819 = vsub.f32 %v1783, %v1806
        %v1820 = vsub.f32 %v1786, %v1809
        %v1821 = vsub.f32 %v1791, %v1812
        %v1822 = vsub.f32 %v1794, %v1815
        %v1823 = vsub.f32 %v1799, %v1818
        %v1824 = vmul.f32 %v1819, 1.442695
        %v1825 = vpow.pop %v1824
        %v1826 = vmul.f32 %v1820, 1.442695
        %v1827 = vpow.pop %v1826
        %v1828 = vmul.f32 %v1821, 1.442695
        %v1829 = vpow.pop %v1828
        %v1830 = vmul.f32 %v1822, 1.442695
        %v1831 = vpow.pop %v1830
        %v1832 = vmul.f32 %v1823, 1.442695
        %v1833 = vpow.pop %v1832
        %v1834 = vsel %vm1584, %v1825, 0.0
        %1835 = vadd.xlane.f32.xlu0 %v1834
        %v1836 = vpop.xlane.xlu0 %1835
        %v1837 = vsel %vm1584, %v1827, 0.0
        %1838 = vadd.xlane.f32.xlu0 %v1837
        %v1839 = vpop.xlane.xlu0 %1838
        %v1840 = vsel %vm1584, %v1829, 0.0
        %1841 = vadd.xlane.f32.xlu0 %v1840
        %v1842 = vpop.xlane.xlu0 %1841
        %v1843 = vsel %vm1584, %v1831, 0.0
        %1844 = vadd.xlane.f32.xlu0 %v1843
        %v1845 = vpop.xlane.xlu0 %1844
        %v1846 = vsel %vm1584, %v1833, 0.0
        %1847 = vadd.xlane.f32.xlu0 %v1846
        %v1848 = vpop.xlane.xlu0 %1847
        %v1849 = vrcp.pop %v1836
        %v1850 = vrcp.pop %v1839
        %v1851 = vrcp.pop %v1842
        %v1852 = vrcp.pop %v1845
        %v1853 = vrcp.pop %v1848
        %v1854 = vmul.f32 %v1825, %v1849
        %v1855 = vmul.f32 %v1827, %v1850
        %v1856 = vmul.f32 %v1829, %v1851
        %v1857 = vmul.f32 %v1831, %v1852
        %v1858 = vmul.f32 %v1833, %v1853
        %v1859 = vpack.c.bf16 %v1855, %v1854
        %v1860 = vpack.c.bf16 %v1857, %v1856
        %v1861 = vpack.c.bf16 %v1858, %v1858
        %1865 = vrot.lane.b32.xlu0 %v1506, 96
        %v1866 = vpop.permute.xlu0 %1865
        %1867 = vrot.lane.b32.xlu0 %v1507, 96
        %v1868 = vpop.permute.xlu0 %1867
        %1869 = vrot.lane.b32.xlu0 %v1508, 96
        %v1870 = vpop.permute.xlu0 %1869
        %v1874 = vsel %vm1584, %v1859, 0
        %v1877 = vsel %vm1584, %v1860, 0
        %v1880 = vsel %vm1584, %v1861, 0
        %v1883 = vsel %vm1652, %v1870, 0
        %1885 = vmatprep.subr.bf16.mxu0 0
        %1886 = vmatpush1.bf16.msra.mxu0 0
        %1887 = vmatprep.subr.bf16.mxu0 0
        %1888 = vmatpush1.bf16.msra.mxu0 0
        %1889 = vmatprep.subr.bf16.mxu0 0
        %1890 = vmatpush1.bf16.msra.mxu0 0
        %1891 = vmatprep.subr.bf16.mxu0 0
        %1892 = vmatpush1.bf16.msra.mxu0 0
        %1893 = vmatprep.subr.bf16.mxu0 0
        %1894 = vmatpush1.bf16.msra.mxu0 0
        %1895 = vmatprep.subr.bf16.mxu0 0
        %1896 = vmatpush1.bf16.msra.mxu0 %v1883
        %1897 = vmatprep.subr.bf16.mxu0 0
        %1898 = vmatpush1.bf16.msra.mxu0 %v1868
        %1899 = vmatprep.subr.bf16.mxu0 0
        %1900 = vmatpush1.bf16.msra.mxu0 %v1866
        %1901 = vmatprep.subr.bf16.mxu0 0
        %1902 = vmatpush2.bf16.msra.mxu0 0
        %1903 = vmatprep.subr.bf16.mxu0 0
        %1904 = vmatpush2.bf16.msra.mxu0 0
        %1905 = vmatprep.subr.bf16.mxu0 0
        %1906 = vmatpush2.bf16.msra.mxu0 0
        %1907 = vmatprep.subr.bf16.mxu0 0
        %1908 = vmatpush2.bf16.msra.mxu0 0
        %1909 = vmatprep.subr.bf16.mxu0 0
        %1910 = vmatpush2.bf16.msra.mxu0 0
        %1911 = vmatprep.subr.bf16.mxu0 0
        %1912 = vmatpush2.bf16.msra.mxu0 0
        %1913 = vmatprep.subr.bf16.mxu0 0
        %1914 = vmatpush2.bf16.msra.mxu0 0
        %1915 = vmatprep.subr.bf16.mxu0 0
        %1916 = vmatpush2.bf16.msra.mxu0 0
        %1917 = vmatprep.mubr.bf16.mxu0 0
        %1918 = vmatmul.mubr.bf16.gmra.mxu0 %v1874
        %v1919 = vpop.f32.mrf.mxu0
        %v1920 = vadd.f32 0.0, %v1919
        %v1921 = vpop.f32.mrf.mxu0
        %v1922 = vpop.f32.mrf.mxu0
        %v1923 = vadd.f32 0.0, %v1922
        %v1924 = vpop.f32.mrf.mxu0
        %1925 = vmatprep.mubr.bf16.mxu0 0
        %1926 = vmatmul.mubr.bf16.gmra.mxu0 %v1877
        %v1927 = vpop.f32.mrf.mxu0
        %v1928 = vadd.f32 0.0, %v1927
        %v1929 = vpop.f32.mrf.mxu0
        %v1930 = vpop.f32.mrf.mxu0
        %v1931 = vadd.f32 0.0, %v1930
        %v1932 = vpop.f32.mrf.mxu0
        %1933 = vmatprep.mubr.bf16.mxu0 0
        %1934 = vmatmul.mubr.bf16.gmra.mxu0 %v1880
        %v1935 = vpop.f32.mrf.mxu0
        %v1936 = vadd.f32 0.0, %v1935
        %v1937 = vpop.f32.mrf.mxu0
        %v1938 = vpop.f32.mrf.mxu0
        %v1939 = vpop.f32.mrf.mxu0
        %1940 = vdwg.mxu0
        %1941 = vrot.lane.b32.xlu0 %v1500, 64
        %v1942 = vpop.permute.xlu0 %1941
        %1943 = vrot.lane.b32.xlu0 %v1501, 64
        %v1944 = vpop.permute.xlu0 %1943
        %1945 = vrot.lane.b32.xlu0 %v1502, 64
        %v1946 = vpop.permute.xlu0 %1945
        %1947 = vrot.lane.b32.xlu0 %v1503, 64
        %v1948 = vpop.permute.xlu0 %1947
        %1949 = vrot.lane.b32.xlu0 %v1504, 64
        %v1950 = vpop.permute.xlu0 %1949
        %1951 = vrot.lane.b32.xlu0 %v1505, 64
        %v1952 = vpop.permute.xlu0 %1951
        %v1954 = vsel %vm1509, %v1942, 0
        %v1957 = vsel %vm1509, %v1944, 0
        %v1960 = vsel %vm1509, %v1946, 0
        %v1963 = vsel %vm1509, %v1948, 0
        %v1966 = vsel %vm1509, %v1950, 0
        %v1969 = vsel %vm1509, %v1952, 0
        %1971 = vmatprep.subr.bf16.mxu0 0
        %1972 = vmatpush1.bf16.xpose.msra.mxu0 0
        %1973 = vmatprep.subr.bf16.mxu0 0
        %1974 = vmatpush1.bf16.xpose.msra.mxu0 0
        %1975 = vmatprep.subr.bf16.mxu0 0
        %1976 = vmatpush1.bf16.xpose.msra.mxu0 0
        %1977 = vmatprep.subr.bf16.mxu0 0
        %1978 = vmatpush1.bf16.xpose.msra.mxu0 0
        %1979 = vmatprep.subr.bf16.mxu0 0
        %1980 = vmatpush1.bf16.xpose.msra.mxu0 0
        %1981 = vmatprep.subr.bf16.mxu0 0
        %1982 = vmatpush1.bf16.xpose.msra.mxu0 %v1969
        %1983 = vmatprep.subr.bf16.mxu0 0
        %1984 = vmatpush1.bf16.xpose.msra.mxu0 %v1966
        %1985 = vmatprep.subr.bf16.mxu0 0
        %1986 = vmatpush1.bf16.xpose.msra.mxu0 %v1963
        %1987 = vmatprep.subr.bf16.mxu0 0
        %1988 = vmatpush2.bf16.xpose.msra.mxu0 0
        %1989 = vmatprep.subr.bf16.mxu0 0
        %1990 = vmatpush2.bf16.xpose.msra.mxu0 0
        %1991 = vmatprep.subr.bf16.mxu0 0
        %1992 = vmatpush2.bf16.xpose.msra.mxu0 0
        %1993 = vmatprep.subr.bf16.mxu0 0
        %1994 = vmatpush2.bf16.xpose.msra.mxu0 0
        %1995 = vmatprep.subr.bf16.mxu0 0
        %1996 = vmatpush2.bf16.xpose.msra.mxu0 0
        %1997 = vmatprep.subr.bf16.mxu0 0
        %1998 = vmatpush2.bf16.xpose.msra.mxu0 0
        %1999 = vmatprep.subr.bf16.mxu0 0
        %2000 = vmatpush2.bf16.xpose.msra.mxu0 0
        %2001 = vmatprep.subr.bf16.mxu0 0
        %2002 = vmatpush2.bf16.xpose.msra.mxu0 0
        %2003 = vmatprep.mubr.bf16.mxu0 0
        %2004 = vmatmul.mubr.bf16.gmra.mxu0 %v1954
        %v2005 = vpop.f32.mrf.mxu0
        %v2006 = vadd.f32 %v1196, %v2005
        %v2007 = vpop.f32.mrf.mxu0
        %v2008 = vpop.f32.mrf.mxu0
        %v2009 = vadd.f32 %v1197, %v2008
        %v2010 = vpop.f32.mrf.mxu0
        %2011 = vmatprep.mubr.bf16.mxu0 0
        %2012 = vmatmul.mubr.bf16.gmra.mxu0 %v1957
        %v2013 = vpop.f32.mrf.mxu0
        %v2014 = vadd.f32 %v1198, %v2013
        %v2015 = vpop.f32.mrf.mxu0
        %v2016 = vpop.f32.mrf.mxu0
        %v2017 = vadd.f32 %v1199, %v2016
        %v2018 = vpop.f32.mrf.mxu0
        %2019 = vmatprep.mubr.bf16.mxu0 0
        %2020 = vmatmul.mubr.bf16.gmra.mxu0 %v1960
        %v2021 = vpop.f32.mrf.mxu0
        %v2022 = vadd.f32 %v1200, %v2021
        %v2023 = vpop.f32.mrf.mxu0
        %v2024 = vpop.f32.mrf.mxu0
        %v2025 = vpop.f32.mrf.mxu0
        %2026 = vdwg.mxu0
        %v2027 = vsel %vm1584, %v2006, -inf
        %2028 = vmax.xlane.f32.xlu0 %v2027
        %v2029 = vpop.xlane.xlu0 %2028
        %v2030 = vsel %vm1584, %v2009, -inf
        %2031 = vmax.xlane.f32.xlu0 %v2030
        %v2032 = vpop.xlane.xlu0 %2031
        %v2033 = vsel %vm1584, %v2014, -inf
        %2034 = vmax.xlane.f32.xlu0 %v2033
        %v2035 = vpop.xlane.xlu0 %2034
        %v2036 = vsel %vm1584, %v2017, -inf
        %2037 = vmax.xlane.f32.xlu0 %v2036
        %v2038 = vpop.xlane.xlu0 %2037
        %v2039 = vsel %vm1584, %v2022, -inf
        %2040 = vmax.xlane.f32.xlu0 %v2039
        %v2041 = vpop.xlane.xlu0 %2040
        %v2042 = vsub.f32 %v2006, %v2029
        %v2043 = vsub.f32 %v2009, %v2032
        %v2044 = vsub.f32 %v2014, %v2035
        %v2045 = vsub.f32 %v2017, %v2038
        %v2046 = vsub.f32 %v2022, %v2041
        %v2047 = vmul.f32 %v2042, 1.442695
        %v2048 = vpow.pop %v2047
        %v2049 = vmul.f32 %v2043, 1.442695
        %v2050 = vpow.pop %v2049
        %v2051 = vmul.f32 %v2044, 1.442695
        %v2052 = vpow.pop %v2051
        %v2053 = vmul.f32 %v2045, 1.442695
        %v2054 = vpow.pop %v2053
        %v2055 = vmul.f32 %v2046, 1.442695
        %v2056 = vpow.pop %v2055
        %v2057 = vsel %vm1584, %v2048, 0.0
        %2058 = vadd.xlane.f32.xlu0 %v2057
        %v2059 = vpop.xlane.xlu0 %2058
        %v2060 = vsel %vm1584, %v2050, 0.0
        %2061 = vadd.xlane.f32.xlu0 %v2060
        %v2062 = vpop.xlane.xlu0 %2061
        %v2063 = vsel %vm1584, %v2052, 0.0
        %2064 = vadd.xlane.f32.xlu0 %v2063
        %v2065 = vpop.xlane.xlu0 %2064
        %v2066 = vsel %vm1584, %v2054, 0.0
        %2067 = vadd.xlane.f32.xlu0 %v2066
        %v2068 = vpop.xlane.xlu0 %2067
        %v2069 = vsel %vm1584, %v2056, 0.0
        %2070 = vadd.xlane.f32.xlu0 %v2069
        %v2071 = vpop.xlane.xlu0 %2070
        %v2072 = vrcp.pop %v2059
        %v2073 = vrcp.pop %v2062
        %v2074 = vrcp.pop %v2065
        %v2075 = vrcp.pop %v2068
        %v2076 = vrcp.pop %v2071
        %v2077 = vmul.f32 %v2048, %v2072
        %v2078 = vmul.f32 %v2050, %v2073
        %v2079 = vmul.f32 %v2052, %v2074
        %v2080 = vmul.f32 %v2054, %v2075
        %v2081 = vmul.f32 %v2056, %v2076
        %v2082 = vpack.c.bf16 %v2078, %v2077
        %v2083 = vpack.c.bf16 %v2080, %v2079
        %v2084 = vpack.c.bf16 %v2081, %v2081
        %2085 = vrot.lane.b32.xlu0 %v1506, 64
        %v2086 = vpop.permute.xlu0 %2085
        %2087 = vrot.lane.b32.xlu0 %v1507, 64
        %v2088 = vpop.permute.xlu0 %2087
        %2089 = vrot.lane.b32.xlu0 %v1508, 64
        %v2090 = vpop.permute.xlu0 %2089
        %v2094 = vsel %vm1584, %v2082, 0
        %v2097 = vsel %vm1584, %v2083, 0
        %v2100 = vsel %vm1584, %v2084, 0
        %v2103 = vsel %vm1652, %v2090, 0
        %2105 = vmatprep.subr.bf16.mxu0 0
        %2106 = vmatpush1.bf16.msra.mxu0 0
        %2107 = vmatprep.subr.bf16.mxu0 0
        %2108 = vmatpush1.bf16.msra.mxu0 0
        %2109 = vmatprep.subr.bf16.mxu0 0
        %2110 = vmatpush1.bf16.msra.mxu0 0
        %2111 = vmatprep.subr.bf16.mxu0 0
        %2112 = vmatpush1.bf16.msra.mxu0 0
        %2113 = vmatprep.subr.bf16.mxu0 0
        %2114 = vmatpush1.bf16.msra.mxu0 0
        %2115 = vmatprep.subr.bf16.mxu0 0
        %2116 = vmatpush1.bf16.msra.mxu0 %v2103
        %2117 = vmatprep.subr.bf16.mxu0 0
        %2118 = vmatpush1.bf16.msra.mxu0 %v2088
        %2119 = vmatprep.subr.bf16.mxu0 0
        %2120 = vmatpush1.bf16.msra.mxu0 %v2086
        %2121 = vmatprep.subr.bf16.mxu0 0
        %2122 = vmatpush2.bf16.msra.mxu0 0
        %2123 = vmatprep.subr.bf16.mxu0 0
        %2124 = vmatpush2.bf16.msra.mxu0 0
        %2125 = vmatprep.subr.bf16.mxu0 0
        %2126 = vmatpush2.bf16.msra.mxu0 0
        %2127 = vmatprep.subr.bf16.mxu0 0
        %2128 = vmatpush2.bf16.msra.mxu0 0
        %2129 = vmatprep.subr.bf16.mxu0 0
        %2130 = vmatpush2.bf16.msra.mxu0 0
        %2131 = vmatprep.subr.bf16.mxu0 0
        %2132 = vmatpush2.bf16.msra.mxu0 0
        %2133 = vmatprep.subr.bf16.mxu0 0
        %2134 = vmatpush2.bf16.msra.mxu0 0
        %2135 = vmatprep.subr.bf16.mxu0 0
        %2136 = vmatpush2.bf16.msra.mxu0 0
        %2137 = vmatprep.mubr.bf16.mxu0 0
        %2138 = vmatmul.mubr.bf16.gmra.mxu0 %v2094
        %v2139 = vpop.f32.mrf.mxu0
        %v2140 = vadd.f32 0.0, %v2139
        %v2141 = vpop.f32.mrf.mxu0
        %v2142 = vpop.f32.mrf.mxu0
        %v2143 = vadd.f32 0.0, %v2142
        %v2144 = vpop.f32.mrf.mxu0
        %2145 = vmatprep.mubr.bf16.mxu0 0
        %2146 = vmatmul.mubr.bf16.gmra.mxu0 %v2097
        %v2147 = vpop.f32.mrf.mxu0
        %v2148 = vadd.f32 0.0, %v2147
        %v2149 = vpop.f32.mrf.mxu0
        %v2150 = vpop.f32.mrf.mxu0
        %v2151 = vadd.f32 0.0, %v2150
        %v2152 = vpop.f32.mrf.mxu0
        %2153 = vmatprep.mubr.bf16.mxu0 0
        %2154 = vmatmul.mubr.bf16.gmra.mxu0 %v2100
        %v2155 = vpop.f32.mrf.mxu0
        %v2156 = vadd.f32 0.0, %v2155
        %v2157 = vpop.f32.mrf.mxu0
        %v2158 = vpop.f32.mrf.mxu0
        %v2159 = vpop.f32.mrf.mxu0
        %2160 = vdwg.mxu0
        %2161 = vrot.lane.b32.xlu0 %v1500, 32
        %v2162 = vpop.permute.xlu0 %2161
        %2163 = vrot.lane.b32.xlu0 %v1501, 32
        %v2164 = vpop.permute.xlu0 %2163
        %2165 = vrot.lane.b32.xlu0 %v1502, 32
        %v2166 = vpop.permute.xlu0 %2165
        %2167 = vrot.lane.b32.xlu0 %v1503, 32
        %v2168 = vpop.permute.xlu0 %2167
        %2169 = vrot.lane.b32.xlu0 %v1504, 32
        %v2170 = vpop.permute.xlu0 %2169
        %2171 = vrot.lane.b32.xlu0 %v1505, 32
        %v2172 = vpop.permute.xlu0 %2171
        %v2174 = vsel %vm1509, %v2162, 0
        %v2177 = vsel %vm1509, %v2164, 0
        %v2180 = vsel %vm1509, %v2166, 0
        %v2183 = vsel %vm1509, %v2168, 0
        %v2186 = vsel %vm1509, %v2170, 0
        %v2189 = vsel %vm1509, %v2172, 0
        %2191 = vmatprep.subr.bf16.mxu0 0
        %2192 = vmatpush1.bf16.xpose.msra.mxu0 0
        %2193 = vmatprep.subr.bf16.mxu0 0
        %2194 = vmatpush1.bf16.xpose.msra.mxu0 0
        %2195 = vmatprep.subr.bf16.mxu0 0
        %2196 = vmatpush1.bf16.xpose.msra.mxu0 0
        %2197 = vmatprep.subr.bf16.mxu0 0
        %2198 = vmatpush1.bf16.xpose.msra.mxu0 0
        %2199 = vmatprep.subr.bf16.mxu0 0
        %2200 = vmatpush1.bf16.xpose.msra.mxu0 0
        %2201 = vmatprep.subr.bf16.mxu0 0
        %2202 = vmatpush1.bf16.xpose.msra.mxu0 %v2189
        %2203 = vmatprep.subr.bf16.mxu0 0
        %2204 = vmatpush1.bf16.xpose.msra.mxu0 %v2186
        %2205 = vmatprep.subr.bf16.mxu0 0
        %2206 = vmatpush1.bf16.xpose.msra.mxu0 %v2183
        %2207 = vmatprep.subr.bf16.mxu0 0
        %2208 = vmatpush2.bf16.xpose.msra.mxu0 0
        %2209 = vmatprep.subr.bf16.mxu0 0
        %2210 = vmatpush2.bf16.xpose.msra.mxu0 0
        %2211 = vmatprep.subr.bf16.mxu0 0
        %2212 = vmatpush2.bf16.xpose.msra.mxu0 0
        %2213 = vmatprep.subr.bf16.mxu0 0
        %2214 = vmatpush2.bf16.xpose.msra.mxu0 0
        %2215 = vmatprep.subr.bf16.mxu0 0
        %2216 = vmatpush2.bf16.xpose.msra.mxu0 0
        %2217 = vmatprep.subr.bf16.mxu0 0
        %2218 = vmatpush2.bf16.xpose.msra.mxu0 0
        %2219 = vmatprep.subr.bf16.mxu0 0
        %2220 = vmatpush2.bf16.xpose.msra.mxu0 0
        %2221 = vmatprep.subr.bf16.mxu0 0
        %2222 = vmatpush2.bf16.xpose.msra.mxu0 0
        %2223 = vmatprep.mubr.bf16.mxu0 0
        %2224 = vmatmul.mubr.bf16.gmra.mxu0 %v2174
        %v2225 = vpop.f32.mrf.mxu0
        %v2226 = vadd.f32 %v1196, %v2225
        %v2227 = vpop.f32.mrf.mxu0
        %v2228 = vpop.f32.mrf.mxu0
        %v2229 = vadd.f32 %v1197, %v2228
        %v2230 = vpop.f32.mrf.mxu0
        %2231 = vmatprep.mubr.bf16.mxu0 0
        %2232 = vmatmul.mubr.bf16.gmra.mxu0 %v2177
        %v2233 = vpop.f32.mrf.mxu0
        %v2234 = vadd.f32 %v1198, %v2233
        %v2235 = vpop.f32.mrf.mxu0
        %v2236 = vpop.f32.mrf.mxu0
        %v2237 = vadd.f32 %v1199, %v2236
        %v2238 = vpop.f32.mrf.mxu0
        %2239 = vmatprep.mubr.bf16.mxu0 0
        %2240 = vmatmul.mubr.bf16.gmra.mxu0 %v2180
        %v2241 = vpop.f32.mrf.mxu0
        %v2242 = vadd.f32 %v1200, %v2241
        %v2243 = vpop.f32.mrf.mxu0
        %v2244 = vpop.f32.mrf.mxu0
        %v2245 = vpop.f32.mrf.mxu0
        %2246 = vdwg.mxu0
        %v2247 = vsel %vm1584, %v2226, -inf
        %2248 = vmax.xlane.f32.xlu0 %v2247
        %v2249 = vpop.xlane.xlu0 %2248
        %v2250 = vsel %vm1584, %v2229, -inf
        %2251 = vmax.xlane.f32.xlu0 %v2250
        %v2252 = vpop.xlane.xlu0 %2251
        %v2253 = vsel %vm1584, %v2234, -inf
        %2254 = vmax.xlane.f32.xlu0 %v2253
        %v2255 = vpop.xlane.xlu0 %2254
        %v2256 = vsel %vm1584, %v2237, -inf
        %2257 = vmax.xlane.f32.xlu0 %v2256
        %v2258 = vpop.xlane.xlu0 %2257
        %v2259 = vsel %vm1584, %v2242, -inf
        %2260 = vmax.xlane.f32.xlu0 %v2259
        %v2261 = vpop.xlane.xlu0 %2260
        %v2262 = vsub.f32 %v2226, %v2249
        %v2263 = vsub.f32 %v2229, %v2252
        %v2264 = vsub.f32 %v2234, %v2255
        %v2265 = vsub.f32 %v2237, %v2258
        %v2266 = vsub.f32 %v2242, %v2261
        %v2267 = vmul.f32 %v2262, 1.442695
        %v2268 = vpow.pop %v2267
        %v2269 = vmul.f32 %v2263, 1.442695
        %v2270 = vpow.pop %v2269
        %v2271 = vmul.f32 %v2264, 1.442695
        %v2272 = vpow.pop %v2271
        %v2273 = vmul.f32 %v2265, 1.442695
        %v2274 = vpow.pop %v2273
        %v2275 = vmul.f32 %v2266, 1.442695
        %v2276 = vpow.pop %v2275
        %v2277 = vsel %vm1584, %v2268, 0.0
        %2278 = vadd.xlane.f32.xlu0 %v2277
        %v2279 = vpop.xlane.xlu0 %2278
        %v2280 = vsel %vm1584, %v2270, 0.0
        %2281 = vadd.xlane.f32.xlu0 %v2280
        %v2282 = vpop.xlane.xlu0 %2281
        %v2283 = vsel %vm1584, %v2272, 0.0
        %2284 = vadd.xlane.f32.xlu0 %v2283
        %v2285 = vpop.xlane.xlu0 %2284
        %v2286 = vsel %vm1584, %v2274, 0.0
        %2287 = vadd.xlane.f32.xlu0 %v2286
        %v2288 = vpop.xlane.xlu0 %2287
        %v2289 = vsel %vm1584, %v2276, 0.0
        %2290 = vadd.xlane.f32.xlu0 %v2289
        %v2291 = vpop.xlane.xlu0 %2290
        %v2292 = vrcp.pop %v2279
        %v2293 = vrcp.pop %v2282
        %v2294 = vrcp.pop %v2285
        %v2295 = vrcp.pop %v2288
        %v2296 = vrcp.pop %v2291
        %v2297 = vmul.f32 %v2268, %v2292
        %v2298 = vmul.f32 %v2270, %v2293
        %v2299 = vmul.f32 %v2272, %v2294
        %v2300 = vmul.f32 %v2274, %v2295
        %v2301 = vmul.f32 %v2276, %v2296
        %v2302 = vpack.c.bf16 %v2298, %v2297
        %v2303 = vpack.c.bf16 %v2300, %v2299
        %v2304 = vpack.c.bf16 %v2301, %v2301
        %2305 = vrot.lane.b32.xlu0 %v1506, 32
        %v2306 = vpop.permute.xlu0 %2305
        %2307 = vrot.lane.b32.xlu0 %v1507, 32
        %v2308 = vpop.permute.xlu0 %2307
        %2309 = vrot.lane.b32.xlu0 %v1508, 32
        %v2310 = vpop.permute.xlu0 %2309
        %v2314 = vsel %vm1584, %v2302, 0
        %v2317 = vsel %vm1584, %v2303, 0
        %v2320 = vsel %vm1584, %v2304, 0
        %v2323 = vsel %vm1652, %v2310, 0
        %2325 = vmatprep.subr.bf16.mxu0 0
        %2326 = vmatpush1.bf16.msra.mxu0 0
        %2327 = vmatprep.subr.bf16.mxu0 0
        %2328 = vmatpush1.bf16.msra.mxu0 0
        %2329 = vmatprep.subr.bf16.mxu0 0
        %2330 = vmatpush1.bf16.msra.mxu0 0
        %2331 = vmatprep.subr.bf16.mxu0 0
        %2332 = vmatpush1.bf16.msra.mxu0 0
        %2333 = vmatprep.subr.bf16.mxu0 0
        %2334 = vmatpush1.bf16.msra.mxu0 0
        %2335 = vmatprep.subr.bf16.mxu0 0
        %2336 = vmatpush1.bf16.msra.mxu0 %v2323
        %2337 = vmatprep.subr.bf16.mxu0 0
        %2338 = vmatpush1.bf16.msra.mxu0 %v2308
        %2339 = vmatprep.subr.bf16.mxu0 0
        %2340 = vmatpush1.bf16.msra.mxu0 %v2306
        %2341 = vmatprep.subr.bf16.mxu0 0
        %2342 = vmatpush2.bf16.msra.mxu0 0
        %2343 = vmatprep.subr.bf16.mxu0 0
        %2344 = vmatpush2.bf16.msra.mxu0 0
        %2345 = vmatprep.subr.bf16.mxu0 0
        %2346 = vmatpush2.bf16.msra.mxu0 0
        %2347 = vmatprep.subr.bf16.mxu0 0
        %2348 = vmatpush2.bf16.msra.mxu0 0
        %2349 = vmatprep.subr.bf16.mxu0 0
        %2350 = vmatpush2.bf16.msra.mxu0 0
        %2351 = vmatprep.subr.bf16.mxu0 0
        %2352 = vmatpush2.bf16.msra.mxu0 0
        %2353 = vmatprep.subr.bf16.mxu0 0
        %2354 = vmatpush2.bf16.msra.mxu0 0
        %2355 = vmatprep.subr.bf16.mxu0 0
        %2356 = vmatpush2.bf16.msra.mxu0 0
        %2357 = vmatprep.mubr.bf16.mxu0 0
        %2358 = vmatmul.mubr.bf16.gmra.mxu0 %v2314
        %v2359 = vpop.f32.mrf.mxu0
        %v2360 = vadd.f32 0.0, %v2359
        %v2361 = vpop.f32.mrf.mxu0
        %v2362 = vpop.f32.mrf.mxu0
        %v2363 = vadd.f32 0.0, %v2362
        %v2364 = vpop.f32.mrf.mxu0
        %2365 = vmatprep.mubr.bf16.mxu0 0
        %2366 = vmatmul.mubr.bf16.gmra.mxu0 %v2317
        %v2367 = vpop.f32.mrf.mxu0
        %v2368 = vadd.f32 0.0, %v2367
        %v2369 = vpop.f32.mrf.mxu0
        %v2370 = vpop.f32.mrf.mxu0
        %v2371 = vadd.f32 0.0, %v2370
        %v2372 = vpop.f32.mrf.mxu0
        %2373 = vmatprep.mubr.bf16.mxu0 0
        %2374 = vmatmul.mubr.bf16.gmra.mxu0 %v2320
        %v2375 = vpop.f32.mrf.mxu0
        %v2376 = vadd.f32 0.0, %v2375
        %v2377 = vpop.f32.mrf.mxu0
        %v2378 = vpop.f32.mrf.mxu0
        %v2379 = vpop.f32.mrf.mxu0
        %2380 = vdwg.mxu0
        %2386 = vrot.lane.b32.xlu0 %v1920, 32
        %v2387 = vpop.permute.xlu0 %2386
        %2388 = vrot.lane.b32.xlu0 %v1923, 32
        %v2389 = vpop.permute.xlu0 %2388
        %2390 = vrot.lane.b32.xlu0 %v1928, 32
        %v2391 = vpop.permute.xlu0 %2390
        %2392 = vrot.lane.b32.xlu0 %v1931, 32
        %v2393 = vpop.permute.xlu0 %2392
        %2394 = vrot.lane.b32.xlu0 %v1936, 32
        %v2395 = vpop.permute.xlu0 %2394
        %2406 = vrot.lane.b32.xlu0 %v2140, 64
        %v2407 = vpop.permute.xlu0 %2406
        %2408 = vrot.lane.b32.xlu0 %v2143, 64
        %v2409 = vpop.permute.xlu0 %2408
        %2410 = vrot.lane.b32.xlu0 %v2148, 64
        %v2411 = vpop.permute.xlu0 %2410
        %2412 = vrot.lane.b32.xlu0 %v2151, 64
        %v2413 = vpop.permute.xlu0 %2412
        %2414 = vrot.lane.b32.xlu0 %v2156, 64
        %v2415 = vpop.permute.xlu0 %2414
        %2426 = vrot.lane.b32.xlu0 %v2360, 96
        %v2427 = vpop.permute.xlu0 %2426
        %2428 = vrot.lane.b32.xlu0 %v2363, 96
        %v2429 = vpop.permute.xlu0 %2428
        %2430 = vrot.lane.b32.xlu0 %v2368, 96
        %v2431 = vpop.permute.xlu0 %2430
        %2432 = vrot.lane.b32.xlu0 %v2371, 96
        %v2433 = vpop.permute.xlu0 %2432
        %2434 = vrot.lane.b32.xlu0 %v2376, 96
        %v2435 = vpop.permute.xlu0 %2434
        %v2441 = vsel %vm1509, %v1691, %v2387
        %v2442 = vsel %vm1509, %v1694, %v2389
        %v2443 = vsel %vm1509, %v1699, %v2391
        %v2444 = vsel %vm1509, %v1702, %v2393
        %v2445 = vsel %vm1509, %v1707, %v2395
        %vm2446 = vcmask 523264
        %v2447 = vsel %vm2446, %v2441, %v2407
        %v2448 = vsel %vm2446, %v2442, %v2409
        %v2449 = vsel %vm2446, %v2443, %v2411
        %v2450 = vsel %vm2446, %v2444, %v2413
        %v2451 = vsel %vm2446, %v2445, %v2415
        %vm2452 = vcmask 785408
        %v2453 = vsel %vm2452, %v2447, %v2427
        %v2454 = vsel %vm2452, %v2448, %v2429
        %v2455 = vsel %vm2452, %v2449, %v2431
        %v2456 = vsel %vm2452, %v2450, %v2433
        %v2457 = vsel %vm2452, %v2451, %v2435
        %v2458 = vpack.c.bf16 %v2454, %v2453
        %v2459 = vpack.c.bf16 %v2456, %v2455
        %v2460 = vpack.c.bf16 %v2457, %v2457
        %v2461 = vld [vmem:[%s778] sm:$0xf]
        %v2462 = vld [vmem:[%s778 + $0x4] sm:$0xf]
        %v2463 = vld [vmem:[%s778 + $0x8] sm:$0xf]
        %v2464 = vld [vmem:[%s778 + $0xc] sm:$0xf]
        %v2465 = vld [vmem:[%s778 + $0x10] sm:$0xf]
        %v2466 = vld [vmem:[%s778 + $0x14] sm:$0xf]
        %v2467 = vld [vmem:[%s778 + $0x18] sm:$0xf]
        %v2468 = vld [vmem:[%s778 + $0x1c] sm:$0xf]
        %v2469 = vld [vmem:[%s778 + $0x20] sm:$0xf]
        %v2470 = vld [vmem:[%s778 + $0x24] sm:$0xf]
        %v2471 = vld [vmem:[%s778 + $0x28] sm:$0xf]
        %v2472 = vld [vmem:[%s778 + $0x2c] sm:$0xf]
        %v2473 = vld [vmem:[%s778 + $0x30] sm:$0xf]
        %v2474 = vld [vmem:[%s778 + $0x34] sm:$0xf]
        %v2475 = vld [vmem:[%s778 + $0x38] sm:$0xf]
        %v2476 = vld [vmem:[%s778 + $0x3c] sm:$0xf]
        %v2477 = vld [vmem:[%s926] sm:$0x1]
        %v2479 = vlaneseq
        %v2480 = vshrl.u32 %v2479, 7
        %v2481 = vsub.s32 0, %v2480
        %v2482 = vrot.slane %v2477, %v2481
        %v2500 = vunpack.c.l.b16 %v2461
        %v2501 = vunpack.c.l.b16 %v2462
        %v2502 = vunpack.c.l.b16 %v2463
        %v2503 = vunpack.c.l.b16 %v2464
        %v2504 = vunpack.c.l.b16 %v2465
        %v2505 = vunpack.c.l.b16 %v2466
        %v2506 = vunpack.c.l.b16 %v2467
        %v2507 = vunpack.c.l.b16 %v2468
        %v2508 = vunpack.c.l.b16 %v2469
        %v2509 = vunpack.c.l.b16 %v2470
        %v2510 = vunpack.c.l.b16 %v2471
        %v2511 = vunpack.c.l.b16 %v2472
        %v2512 = vunpack.c.l.b16 %v2473
        %v2513 = vunpack.c.l.b16 %v2474
        %v2514 = vunpack.c.l.b16 %v2475
        %v2515 = vunpack.c.l.b16 %v2476
        %v2516 = vpack.c.b16 %v2501, %v2500
        %v2517 = vpack.c.b16 %v2503, %v2502
        %v2518 = vpack.c.b16 %v2505, %v2504
        %v2519 = vpack.c.b16 %v2507, %v2506
        %v2520 = vpack.c.b16 %v2509, %v2508
        %v2521 = vpack.c.b16 %v2511, %v2510
        %v2522 = vpack.c.b16 %v2513, %v2512
        %v2523 = vpack.c.b16 %v2515, %v2514
        %2532 = vmatprep.subr.bf16.mxu0 0
        %2533 = vmatpush1.bf16.msra.mxu0 %v2523
        %2534 = vmatprep.subr.bf16.mxu0 0
        %2535 = vmatpush1.bf16.msra.mxu0 %v2522
        %2536 = vmatprep.subr.bf16.mxu0 0
        %2537 = vmatpush1.bf16.msra.mxu0 %v2521
        %2538 = vmatprep.subr.bf16.mxu0 0
        %2539 = vmatpush1.bf16.msra.mxu0 %v2520
        %2540 = vmatprep.subr.bf16.mxu0 0
        %2541 = vmatpush1.bf16.msra.mxu0 %v2519
        %2542 = vmatprep.subr.bf16.mxu0 0
        %2543 = vmatpush1.bf16.msra.mxu0 %v2518
        %2544 = vmatprep.subr.bf16.mxu0 0
        %2545 = vmatpush1.bf16.msra.mxu0 %v2517
        %2546 = vmatprep.subr.bf16.mxu0 0
        %2547 = vmatpush1.bf16.msra.mxu0 %v2516
        %2548 = vmatprep.subr.bf16.mxu0 0
        %2549 = vmatpush2.bf16.msra.mxu0 0
        %2550 = vmatprep.subr.bf16.mxu0 0
        %2551 = vmatpush2.bf16.msra.mxu0 0
        %2552 = vmatprep.subr.bf16.mxu0 0
        %2553 = vmatpush2.bf16.msra.mxu0 0
        %2554 = vmatprep.subr.bf16.mxu0 0
        %2555 = vmatpush2.bf16.msra.mxu0 0
        %2556 = vmatprep.subr.bf16.mxu0 0
        %2557 = vmatpush2.bf16.msra.mxu0 0
        %2558 = vmatprep.subr.bf16.mxu0 0
        %2559 = vmatpush2.bf16.msra.mxu0 0
        %2560 = vmatprep.subr.bf16.mxu0 0
        %2561 = vmatpush2.bf16.msra.mxu0 0
        %2562 = vmatprep.subr.bf16.mxu0 0
        %2563 = vmatpush2.bf16.msra.mxu0 0
        %2564 = vmatprep.mubr.bf16.mxu0 0
        %2565 = vmatmul.mubr.bf16.gmra.mxu0 %v2458
        %v2566 = vpop.f32.mrf.mxu0
        %v2567 = vadd.f32 %v2482, %v2566
        %v2568 = vpop.f32.mrf.mxu0
        %v2569 = vpop.f32.mrf.mxu0
        %v2570 = vadd.f32 %v2482, %v2569
        %v2571 = vpop.f32.mrf.mxu0
        %2572 = vmatprep.mubr.bf16.mxu0 0
        %2573 = vmatmul.mubr.bf16.gmra.mxu0 %v2459
        %v2574 = vpop.f32.mrf.mxu0
        %v2575 = vadd.f32 %v2482, %v2574
        %v2576 = vpop.f32.mrf.mxu0
        %v2577 = vpop.f32.mrf.mxu0
        %v2578 = vadd.f32 %v2482, %v2577
        %v2579 = vpop.f32.mrf.mxu0
        %2580 = vmatprep.mubr.bf16.mxu0 0
        %2581 = vmatmul.mubr.bf16.gmra.mxu0 %v2460
        %v2582 = vpop.f32.mrf.mxu0
        %v2583 = vadd.f32 %v2482, %v2582
        %v2584 = vpop.f32.mrf.mxu0
        %v2585 = vpop.f32.mrf.mxu0
        %v2586 = vpop.f32.mrf.mxu0
        %2587 = vdwg.mxu0
        %v2588 = vadd.f32 %v1097, %v2567
        %v2589 = vadd.f32 %v1098, %v2570
        %v2590 = vadd.f32 %v1099, %v2575
        %v2591 = vadd.f32 %v1100, %v2578
        %v2592 = vadd.f32 %v1101, %v2583
        %v2593 = vld [vmem:[%s929] sm:$0x1]
        %v2594 = vld [vmem:[%s932] sm:$0x1]
        %2595 = vadd.xlane.f32.xlu0 %v2588
        %v2596 = vpop.xlane.xlu0 %2595
        %2597 = vadd.xlane.f32.xlu0 %v2589
        %v2598 = vpop.xlane.xlu0 %2597
        %2599 = vadd.xlane.f32.xlu0 %v2590
        %v2600 = vpop.xlane.xlu0 %2599
        %2601 = vadd.xlane.f32.xlu0 %v2591
        %v2602 = vpop.xlane.xlu0 %2601
        %2603 = vadd.xlane.f32.xlu0 %v2592
        %v2604 = vpop.xlane.xlu0 %2603
        %v2605 = vmul.f32 %v2596, 0.03125
        %v2606 = vmul.f32 %v2598, 0.03125
        %v2607 = vmul.f32 %v2600, 0.03125
        %v2608 = vmul.f32 %v2602, 0.03125
        %v2609 = vmul.f32 %v2604, 0.03125
        %v2610 = vmul.f32 %v2588, %v2588
        %v2611 = vmul.f32 %v2589, %v2589
        %v2612 = vmul.f32 %v2590, %v2590
        %v2613 = vmul.f32 %v2591, %v2591
        %v2614 = vmul.f32 %v2592, %v2592
        %2615 = vadd.xlane.f32.xlu0 %v2610
        %v2616 = vpop.xlane.xlu0 %2615
        %2617 = vadd.xlane.f32.xlu0 %v2611
        %v2618 = vpop.xlane.xlu0 %2617
        %2619 = vadd.xlane.f32.xlu0 %v2612
        %v2620 = vpop.xlane.xlu0 %2619
        %2621 = vadd.xlane.f32.xlu0 %v2613
        %v2622 = vpop.xlane.xlu0 %2621
        %2623 = vadd.xlane.f32.xlu0 %v2614
        %v2624 = vpop.xlane.xlu0 %2623
        %v2625 = vmul.f32 %v2616, 0.03125
        %v2626 = vmul.f32 %v2618, 0.03125
        %v2627 = vmul.f32 %v2620, 0.03125
        %v2628 = vmul.f32 %v2622, 0.03125
        %v2629 = vmul.f32 %v2624, 0.03125
        %v2630 = vmul.f32 %v2605, %v2605
        %v2631 = vmul.f32 %v2606, %v2606
        %v2632 = vmul.f32 %v2607, %v2607
        %v2633 = vmul.f32 %v2608, %v2608
        %v2634 = vmul.f32 %v2609, %v2609
        %v2635 = vsub.f32 %v2625, %v2630
        %v2636 = vsub.f32 %v2626, %v2631
        %v2637 = vsub.f32 %v2627, %v2632
        %v2638 = vsub.f32 %v2628, %v2633
        %v2639 = vsub.f32 %v2629, %v2634
        %v2640 = vsub.f32 %v2588, %v2605
        %v2641 = vsub.f32 %v2589, %v2606
        %v2642 = vsub.f32 %v2590, %v2607
        %v2643 = vsub.f32 %v2591, %v2608
        %v2644 = vsub.f32 %v2592, %v2609
        %v2645 = vadd.f32 %v2635, 1e-05
        %v2646 = vadd.f32 %v2636, 1e-05
        %v2647 = vadd.f32 %v2637, 1e-05
        %v2648 = vadd.f32 %v2638, 1e-05
        %v2649 = vadd.f32 %v2639, 1e-05
        %v2650 = vrsqrt.pop %v2645
        %v2651 = vrsqrt.pop %v2646
        %v2652 = vrsqrt.pop %v2647
        %v2653 = vrsqrt.pop %v2648
        %v2654 = vrsqrt.pop %v2649
        %v2655 = vmul.f32 %v2640, %v2650
        %v2656 = vmul.f32 %v2641, %v2651
        %v2657 = vmul.f32 %v2642, %v2652
        %v2658 = vmul.f32 %v2643, %v2653
        %v2659 = vmul.f32 %v2644, %v2654
        %v2661 = vlaneseq
        %v2662 = vshrl.u32 %v2661, 7
        %v2663 = vsub.s32 0, %v2662
        %v2664 = vrot.slane %v2593, %v2663
        %v2666 = vmul.f32 %v2655, %v2664
        %v2667 = vmul.f32 %v2656, %v2664
        %v2668 = vmul.f32 %v2657, %v2664
        %v2669 = vmul.f32 %v2658, %v2664
        %v2670 = vmul.f32 %v2659, %v2664
        %v2672 = vlaneseq
        %v2673 = vshrl.u32 %v2672, 7
        %v2674 = vsub.s32 0, %v2673
        %v2675 = vrot.slane %v2594, %v2674
        %v2677 = vadd.f32 %v2666, %v2675
        %v2678 = vadd.f32 %v2667, %v2675
        %v2679 = vadd.f32 %v2668, %v2675
        %v2680 = vadd.f32 %v2669, %v2675
        %v2681 = vadd.f32 %v2670, %v2675
        %v2682 = vpack.c.bf16 %v2678, %v2677
        %v2683 = vpack.c.bf16 %v2680, %v2679
        %v2684 = vpack.c.bf16 %v2681, %v2681
        %v2685 = vld [vmem:[%s787] sm:$0xf]
        %v2686 = vld [vmem:[%s787 + $0x4] sm:$0xf]
        %v2687 = vld [vmem:[%s787 + $0x8] sm:$0xf]
        %v2688 = vld [vmem:[%s787 + $0xc] sm:$0xf]
        %v2689 = vld [vmem:[%s787 + $0x10] sm:$0xf]
        %v2690 = vld [vmem:[%s787 + $0x14] sm:$0xf]
        %v2691 = vld [vmem:[%s787 + $0x18] sm:$0xf]
        %v2692 = vld [vmem:[%s787 + $0x1c] sm:$0xf]
        %v2693 = vld [vmem:[%s787 + $0x20] sm:$0xf]
        %v2694 = vld [vmem:[%s787 + $0x24] sm:$0xf]
        %v2695 = vld [vmem:[%s787 + $0x28] sm:$0xf]
        %v2696 = vld [vmem:[%s787 + $0x2c] sm:$0xf]
        %v2697 = vld [vmem:[%s787 + $0x30] sm:$0xf]
        %v2698 = vld [vmem:[%s787 + $0x34] sm:$0xf]
        %v2699 = vld [vmem:[%s787 + $0x38] sm:$0xf]
        %v2700 = vld [vmem:[%s787 + $0x3c] sm:$0xf]
        %v2701 = vld [vmem:[%s795] sm:$0x1]
        %v2703 = vlaneseq
        %v2704 = vshrl.u32 %v2703, 7
        %v2705 = vsub.s32 0, %v2704
        %v2706 = vrot.slane %v2701, %v2705
        %v2724 = vunpack.c.l.b16 %v2685
        %v2725 = vunpack.c.l.b16 %v2686
        %v2726 = vunpack.c.l.b16 %v2687
        %v2727 = vunpack.c.l.b16 %v2688
        %v2728 = vunpack.c.l.b16 %v2689
        %v2729 = vunpack.c.l.b16 %v2690
        %v2730 = vunpack.c.l.b16 %v2691
        %v2731 = vunpack.c.l.b16 %v2692
        %v2732 = vunpack.c.l.b16 %v2693
        %v2733 = vunpack.c.l.b16 %v2694
        %v2734 = vunpack.c.l.b16 %v2695
        %v2735 = vunpack.c.l.b16 %v2696
        %v2736 = vunpack.c.l.b16 %v2697
        %v2737 = vunpack.c.l.b16 %v2698
        %v2738 = vunpack.c.l.b16 %v2699
        %v2739 = vunpack.c.l.b16 %v2700
        %v2740 = vpack.c.b16 %v2725, %v2724
        %v2741 = vpack.c.b16 %v2727, %v2726
        %v2742 = vpack.c.b16 %v2729, %v2728
        %v2743 = vpack.c.b16 %v2731, %v2730
        %v2744 = vpack.c.b16 %v2733, %v2732
        %v2745 = vpack.c.b16 %v2735, %v2734
        %v2746 = vpack.c.b16 %v2737, %v2736
        %v2747 = vpack.c.b16 %v2739, %v2738
        %2756 = vmatprep.subr.bf16.mxu0 0
        %2757 = vmatpush1.bf16.msra.mxu0 %v2747
        %2758 = vmatprep.subr.bf16.mxu0 0
        %2759 = vmatpush1.bf16.msra.mxu0 %v2746
        %2760 = vmatprep.subr.bf16.mxu0 0
        %2761 = vmatpush1.bf16.msra.mxu0 %v2745
        %2762 = vmatprep.subr.bf16.mxu0 0
        %2763 = vmatpush1.bf16.msra.mxu0 %v2744
        %2764 = vmatprep.subr.bf16.mxu0 0
        %2765 = vmatpush1.bf16.msra.mxu0 %v2743
        %2766 = vmatprep.subr.bf16.mxu0 0
        %2767 = vmatpush1.bf16.msra.mxu0 %v2742
        %2768 = vmatprep.subr.bf16.mxu0 0
        %2769 = vmatpush1.bf16.msra.mxu0 %v2741
        %2770 = vmatprep.subr.bf16.mxu0 0
        %2771 = vmatpush1.bf16.msra.mxu0 %v2740
        %2772 = vmatprep.subr.bf16.mxu0 0
        %2773 = vmatpush2.bf16.msra.mxu0 0
        %2774 = vmatprep.subr.bf16.mxu0 0
        %2775 = vmatpush2.bf16.msra.mxu0 0
        %2776 = vmatprep.subr.bf16.mxu0 0
        %2777 = vmatpush2.bf16.msra.mxu0 0
        %2778 = vmatprep.subr.bf16.mxu0 0
        %2779 = vmatpush2.bf16.msra.mxu0 0
        %2780 = vmatprep.subr.bf16.mxu0 0
        %2781 = vmatpush2.bf16.msra.mxu0 0
        %2782 = vmatprep.subr.bf16.mxu0 0
        %2783 = vmatpush2.bf16.msra.mxu0 0
        %2784 = vmatprep.subr.bf16.mxu0 0
        %2785 = vmatpush2.bf16.msra.mxu0 0
        %2786 = vmatprep.subr.bf16.mxu0 0
        %2787 = vmatpush2.bf16.msra.mxu0 0
        %2788 = vmatprep.mubr.bf16.mxu0 0
        %2789 = vmatmul.mubr.bf16.gmra.mxu0 %v2682
        %v2790 = vpop.f32.mrf.mxu0
        %v2791 = vadd.f32 %v2706, %v2790
        %v2792 = vpop.f32.mrf.mxu0
        %v2793 = vpop.f32.mrf.mxu0
        %v2794 = vadd.f32 %v2706, %v2793
        %v2795 = vpop.f32.mrf.mxu0
        %2796 = vmatprep.mubr.bf16.mxu0 0
        %2797 = vmatmul.mubr.bf16.gmra.mxu0 %v2683
        %v2798 = vpop.f32.mrf.mxu0
        %v2799 = vadd.f32 %v2706, %v2798
        %v2800 = vpop.f32.mrf.mxu0
        %v2801 = vpop.f32.mrf.mxu0
        %v2802 = vadd.f32 %v2706, %v2801
        %v2803 = vpop.f32.mrf.mxu0
        %2804 = vmatprep.mubr.bf16.mxu0 0
        %2805 = vmatmul.mubr.bf16.gmra.mxu0 %v2684
        %v2806 = vpop.f32.mrf.mxu0
        %v2807 = vadd.f32 %v2706, %v2806
        %v2808 = vpop.f32.mrf.mxu0
        %v2809 = vpop.f32.mrf.mxu0
        %v2810 = vpop.f32.mrf.mxu0
        %2811 = vdwg.mxu0
        %v2812 = vmax.f32 %v2791, 0.0
        %v2813 = vmax.f32 %v2794, 0.0
        %v2814 = vmax.f32 %v2799, 0.0
        %v2815 = vmax.f32 %v2802, 0.0
        %v2816 = vmax.f32 %v2807, 0.0
        %v2817 = vpack.c.bf16 %v2813, %v2812
        %v2818 = vpack.c.bf16 %v2815, %v2814
        %v2819 = vpack.c.bf16 %v2816, %v2816
        %v2820 = vld [vmem:[%s804] sm:$0xf]
        %v2821 = vld [vmem:[%s804 + $0x4] sm:$0xf]
        %v2822 = vld [vmem:[%s804 + $0x8] sm:$0xf]
        %v2823 = vld [vmem:[%s804 + $0xc] sm:$0xf]
        %v2824 = vld [vmem:[%s804 + $0x10] sm:$0xf]
        %v2825 = vld [vmem:[%s804 + $0x14] sm:$0xf]
        %v2826 = vld [vmem:[%s804 + $0x18] sm:$0xf]
        %v2827 = vld [vmem:[%s804 + $0x1c] sm:$0xf]
        %v2828 = vld [vmem:[%s804 + $0x20] sm:$0xf]
        %v2829 = vld [vmem:[%s804 + $0x24] sm:$0xf]
        %v2830 = vld [vmem:[%s804 + $0x28] sm:$0xf]
        %v2831 = vld [vmem:[%s804 + $0x2c] sm:$0xf]
        %v2832 = vld [vmem:[%s804 + $0x30] sm:$0xf]
        %v2833 = vld [vmem:[%s804 + $0x34] sm:$0xf]
        %v2834 = vld [vmem:[%s804 + $0x38] sm:$0xf]
        %v2835 = vld [vmem:[%s804 + $0x3c] sm:$0xf]
        %v2836 = vld [vmem:[%s812] sm:$0x1]
        %v2838 = vlaneseq
        %v2839 = vshrl.u32 %v2838, 7
        %v2840 = vsub.s32 0, %v2839
        %v2841 = vrot.slane %v2836, %v2840
        %v2859 = vunpack.c.l.b16 %v2820
        %v2860 = vunpack.c.l.b16 %v2821
        %v2861 = vunpack.c.l.b16 %v2822
        %v2862 = vunpack.c.l.b16 %v2823
        %v2863 = vunpack.c.l.b16 %v2824
        %v2864 = vunpack.c.l.b16 %v2825
        %v2865 = vunpack.c.l.b16 %v2826
        %v2866 = vunpack.c.l.b16 %v2827
        %v2867 = vunpack.c.l.b16 %v2828
        %v2868 = vunpack.c.l.b16 %v2829
        %v2869 = vunpack.c.l.b16 %v2830
        %v2870 = vunpack.c.l.b16 %v2831
        %v2871 = vunpack.c.l.b16 %v2832
        %v2872 = vunpack.c.l.b16 %v2833
        %v2873 = vunpack.c.l.b16 %v2834
        %v2874 = vunpack.c.l.b16 %v2835
        %v2875 = vpack.c.b16 %v2860, %v2859
        %v2876 = vpack.c.b16 %v2862, %v2861
        %v2877 = vpack.c.b16 %v2864, %v2863
        %v2878 = vpack.c.b16 %v2866, %v2865
        %v2879 = vpack.c.b16 %v2868, %v2867
        %v2880 = vpack.c.b16 %v2870, %v2869
        %v2881 = vpack.c.b16 %v2872, %v2871
        %v2882 = vpack.c.b16 %v2874, %v2873
        %2891 = vmatprep.subr.bf16.mxu0 0
        %2892 = vmatpush1.bf16.msra.mxu0 %v2882
        %2893 = vmatprep.subr.bf16.mxu0 0
        %2894 = vmatpush1.bf16.msra.mxu0 %v2881
        %2895 = vmatprep.subr.bf16.mxu0 0
        %2896 = vmatpush1.bf16.msra.mxu0 %v2880
        %2897 = vmatprep.subr.bf16.mxu0 0
        %2898 = vmatpush1.bf16.msra.mxu0 %v2879
        %2899 = vmatprep.subr.bf16.mxu0 0
        %2900 = vmatpush1.bf16.msra.mxu0 %v2878
        %2901 = vmatprep.subr.bf16.mxu0 0
        %2902 = vmatpush1.bf16.msra.mxu0 %v2877
        %2903 = vmatprep.subr.bf16.mxu0 0
        %2904 = vmatpush1.bf16.msra.mxu0 %v2876
        %2905 = vmatprep.subr.bf16.mxu0 0
        %2906 = vmatpush1.bf16.msra.mxu0 %v2875
        %2907 = vmatprep.subr.bf16.mxu0 0
        %2908 = vmatpush2.bf16.msra.mxu0 0
        %2909 = vmatprep.subr.bf16.mxu0 0
        %2910 = vmatpush2.bf16.msra.mxu0 0
        %2911 = vmatprep.subr.bf16.mxu0 0
        %2912 = vmatpush2.bf16.msra.mxu0 0
        %2913 = vmatprep.subr.bf16.mxu0 0
        %2914 = vmatpush2.bf16.msra.mxu0 0
        %2915 = vmatprep.subr.bf16.mxu0 0
        %2916 = vmatpush2.bf16.msra.mxu0 0
        %2917 = vmatprep.subr.bf16.mxu0 0
        %2918 = vmatpush2.bf16.msra.mxu0 0
        %2919 = vmatprep.subr.bf16.mxu0 0
        %2920 = vmatpush2.bf16.msra.mxu0 0
        %2921 = vmatprep.subr.bf16.mxu0 0
        %2922 = vmatpush2.bf16.msra.mxu0 0
        %2923 = vmatprep.mubr.bf16.mxu0 0
        %2924 = vmatmul.mubr.bf16.gmra.mxu0 %v2817
        %v2925 = vpop.f32.mrf.mxu0
        %v2926 = vadd.f32 %v2841, %v2925
        %v2927 = vpop.f32.mrf.mxu0
        %v2928 = vpop.f32.mrf.mxu0
        %v2929 = vadd.f32 %v2841, %v2928
        %v2930 = vpop.f32.mrf.mxu0
        %2931 = vmatprep.mubr.bf16.mxu0 0
        %2932 = vmatmul.mubr.bf16.gmra.mxu0 %v2818
        %v2933 = vpop.f32.mrf.mxu0
        %v2934 = vadd.f32 %v2841, %v2933
        %v2935 = vpop.f32.mrf.mxu0
        %v2936 = vpop.f32.mrf.mxu0
        %v2937 = vadd.f32 %v2841, %v2936
        %v2938 = vpop.f32.mrf.mxu0
        %2939 = vmatprep.mubr.bf16.mxu0 0
        %2940 = vmatmul.mubr.bf16.gmra.mxu0 %v2819
        %v2941 = vpop.f32.mrf.mxu0
        %v2942 = vadd.f32 %v2841, %v2941
        %v2943 = vpop.f32.mrf.mxu0
        %v2944 = vpop.f32.mrf.mxu0
        %v2945 = vpop.f32.mrf.mxu0
        %2946 = vdwg.mxu0
        %v2947 = vadd.f32 %v2677, %v2926
        %v2948 = vadd.f32 %v2678, %v2929
        %v2949 = vadd.f32 %v2679, %v2934
        %v2950 = vadd.f32 %v2680, %v2937
        %v2951 = vadd.f32 %v2681, %v2942
        %v2952 = vld [vmem:[%s935] sm:$0x1]
        %v2953 = vld [vmem:[%s938] sm:$0x1]
        %2954 = vadd.xlane.f32.xlu0 %v2947
        %v2955 = vpop.xlane.xlu0 %2954
        %2956 = vadd.xlane.f32.xlu0 %v2948
        %v2957 = vpop.xlane.xlu0 %2956
        %2958 = vadd.xlane.f32.xlu0 %v2949
        %v2959 = vpop.xlane.xlu0 %2958
        %2960 = vadd.xlane.f32.xlu0 %v2950
        %v2961 = vpop.xlane.xlu0 %2960
        %2962 = vadd.xlane.f32.xlu0 %v2951
        %v2963 = vpop.xlane.xlu0 %2962
        %v2964 = vmul.f32 %v2955, 0.03125
        %v2965 = vmul.f32 %v2957, 0.03125
        %v2966 = vmul.f32 %v2959, 0.03125
        %v2967 = vmul.f32 %v2961, 0.03125
        %v2968 = vmul.f32 %v2963, 0.03125
        %v2969 = vmul.f32 %v2947, %v2947
        %v2970 = vmul.f32 %v2948, %v2948
        %v2971 = vmul.f32 %v2949, %v2949
        %v2972 = vmul.f32 %v2950, %v2950
        %v2973 = vmul.f32 %v2951, %v2951
        %2974 = vadd.xlane.f32.xlu0 %v2969
        %v2975 = vpop.xlane.xlu0 %2974
        %2976 = vadd.xlane.f32.xlu0 %v2970
        %v2977 = vpop.xlane.xlu0 %2976
        %2978 = vadd.xlane.f32.xlu0 %v2971
        %v2979 = vpop.xlane.xlu0 %2978
        %2980 = vadd.xlane.f32.xlu0 %v2972
        %v2981 = vpop.xlane.xlu0 %2980
        %2982 = vadd.xlane.f32.xlu0 %v2973
        %v2983 = vpop.xlane.xlu0 %2982
        %v2984 = vmul.f32 %v2975, 0.03125
        %v2985 = vmul.f32 %v2977, 0.03125
        %v2986 = vmul.f32 %v2979, 0.03125
        %v2987 = vmul.f32 %v2981, 0.03125
        %v2988 = vmul.f32 %v2983, 0.03125
        %v2989 = vmul.f32 %v2964, %v2964
        %v2990 = vmul.f32 %v2965, %v2965
        %v2991 = vmul.f32 %v2966, %v2966
        %v2992 = vmul.f32 %v2967, %v2967
        %v2993 = vmul.f32 %v2968, %v2968
        %v2994 = vsub.f32 %v2984, %v2989
        %v2995 = vsub.f32 %v2985, %v2990
        %v2996 = vsub.f32 %v2986, %v2991
        %v2997 = vsub.f32 %v2987, %v2992
        %v2998 = vsub.f32 %v2988, %v2993
        %v2999 = vsub.f32 %v2947, %v2964
        %v3000 = vsub.f32 %v2948, %v2965
        %v3001 = vsub.f32 %v2949, %v2966
        %v3002 = vsub.f32 %v2950, %v2967
        %v3003 = vsub.f32 %v2951, %v2968
        %v3004 = vadd.f32 %v2994, 1e-05
        %v3005 = vadd.f32 %v2995, 1e-05
        %v3006 = vadd.f32 %v2996, 1e-05
        %v3007 = vadd.f32 %v2997, 1e-05
        %v3008 = vadd.f32 %v2998, 1e-05
        %v3009 = vrsqrt.pop %v3004
        %v3010 = vrsqrt.pop %v3005
        %v3011 = vrsqrt.pop %v3006
        %v3012 = vrsqrt.pop %v3007
        %v3013 = vrsqrt.pop %v3008
        %v3014 = vmul.f32 %v2999, %v3009
        %v3015 = vmul.f32 %v3000, %v3010
        %v3016 = vmul.f32 %v3001, %v3011
        %v3017 = vmul.f32 %v3002, %v3012
        %v3018 = vmul.f32 %v3003, %v3013
        %v3020 = vlaneseq
        %v3021 = vshrl.u32 %v3020, 7
        %v3022 = vsub.s32 0, %v3021
        %v3023 = vrot.slane %v2952, %v3022
        %v3025 = vmul.f32 %v3014, %v3023
        %v3026 = vmul.f32 %v3015, %v3023
        %v3027 = vmul.f32 %v3016, %v3023
        %v3028 = vmul.f32 %v3017, %v3023
        %v3029 = vmul.f32 %v3018, %v3023
        %v3031 = vlaneseq
        %v3032 = vshrl.u32 %v3031, 7
        %v3033 = vsub.s32 0, %v3032
        %v3034 = vrot.slane %v2953, %v3033
        %v3036 = vadd.f32 %v3025, %v3034
        %v3037 = vadd.f32 %v3026, %v3034
        %v3038 = vadd.f32 %v3027, %v3034
        %v3039 = vadd.f32 %v3028, %v3034
        %v3040 = vadd.f32 %v3029, %v3034
        %3041 = vst [vmem:[#allocation2] sm:$0xff] %v3036
        %3042 = vst [vmem:[#allocation2 + $0x8] sm:$0xff] %v3037
        %3043 = vst [vmem:[#allocation2 + $0x10] sm:$0xff] %v3038
        %3044 = vst [vmem:[#allocation2 + $0x18] sm:$0xff] %v3039
        %3045 = vst [vmem:[#allocation2 + $0x20] sm:$0xff] %v3040
        %p3046 = scmp.eq.s32.totalorder %s42, 1
        // Predicated region
        $region145: #{transformer_forward.1} parent=95 // pred_check
          %p3047 = pneg %p3046
        $region146: #{transformer_forward.1} parent=95 // pred_check_branch
          %3049 = sbr.rel (%p3047) target = $region148
        $region147: #{transformer_forward.1} parent=95 // pred_region
          %v3050 = vld [vmem:[#allocation14] sm:$0x1]
          %v3051 = vld [vmem:[#allocation16] sm:$0x1]
          %3052 = vadd.xlane.f32.xlu0 %v3036
          %v3053 = vpop.xlane.xlu0 %3052
          %3054 = vadd.xlane.f32.xlu0 %v3037
          %v3055 = vpop.xlane.xlu0 %3054
          %3056 = vadd.xlane.f32.xlu0 %v3038
          %v3057 = vpop.xlane.xlu0 %3056
          %3058 = vadd.xlane.f32.xlu0 %v3039
          %v3059 = vpop.xlane.xlu0 %3058
          %3060 = vadd.xlane.f32.xlu0 %v3040
          %v3061 = vpop.xlane.xlu0 %3060
          %v3062 = vmul.f32 %v3053, 0.03125
          %v3063 = vmul.f32 %v3055, 0.03125
          %v3064 = vmul.f32 %v3057, 0.03125
          %v3065 = vmul.f32 %v3059, 0.03125
          %v3066 = vmul.f32 %v3061, 0.03125
          %v3067 = vmul.f32 %v3036, %v3036
          %v3068 = vmul.f32 %v3037, %v3037
          %v3069 = vmul.f32 %v3038, %v3038
          %v3070 = vmul.f32 %v3039, %v3039
          %v3071 = vmul.f32 %v3040, %v3040
          %3072 = vadd.xlane.f32.xlu0 %v3067
          %v3073 = vpop.xlane.xlu0 %3072
          %3074 = vadd.xlane.f32.xlu0 %v3068
          %v3075 = vpop.xlane.xlu0 %3074
          %3076 = vadd.xlane.f32.xlu0 %v3069
          %v3077 = vpop.xlane.xlu0 %3076
          %3078 = vadd.xlane.f32.xlu0 %v3070
          %v3079 = vpop.xlane.xlu0 %3078
          %3080 = vadd.xlane.f32.xlu0 %v3071
          %v3081 = vpop.xlane.xlu0 %3080
          %v3082 = vmul.f32 %v3073, 0.03125
          %v3083 = vmul.f32 %v3075, 0.03125
          %v3084 = vmul.f32 %v3077, 0.03125
          %v3085 = vmul.f32 %v3079, 0.03125
          %v3086 = vmul.f32 %v3081, 0.03125
          %v3087 = vmul.f32 %v3062, %v3062
          %v3088 = vmul.f32 %v3063, %v3063
          %v3089 = vmul.f32 %v3064, %v3064
          %v3090 = vmul.f32 %v3065, %v3065
          %v3091 = vmul.f32 %v3066, %v3066
          %v3092 = vsub.f32 %v3082, %v3087
          %v3093 = vsub.f32 %v3083, %v3088
          %v3094 = vsub.f32 %v3084, %v3089
          %v3095 = vsub.f32 %v3085, %v3090
          %v3096 = vsub.f32 %v3086, %v3091
          %v3097 = vsub.f32 %v3036, %v3062
          %v3098 = vsub.f32 %v3037, %v3063
          %v3099 = vsub.f32 %v3038, %v3064
          %v3100 = vsub.f32 %v3039, %v3065
          %v3101 = vsub.f32 %v3040, %v3066
          %v3102 = vadd.f32 %v3092, 1e-05
          %v3103 = vadd.f32 %v3093, 1e-05
          %v3104 = vadd.f32 %v3094, 1e-05
          %v3105 = vadd.f32 %v3095, 1e-05
          %v3106 = vadd.f32 %v3096, 1e-05
          %v3107 = vrsqrt.pop %v3102
          %v3108 = vrsqrt.pop %v3103
          %v3109 = vrsqrt.pop %v3104
          %v3110 = vrsqrt.pop %v3105
          %v3111 = vrsqrt.pop %v3106
          %v3112 = vmul.f32 %v3097, %v3107
          %v3113 = vmul.f32 %v3098, %v3108
          %v3114 = vmul.f32 %v3099, %v3109
          %v3115 = vmul.f32 %v3100, %v3110
          %v3116 = vmul.f32 %v3101, %v3111
          %v3118 = vlaneseq
          %v3119 = vshrl.u32 %v3118, 7
          %v3120 = vsub.s32 0, %v3119
          %v3121 = vrot.slane %v3050, %v3120
          %v3123 = vmul.f32 %v3112, %v3121
          %v3124 = vmul.f32 %v3113, %v3121
          %v3125 = vmul.f32 %v3114, %v3121
          %v3126 = vmul.f32 %v3115, %v3121
          %v3127 = vmul.f32 %v3116, %v3121
          %v3129 = vlaneseq
          %v3130 = vshrl.u32 %v3129, 7
          %v3131 = vsub.s32 0, %v3130
          %v3132 = vrot.slane %v3051, %v3131
          %v3134 = vadd.f32 %v3123, %v3132
          %v3135 = vadd.f32 %v3124, %v3132
          %v3136 = vadd.f32 %v3125, %v3132
          %v3137 = vadd.f32 %v3126, %v3132
          %v3138 = vadd.f32 %v3127, %v3132
          %v3139 = vpack.c.bf16 %v3135, %v3134
          %v3140 = vpack.c.bf16 %v3137, %v3136
          %v3141 = vpack.c.bf16 %v3138, %v3138
          %v3142 = vld [vmem:[#allocation19] sm:$0x1]
          %v3144 = vlaneseq
          %v3145 = vshrl.u32 %v3144, 7
          %v3146 = vsub.s32 0, %v3145
          %v3147 = vrot.slane %v3142, %v3146
          %v3149 = vadd.f32 %v3147, 0.0
          %v3150 = vld [vmem:[#allocation17] sm:$0xf]
          %v3151 = vld [vmem:[#allocation17 + $0x4] sm:$0xf]
          %v3152 = vld [vmem:[#allocation17 + $0x8] sm:$0xf]
          %v3153 = vld [vmem:[#allocation17 + $0xc] sm:$0xf]
          %v3154 = vld [vmem:[#allocation17 + $0x10] sm:$0xf]
          %v3155 = vld [vmem:[#allocation17 + $0x14] sm:$0xf]
          %v3156 = vld [vmem:[#allocation17 + $0x18] sm:$0xf]
          %v3157 = vld [vmem:[#allocation17 + $0x1c] sm:$0xf]
          %v3158 = vld [vmem:[#allocation17 + $0x20] sm:$0xf]
          %v3159 = vld [vmem:[#allocation17 + $0x24] sm:$0xf]
          %v3160 = vld [vmem:[#allocation17 + $0x28] sm:$0xf]
          %v3161 = vld [vmem:[#allocation17 + $0x2c] sm:$0xf]
          %v3162 = vld [vmem:[#allocation17 + $0x30] sm:$0xf]
          %v3163 = vld [vmem:[#allocation17 + $0x34] sm:$0xf]
          %v3164 = vld [vmem:[#allocation17 + $0x38] sm:$0xf]
          %v3165 = vld [vmem:[#allocation17 + $0x3c] sm:$0xf]
          %v3182 = vunpack.c.l.b16 %v3150
          %v3183 = vunpack.c.l.b16 %v3151
          %v3184 = vunpack.c.l.b16 %v3152
          %v3185 = vunpack.c.l.b16 %v3153
          %v3186 = vunpack.c.l.b16 %v3154
          %v3187 = vunpack.c.l.b16 %v3155
          %v3188 = vunpack.c.l.b16 %v3156
          %v3189 = vunpack.c.l.b16 %v3157
          %v3190 = vunpack.c.l.b16 %v3158
          %v3191 = vunpack.c.l.b16 %v3159
          %v3192 = vunpack.c.l.b16 %v3160
          %v3193 = vunpack.c.l.b16 %v3161
          %v3194 = vunpack.c.l.b16 %v3162
          %v3195 = vunpack.c.l.b16 %v3163
          %v3196 = vunpack.c.l.b16 %v3164
          %v3197 = vunpack.c.l.b16 %v3165
          %v3198 = vpack.c.b16 %v3183, %v3182
          %v3199 = vpack.c.b16 %v3185, %v3184
          %v3200 = vpack.c.b16 %v3187, %v3186
          %v3201 = vpack.c.b16 %v3189, %v3188
          %v3202 = vpack.c.b16 %v3191, %v3190
          %v3203 = vpack.c.b16 %v3193, %v3192
          %v3204 = vpack.c.b16 %v3195, %v3194
          %v3205 = vpack.c.b16 %v3197, %v3196
          %3214 = vmatprep.subr.bf16.mxu0 0
          %3215 = vmatpush1.bf16.msra.mxu0 %v3205
          %3216 = vmatprep.subr.bf16.mxu0 0
          %3217 = vmatpush1.bf16.msra.mxu0 %v3204
          %3218 = vmatprep.subr.bf16.mxu0 0
          %3219 = vmatpush1.bf16.msra.mxu0 %v3203
          %3220 = vmatprep.subr.bf16.mxu0 0
          %3221 = vmatpush1.bf16.msra.mxu0 %v3202
          %3222 = vmatprep.subr.bf16.mxu0 0
          %3223 = vmatpush1.bf16.msra.mxu0 %v3201
          %3224 = vmatprep.subr.bf16.mxu0 0
          %3225 = vmatpush1.bf16.msra.mxu0 %v3200
          %3226 = vmatprep.subr.bf16.mxu0 0
          %3227 = vmatpush1.bf16.msra.mxu0 %v3199
          %3228 = vmatprep.subr.bf16.mxu0 0
          %3229 = vmatpush1.bf16.msra.mxu0 %v3198
          %3230 = vmatprep.subr.bf16.mxu0 0
          %3231 = vmatpush2.bf16.msra.mxu0 0
          %3232 = vmatprep.subr.bf16.mxu0 0
          %3233 = vmatpush2.bf16.msra.mxu0 0
          %3234 = vmatprep.subr.bf16.mxu0 0
          %3235 = vmatpush2.bf16.msra.mxu0 0
          %3236 = vmatprep.subr.bf16.mxu0 0
          %3237 = vmatpush2.bf16.msra.mxu0 0
          %3238 = vmatprep.subr.bf16.mxu0 0
          %3239 = vmatpush2.bf16.msra.mxu0 0
          %3240 = vmatprep.subr.bf16.mxu0 0
          %3241 = vmatpush2.bf16.msra.mxu0 0
          %3242 = vmatprep.subr.bf16.mxu0 0
          %3243 = vmatpush2.bf16.msra.mxu0 0
          %3244 = vmatprep.subr.bf16.mxu0 0
          %3245 = vmatpush2.bf16.msra.mxu0 0
          %3246 = vmatprep.mubr.bf16.mxu0 0
          %3247 = vmatmul.mubr.bf16.gmra.mxu0 %v3139
          %v3248 = vpop.f32.mrf.mxu0
          %v3249 = vadd.f32 0.0, %v3248
          %v3250 = vpop.f32.mrf.mxu0
          %v3251 = vpop.f32.mrf.mxu0
          %v3252 = vpop.f32.mrf.mxu0
          %3253 = vdwg.mxu0
          %v3254 = vadd.f32 %v3149, %v3249
          %s3255 = scalar_lea.vmem [#allocation17], 64
          %v3256 = vld [vmem:[%s3255] sm:$0xf]
          %v3257 = vld [vmem:[%s3255 + $0x4] sm:$0xf]
          %v3258 = vld [vmem:[%s3255 + $0x8] sm:$0xf]
          %v3259 = vld [vmem:[%s3255 + $0xc] sm:$0xf]
          %v3260 = vld [vmem:[%s3255 + $0x10] sm:$0xf]
          %v3261 = vld [vmem:[%s3255 + $0x14] sm:$0xf]
          %v3262 = vld [vmem:[%s3255 + $0x18] sm:$0xf]
          %v3263 = vld [vmem:[%s3255 + $0x1c] sm:$0xf]
          %v3264 = vld [vmem:[%s3255 + $0x20] sm:$0xf]
          %v3265 = vld [vmem:[%s3255 + $0x24] sm:$0xf]
          %v3266 = vld [vmem:[%s3255 + $0x28] sm:$0xf]
          %v3267 = vld [vmem:[%s3255 + $0x2c] sm:$0xf]
          %v3268 = vld [vmem:[%s3255 + $0x30] sm:$0xf]
          %v3269 = vld [vmem:[%s3255 + $0x34] sm:$0xf]
          %v3270 = vld [vmem:[%s3255 + $0x38] sm:$0xf]
          %v3271 = vld [vmem:[%s3255 + $0x3c] sm:$0xf]
          %v3273 = vrot.slane %v3139, 4
          %v3291 = vunpack.c.l.b16 %v3256
          %v3292 = vunpack.c.l.b16 %v3257
          %v3293 = vunpack.c.l.b16 %v3258
          %v3294 = vunpack.c.l.b16 %v3259
          %v3295 = vunpack.c.l.b16 %v3260
          %v3296 = vunpack.c.l.b16 %v3261
          %v3297 = vunpack.c.l.b16 %v3262
          %v3298 = vunpack.c.l.b16 %v3263
          %v3299 = vunpack.c.l.b16 %v3264
          %v3300 = vunpack.c.l.b16 %v3265
          %v3301 = vunpack.c.l.b16 %v3266
          %v3302 = vunpack.c.l.b16 %v3267
          %v3303 = vunpack.c.l.b16 %v3268
          %v3304 = vunpack.c.l.b16 %v3269
          %v3305 = vunpack.c.l.b16 %v3270
          %v3306 = vunpack.c.l.b16 %v3271
          %v3307 = vpack.c.b16 %v3292, %v3291
          %v3308 = vpack.c.b16 %v3294, %v3293
          %v3309 = vpack.c.b16 %v3296, %v3295
          %v3310 = vpack.c.b16 %v3298, %v3297
          %v3311 = vpack.c.b16 %v3300, %v3299
          %v3312 = vpack.c.b16 %v3302, %v3301
          %v3313 = vpack.c.b16 %v3304, %v3303
          %v3314 = vpack.c.b16 %v3306, %v3305
          %3323 = vmatprep.subr.bf16.mxu0 0
          %3324 = vmatpush1.bf16.msra.mxu0 %v3314
          %3325 = vmatprep.subr.bf16.mxu0 0
          %3326 = vmatpush1.bf16.msra.mxu0 %v3313
          %3327 = vmatprep.subr.bf16.mxu0 0
          %3328 = vmatpush1.bf16.msra.mxu0 %v3312
          %3329 = vmatprep.subr.bf16.mxu0 0
          %3330 = vmatpush1.bf16.msra.mxu0 %v3311
          %3331 = vmatprep.subr.bf16.mxu0 0
          %3332 = vmatpush1.bf16.msra.mxu0 %v3310
          %3333 = vmatprep.subr.bf16.mxu0 0
          %3334 = vmatpush1.bf16.msra.mxu0 %v3309
          %3335 = vmatprep.subr.bf16.mxu0 0
          %3336 = vmatpush1.bf16.msra.mxu0 %v3308
          %3337 = vmatprep.subr.bf16.mxu0 0
          %3338 = vmatpush1.bf16.msra.mxu0 %v3307
          %3339 = vmatprep.subr.bf16.mxu0 0
          %3340 = vmatpush2.bf16.msra.mxu0 0
          %3341 = vmatprep.subr.bf16.mxu0 0
          %3342 = vmatpush2.bf16.msra.mxu0 0
          %3343 = vmatprep.subr.bf16.mxu0 0
          %3344 = vmatpush2.bf16.msra.mxu0 0
          %3345 = vmatprep.subr.bf16.mxu0 0
          %3346 = vmatpush2.bf16.msra.mxu0 0
          %3347 = vmatprep.subr.bf16.mxu0 0
          %3348 = vmatpush2.bf16.msra.mxu0 0
          %3349 = vmatprep.subr.bf16.mxu0 0
          %3350 = vmatpush2.bf16.msra.mxu0 0
          %3351 = vmatprep.subr.bf16.mxu0 0
          %3352 = vmatpush2.bf16.msra.mxu0 0
          %3353 = vmatprep.subr.bf16.mxu0 0
          %3354 = vmatpush2.bf16.msra.mxu0 0
          %3355 = vmatprep.mubr.bf16.mxu0 0
          %3356 = vmatmul.mubr.bf16.gmra.mxu0 %v3273
          %v3357 = vpop.f32.mrf.mxu0
          %v3358 = vadd.f32 0.0, %v3357
          %v3359 = vpop.f32.mrf.mxu0
          %v3360 = vpop.f32.mrf.mxu0
          %v3361 = vpop.f32.mrf.mxu0
          %3362 = vdwg.mxu0
          %v3363 = vadd.f32 %v3254, %v3358
          %s3364 = scalar_lea.vmem [#allocation17], 128
          %v3365 = vld [vmem:[%s3364] sm:$0xf]
          %v3366 = vld [vmem:[%s3364 + $0x4] sm:$0xf]
          %v3367 = vld [vmem:[%s3364 + $0x8] sm:$0xf]
          %v3368 = vld [vmem:[%s3364 + $0xc] sm:$0xf]
          %v3369 = vld [vmem:[%s3364 + $0x10] sm:$0xf]
          %v3370 = vld [vmem:[%s3364 + $0x14] sm:$0xf]
          %v3371 = vld [vmem:[%s3364 + $0x18] sm:$0xf]
          %v3372 = vld [vmem:[%s3364 + $0x1c] sm:$0xf]
          %v3373 = vld [vmem:[%s3364 + $0x20] sm:$0xf]
          %v3374 = vld [vmem:[%s3364 + $0x24] sm:$0xf]
          %v3375 = vld [vmem:[%s3364 + $0x28] sm:$0xf]
          %v3376 = vld [vmem:[%s3364 + $0x2c] sm:$0xf]
          %v3377 = vld [vmem:[%s3364 + $0x30] sm:$0xf]
          %v3378 = vld [vmem:[%s3364 + $0x34] sm:$0xf]
          %v3379 = vld [vmem:[%s3364 + $0x38] sm:$0xf]
          %v3380 = vld [vmem:[%s3364 + $0x3c] sm:$0xf]
          %v3397 = vunpack.c.l.b16 %v3365
          %v3398 = vunpack.c.l.b16 %v3366
          %v3399 = vunpack.c.l.b16 %v3367
          %v3400 = vunpack.c.l.b16 %v3368
          %v3401 = vunpack.c.l.b16 %v3369
          %v3402 = vunpack.c.l.b16 %v3370
          %v3403 = vunpack.c.l.b16 %v3371
          %v3404 = vunpack.c.l.b16 %v3372
          %v3405 = vunpack.c.l.b16 %v3373
          %v3406 = vunpack.c.l.b16 %v3374
          %v3407 = vunpack.c.l.b16 %v3375
          %v3408 = vunpack.c.l.b16 %v3376
          %v3409 = vunpack.c.l.b16 %v3377
          %v3410 = vunpack.c.l.b16 %v3378
          %v3411 = vunpack.c.l.b16 %v3379
          %v3412 = vunpack.c.l.b16 %v3380
          %v3413 = vpack.c.b16 %v3398, %v3397
          %v3414 = vpack.c.b16 %v3400, %v3399
          %v3415 = vpack.c.b16 %v3402, %v3401
          %v3416 = vpack.c.b16 %v3404, %v3403
          %v3417 = vpack.c.b16 %v3406, %v3405
          %v3418 = vpack.c.b16 %v3408, %v3407
          %v3419 = vpack.c.b16 %v3410, %v3409
          %v3420 = vpack.c.b16 %v3412, %v3411
          %3429 = vmatprep.subr.bf16.mxu0 0
          %3430 = vmatpush1.bf16.msra.mxu0 %v3420
          %3431 = vmatprep.subr.bf16.mxu0 0
          %3432 = vmatpush1.bf16.msra.mxu0 %v3419
          %3433 = vmatprep.subr.bf16.mxu0 0
          %3434 = vmatpush1.bf16.msra.mxu0 %v3418
          %3435 = vmatprep.subr.bf16.mxu0 0
          %3436 = vmatpush1.bf16.msra.mxu0 %v3417
          %3437 = vmatprep.subr.bf16.mxu0 0
          %3438 = vmatpush1.bf16.msra.mxu0 %v3416
          %3439 = vmatprep.subr.bf16.mxu0 0
          %3440 = vmatpush1.bf16.msra.mxu0 %v3415
          %3441 = vmatprep.subr.bf16.mxu0 0
          %3442 = vmatpush1.bf16.msra.mxu0 %v3414
          %3443 = vmatprep.subr.bf16.mxu0 0
          %3444 = vmatpush1.bf16.msra.mxu0 %v3413
          %3445 = vmatprep.subr.bf16.mxu0 0
          %3446 = vmatpush2.bf16.msra.mxu0 0
          %3447 = vmatprep.subr.bf16.mxu0 0
          %3448 = vmatpush2.bf16.msra.mxu0 0
          %3449 = vmatprep.subr.bf16.mxu0 0
          %3450 = vmatpush2.bf16.msra.mxu0 0
          %3451 = vmatprep.subr.bf16.mxu0 0
          %3452 = vmatpush2.bf16.msra.mxu0 0
          %3453 = vmatprep.subr.bf16.mxu0 0
          %3454 = vmatpush2.bf16.msra.mxu0 0
          %3455 = vmatprep.subr.bf16.mxu0 0
          %3456 = vmatpush2.bf16.msra.mxu0 0
          %3457 = vmatprep.subr.bf16.mxu0 0
          %3458 = vmatpush2.bf16.msra.mxu0 0
          %3459 = vmatprep.subr.bf16.mxu0 0
          %3460 = vmatpush2.bf16.msra.mxu0 0
          %3461 = vmatprep.mubr.bf16.mxu0 0
          %3462 = vmatmul.mubr.bf16.gmra.mxu0 %v3140
          %v3463 = vpop.f32.mrf.mxu0
          %v3464 = vadd.f32 0.0, %v3463
          %v3465 = vpop.f32.mrf.mxu0
          %v3466 = vpop.f32.mrf.mxu0
          %v3467 = vpop.f32.mrf.mxu0
          %3468 = vdwg.mxu0
          %v3469 = vadd.f32 %v3363, %v3464
          %s3470 = scalar_lea.vmem [#allocation17], 192
          %v3471 = vld [vmem:[%s3470] sm:$0xf]
          %v3472 = vld [vmem:[%s3470 + $0x4] sm:$0xf]
          %v3473 = vld [vmem:[%s3470 + $0x8] sm:$0xf]
          %v3474 = vld [vmem:[%s3470 + $0xc] sm:$0xf]
          %v3475 = vld [vmem:[%s3470 + $0x10] sm:$0xf]
          %v3476 = vld [vmem:[%s3470 + $0x14] sm:$0xf]
          %v3477 = vld [vmem:[%s3470 + $0x18] sm:$0xf]
          %v3478 = vld [vmem:[%s3470 + $0x1c] sm:$0xf]
          %v3479 = vld [vmem:[%s3470 + $0x20] sm:$0xf]
          %v3480 = vld [vmem:[%s3470 + $0x24] sm:$0xf]
          %v3481 = vld [vmem:[%s3470 + $0x28] sm:$0xf]
          %v3482 = vld [vmem:[%s3470 + $0x2c] sm:$0xf]
          %v3483 = vld [vmem:[%s3470 + $0x30] sm:$0xf]
          %v3484 = vld [vmem:[%s3470 + $0x34] sm:$0xf]
          %v3485 = vld [vmem:[%s3470 + $0x38] sm:$0xf]
          %v3486 = vld [vmem:[%s3470 + $0x3c] sm:$0xf]
          %v3488 = vrot.slane %v3140, 4
          %v3506 = vunpack.c.l.b16 %v3471
          %v3507 = vunpack.c.l.b16 %v3472
          %v3508 = vunpack.c.l.b16 %v3473
          %v3509 = vunpack.c.l.b16 %v3474
          %v3510 = vunpack.c.l.b16 %v3475
          %v3511 = vunpack.c.l.b16 %v3476
          %v3512 = vunpack.c.l.b16 %v3477
          %v3513 = vunpack.c.l.b16 %v3478
          %v3514 = vunpack.c.l.b16 %v3479
          %v3515 = vunpack.c.l.b16 %v3480
          %v3516 = vunpack.c.l.b16 %v3481
          %v3517 = vunpack.c.l.b16 %v3482
          %v3518 = vunpack.c.l.b16 %v3483
          %v3519 = vunpack.c.l.b16 %v3484
          %v3520 = vunpack.c.l.b16 %v3485
          %v3521 = vunpack.c.l.b16 %v3486
          %v3522 = vpack.c.b16 %v3507, %v3506
          %v3523 = vpack.c.b16 %v3509, %v3508
          %v3524 = vpack.c.b16 %v3511, %v3510
          %v3525 = vpack.c.b16 %v3513, %v3512
          %v3526 = vpack.c.b16 %v3515, %v3514
          %v3527 = vpack.c.b16 %v3517, %v3516
          %v3528 = vpack.c.b16 %v3519, %v3518
          %v3529 = vpack.c.b16 %v3521, %v3520
          %3538 = vmatprep.subr.bf16.mxu0 0
          %3539 = vmatpush1.bf16.msra.mxu0 %v3529
          %3540 = vmatprep.subr.bf16.mxu0 0
          %3541 = vmatpush1.bf16.msra.mxu0 %v3528
          %3542 = vmatprep.subr.bf16.mxu0 0
          %3543 = vmatpush1.bf16.msra.mxu0 %v3527
          %3544 = vmatprep.subr.bf16.mxu0 0
          %3545 = vmatpush1.bf16.msra.mxu0 %v3526
          %3546 = vmatprep.subr.bf16.mxu0 0
          %3547 = vmatpush1.bf16.msra.mxu0 %v3525
          %3548 = vmatprep.subr.bf16.mxu0 0
          %3549 = vmatpush1.bf16.msra.mxu0 %v3524
          %3550 = vmatprep.subr.bf16.mxu0 0
          %3551 = vmatpush1.bf16.msra.mxu0 %v3523
          %3552 = vmatprep.subr.bf16.mxu0 0
          %3553 = vmatpush1.bf16.msra.mxu0 %v3522
          %3554 = vmatprep.subr.bf16.mxu0 0
          %3555 = vmatpush2.bf16.msra.mxu0 0
          %3556 = vmatprep.subr.bf16.mxu0 0
          %3557 = vmatpush2.bf16.msra.mxu0 0
          %3558 = vmatprep.subr.bf16.mxu0 0
          %3559 = vmatpush2.bf16.msra.mxu0 0
          %3560 = vmatprep.subr.bf16.mxu0 0
          %3561 = vmatpush2.bf16.msra.mxu0 0
          %3562 = vmatprep.subr.bf16.mxu0 0
          %3563 = vmatpush2.bf16.msra.mxu0 0
          %3564 = vmatprep.subr.bf16.mxu0 0
          %3565 = vmatpush2.bf16.msra.mxu0 0
          %3566 = vmatprep.subr.bf16.mxu0 0
          %3567 = vmatpush2.bf16.msra.mxu0 0
          %3568 = vmatprep.subr.bf16.mxu0 0
          %3569 = vmatpush2.bf16.msra.mxu0 0
          %3570 = vmatprep.mubr.bf16.mxu0 0
          %3571 = vmatmul.mubr.bf16.gmra.mxu0 %v3488
          %v3572 = vpop.f32.mrf.mxu0
          %v3573 = vadd.f32 0.0, %v3572
          %v3574 = vpop.f32.mrf.mxu0
          %v3575 = vpop.f32.mrf.mxu0
          %v3576 = vpop.f32.mrf.mxu0
          %3577 = vdwg.mxu0
          %v3578 = vadd.f32 %v3469, %v3573
          %s3579 = scalar_lea.vmem [#allocation17], 256
          %v3580 = vld [vmem:[%s3579] sm:$0xf]
          %v3581 = vld [vmem:[%s3579 + $0x4] sm:$0xf]
          %v3582 = vld [vmem:[%s3579 + $0x8] sm:$0xf]
          %v3583 = vld [vmem:[%s3579 + $0xc] sm:$0xf]
          %v3584 = vld [vmem:[%s3579 + $0x10] sm:$0xf]
          %v3585 = vld [vmem:[%s3579 + $0x14] sm:$0xf]
          %v3586 = vld [vmem:[%s3579 + $0x18] sm:$0xf]
          %v3587 = vld [vmem:[%s3579 + $0x1c] sm:$0xf]
          %v3588 = vld [vmem:[%s3579 + $0x20] sm:$0xf]
          %v3589 = vld [vmem:[%s3579 + $0x24] sm:$0xf]
          %v3590 = vld [vmem:[%s3579 + $0x28] sm:$0xf]
          %v3591 = vld [vmem:[%s3579 + $0x2c] sm:$0xf]
          %v3592 = vld [vmem:[%s3579 + $0x30] sm:$0xf]
          %v3593 = vld [vmem:[%s3579 + $0x34] sm:$0xf]
          %v3594 = vld [vmem:[%s3579 + $0x38] sm:$0xf]
          %v3595 = vld [vmem:[%s3579 + $0x3c] sm:$0xf]
          %v3612 = vunpack.c.l.b16 %v3580
          %v3613 = vunpack.c.l.b16 %v3581
          %v3614 = vunpack.c.l.b16 %v3582
          %v3615 = vunpack.c.l.b16 %v3583
          %v3616 = vunpack.c.l.b16 %v3584
          %v3617 = vunpack.c.l.b16 %v3585
          %v3618 = vunpack.c.l.b16 %v3586
          %v3619 = vunpack.c.l.b16 %v3587
          %v3620 = vunpack.c.l.b16 %v3588
          %v3621 = vunpack.c.l.b16 %v3589
          %v3622 = vunpack.c.l.b16 %v3590
          %v3623 = vunpack.c.l.b16 %v3591
          %v3624 = vunpack.c.l.b16 %v3592
          %v3625 = vunpack.c.l.b16 %v3593
          %v3626 = vunpack.c.l.b16 %v3594
          %v3627 = vunpack.c.l.b16 %v3595
          %v3628 = vpack.c.b16 %v3613, %v3612
          %v3629 = vpack.c.b16 %v3615, %v3614
          %v3630 = vpack.c.b16 %v3617, %v3616
          %v3631 = vpack.c.b16 %v3619, %v3618
          %v3632 = vpack.c.b16 %v3621, %v3620
          %v3633 = vpack.c.b16 %v3623, %v3622
          %v3634 = vpack.c.b16 %v3625, %v3624
          %v3635 = vpack.c.b16 %v3627, %v3626
          %3644 = vmatprep.subr.bf16.mxu0 0
          %3645 = vmatpush1.bf16.msra.mxu0 %v3635
          %3646 = vmatprep.subr.bf16.mxu0 0
          %3647 = vmatpush1.bf16.msra.mxu0 %v3634
          %3648 = vmatprep.subr.bf16.mxu0 0
          %3649 = vmatpush1.bf16.msra.mxu0 %v3633
          %3650 = vmatprep.subr.bf16.mxu0 0
          %3651 = vmatpush1.bf16.msra.mxu0 %v3632
          %3652 = vmatprep.subr.bf16.mxu0 0
          %3653 = vmatpush1.bf16.msra.mxu0 %v3631
          %3654 = vmatprep.subr.bf16.mxu0 0
          %3655 = vmatpush1.bf16.msra.mxu0 %v3630
          %3656 = vmatprep.subr.bf16.mxu0 0
          %3657 = vmatpush1.bf16.msra.mxu0 %v3629
          %3658 = vmatprep.subr.bf16.mxu0 0
          %3659 = vmatpush1.bf16.msra.mxu0 %v3628
          %3660 = vmatprep.subr.bf16.mxu0 0
          %3661 = vmatpush2.bf16.msra.mxu0 0
          %3662 = vmatprep.subr.bf16.mxu0 0
          %3663 = vmatpush2.bf16.msra.mxu0 0
          %3664 = vmatprep.subr.bf16.mxu0 0
          %3665 = vmatpush2.bf16.msra.mxu0 0
          %3666 = vmatprep.subr.bf16.mxu0 0
          %3667 = vmatpush2.bf16.msra.mxu0 0
          %3668 = vmatprep.subr.bf16.mxu0 0
          %3669 = vmatpush2.bf16.msra.mxu0 0
          %3670 = vmatprep.subr.bf16.mxu0 0
          %3671 = vmatpush2.bf16.msra.mxu0 0
          %3672 = vmatprep.subr.bf16.mxu0 0
          %3673 = vmatpush2.bf16.msra.mxu0 0
          %3674 = vmatprep.subr.bf16.mxu0 0
          %3675 = vmatpush2.bf16.msra.mxu0 0
          %3676 = vmatprep.mubr.bf16.mxu0 0
          %3677 = vmatmul.mubr.bf16.gmra.mxu0 %v3141
          %v3678 = vpop.f32.mrf.mxu0
          %v3679 = vadd.f32 0.0, %v3678
          %v3680 = vpop.f32.mrf.mxu0
          %v3681 = vpop.f32.mrf.mxu0
          %v3682 = vpop.f32.mrf.mxu0
          %3683 = vdwg.mxu0
          %v3684 = vadd.f32 %v3578, %v3679
          %3685 = vst [vmem:[%s19] sm:$0xff] %v3684
        $region148: #{transformer_forward.1} parent=95 // pred_fallthru
          _
        // Predicated region
        $region149: #{transformer_forward.1} parent=95 // pred_check
          %p3686 = pneg %p514
        $region150: #{transformer_forward.1} parent=95 // pred_check_branch
          %3688 = sbr.rel (%p3686) target = $region152
        $region151: #{transformer_forward.1} parent=95 // pred_region
          _
        $region152: #{transformer_forward.1} parent=95 // pred_fallthru
          _
        // Predicated region
        $region153: #{transformer_forward.1} parent=95 // pred_check
          %p3689 = pneg %p514
        $region154: #{transformer_forward.1} parent=95 // pred_check_branch
          %3691 = sbr.rel (%p3689) target = $region156
        $region155: #{transformer_forward.1} parent=95 // pred_region
          _
        $region156: #{transformer_forward.1} parent=95 // pred_fallthru
          _
      $region96: #{transformer_forward.1} parent=5 // pred_fallthru
        _
      %p3692 = scmp.le.s32.totalorder 2, %s37
      // Predicated region
      $region157: #{transformer_forward.1} parent=5 // pred_check
        %p3693 = pneg %p3692
      $region158: #{transformer_forward.1} parent=5 // pred_check_branch
        %3695 = sbr.rel (%p3693) target = $region160
      $region159: #{transformer_forward.1} parent=5 // pred_region
        %s3696 = ssub.s32 %s37, 2
      $region160: #{transformer_forward.1} parent=5 // pred_fallthru
        _
    $region6: #{transformer_forward.1} parent=1 // loop_footer
      %s41 = sadd.s32 1, %s37
    $region7: #{transformer_forward.1} parent=1 // loop_footer_branch
      %36 = sbr.rel target = $region3
    $region8: #{transformer_forward.1} parent=1 // loop_exit
      _
    %3697 = vsyncpa [#allocation4], 1
    %s3698 = scalar_lea.sflag [#allocation4], 1
    %3699 = vsyncpa %s3698, 1
    %3700 = vsyncpa [#allocation6], 1
    %s3701 = scalar_lea.sflag [#allocation6], 1
    %3702 = vsyncpa %s3701, 1
    %3703 = vsyncpa [#allocation9], 1
    %s3704 = scalar_lea.sflag [#allocation9], 1
    %3705 = vsyncpa %s3704, 1
    %3706 = vsyncpa [#allocation12], 1
    %s3707 = scalar_lea.sflag [#allocation12], 1
    %3708 = vsyncpa %s3707, 1
    %3709 = vsyncpa [#allocation15], 1
    %3710 = vsyncpa [#allocation18], 1

</llo_original>
